<compile_context>
chip_gen: v7x
topology: tpu7x:2x2x1
jax: 0.10.0
libtpu: 0.0.40
codegen_flags: <defaults>
</compile_context>

<pallas_src>
import numpy as np
import jax
import jax.numpy as jnp
from jax.experimental import pallas as pl
from jax.experimental.pallas import tpu as pltpu

GRID = 28                      # SquareGrid(28)
GRID_PAD = 32                  # zero-halo padded grid
N_POINTS = GRID * GRID         # 784
N_PAD = GRID_PAD * GRID_PAD    # 1024 = 8 * 128 -> lane aligned
NUM_CLASSES = 10
RADIUS = 2                     # grid.graphNeighbor(2)

# halo must be wide enough that every wrapped / out-of-grid stencil read lands
# on a zeroed halo cell (this replaces the per-offset masks).
assert GRID_PAD >= GRID + RADIUS + 1, "halo too narrow for stencil radius"
assert N_PAD % 128 == 0


# --------------------------------------------------------------------------
# static neighbour precomputation (mirrors grid.graphNeighbor(2))
# --------------------------------------------------------------------------
def _build_neighbors(grid=GRID, radius=RADIUS):
    offsets = [(di, dj)
               for di in range(-radius, radius + 1)
               for dj in range(-radius, radius + 1)
               if abs(di) + abs(dj) <= radius]
    K = len(offsets)                                   # 13
    idx = np.zeros((grid * grid, K), dtype=np.int32)
    mask = np.zeros((grid * grid, K), dtype=np.float32)
    for p in range(grid * grid):
        i, j = divmod(p, grid)
        for k, (di, dj) in enumerate(offsets):
            ni, nj = i + di, j + dj
            if 0 <= ni < grid and 0 <= nj < grid:
                idx[p, k] = ni * grid + nj
                mask[p, k] = 1.0
    return offsets, idx, mask


OFFSETS, _NBR_IDX_NP, _NBR_MASK_NP = _build_neighbors()
K_NBR = len(OFFSETS)                                        # 13
SHIFTS_PAD = tuple(di * GRID_PAD + dj for (di, dj) in OFFSETS)
NBR_IDX = jnp.asarray(_NBR_IDX_NP)                          # reference only
NBR_MASK = jnp.asarray(_NBR_MASK_NP)                        # reference only

# interior-validity mask on the padded grid (1 inside the 28x28 image, 0 halo)
_valid = np.zeros((GRID_PAD, GRID_PAD), np.float32)
_valid[:GRID, :GRID] = 1.0
VALID_PAD = jnp.asarray(_valid.reshape(1, N_PAD))           # (1, N_PAD)


# --------------------------------------------------------------------------
# fused forward pass: one pallas_call
# --------------------------------------------------------------------------
def sphere_gauge_cnn_forward(x, conv_params, wfc, bfc, *, batch_tile=None):
    """x: (N_POINTS, B, C0) -> logits (B, 10); whole net in one kernel."""
    N, B, C0 = x.shape
    assert N == N_POINTS
    n_layers = len(conv_params)

    BT = B if batch_tile is None else batch_tile            # batch per grid step
    assert B % BT == 0
    num_tiles = B // BT
    L = BT * N_PAD                                           # lanes per step

    # ---- host-side layout glue: zero-halo 32x32 grid, batch folded into lanes
    xg = x.reshape(GRID, GRID, B, C0)
    xp = jnp.zeros((GRID_PAD, GRID_PAD, B, C0), x.dtype).at[:GRID, :GRID].set(xg)
    xp = jnp.transpose(xp.reshape(N_PAD, B, C0), (2, 1, 0))  # (C0, B, N_PAD)
    xp = xp.reshape(C0, B * N_PAD)                           # lane = b*1024 + q

    halo = jnp.tile(VALID_PAD, (1, BT))                      # (1, L)

    flat, cins = [], []
    for (W, b) in conv_params:
        K, cin, cout = W.shape
        cins.append(cin)
        flat.append(jnp.transpose(W.reshape(K * cin, cout)))  # (Cout, K*Cin)
        flat.append(jnp.transpose(b))                         # (Cout, 1)
    max_cin = max(cins)
    wfc_t = jnp.transpose(wfc)                                # (10, C_last)
    bfc_t = jnp.transpose(bfc)                                # (10, 1)

    def kernel(x_ref, halo_ref, *rest):
        *p_refs, wfc_ref, bfc_ref, out_ref, vstack_ref = rest
        halo_m = halo_ref[...]                                # (1, L)
        v = x_ref[...]                                        # (C0, L)
        for li in range(n_layers):
            w_t = p_refs[2 * li][...]                         # (Cout, K*Cin)
            bias = p_refs[2 * li + 1][...]                    # (Cout, 1)
            cin = v.shape[0]
            kcin = K_NBR * cin
            # build the stacked neighbour matrix in VMEM scratch via XLU rolls
            for k, s in enumerate(SHIFTS_PAD):
                rolled = v if s == 0 else pltpu.roll(v, shift=(-s) % L, axis=1)
                vstack_ref[k * cin:(k + 1) * cin, :] = rolled
            # one MXU matmul per layer over the full K*Cin contraction
            v = jnp.dot(w_t, vstack_ref[0:kcin, :],
                        preferred_element_type=jnp.float32) + bias
            # re-zero the halo (needed for the next layer's rolls / final sum)
            v = v * halo_m
        # per-batch grid-point sum (lane-aligned XLU reduces) BEFORE the fc
        cols = [jnp.sum(v[:, bb * N_PAD:(bb + 1) * N_PAD], axis=1, keepdims=True)
                for bb in range(BT)]
        s_cols = cols[0] if BT == 1 else jnp.concatenate(cols, axis=1)  # (C, BT)
        logits = jnp.dot(wfc_ref[...], s_cols,
                         preferred_element_type=jnp.float32) + bfc_ref[...]
        out_ref[0] = logits.astype(out_ref.dtype)             # (10, BT)

    def const_spec(arr):
        return pl.BlockSpec(arr.shape, lambda t: (0,) * arr.ndim)

    in_specs = [pl.BlockSpec((C0, L), lambda t: (0, t)),       # per-tile input
                const_spec(halo)]
    in_specs += [const_spec(p) for p in flat]
    in_specs += [const_spec(wfc_t), const_spec(bfc_t)]

    out = pl.pallas_call(
        kernel,
        out_shape=jax.ShapeDtypeStruct((num_tiles, NUM_CLASSES, BT), jnp.float32),
        grid=(num_tiles,),
        in_specs=in_specs,
        out_specs=pl.BlockSpec((1, NUM_CLASSES, BT), lambda t: (t, 0, 0)),
        scratch_shapes=[pltpu.VMEM((K_NBR * max_cin, L), jnp.float32)],
        compiler_params=pltpu.CompilerParams(
            dimension_semantics=("parallel",)),
    )(xp, halo, *flat, wfc_t, bfc_t)

    # (num_tiles, 10, BT) -> (B, 10)
    return jnp.transpose(out, (0, 2, 1)).reshape(B, NUM_CLASSES)


# --------------------------------------------------------------------------
# parameters + pure-JAX reference (gather-based, 784-point layout) for a check
# --------------------------------------------------------------------------
def init_params(rep, K, key):
    params = []
    for d in range(len(rep) - 1):
        key, kw = jax.random.split(key)
        cin, cout = rep[d], rep[d + 1]
        W = jax.random.normal(kw, (K, cin, cout), jnp.float32) / np.sqrt(K * cin)
        b = jnp.zeros((1, cout), jnp.float32)
        params.append((W, b))
    key, kfc = jax.random.split(key)
    wfc = jax.random.normal(kfc, (rep[-1], NUM_CLASSES), jnp.float32) / np.sqrt(rep[-1])
    bfc = jnp.zeros((1, NUM_CLASSES), jnp.float32)
    return params, wfc, bfc


def reference_forward(x, conv_params, wfc, bfc):
    for (W, b) in conv_params:
        N, B, Cin = x.shape
        Cout = W.shape[-1]
        xg = x[NBR_IDX] * NBR_MASK[:, :, None, None]           # (N, K, B, Cin)
        xg = jnp.transpose(xg, (0, 2, 1, 3)).reshape(N * B, K_NBR * Cin)
        x = (xg @ W.reshape(K_NBR * Cin, Cout) + b).reshape(N, B, Cout)
    return jnp.sum(x, axis=0) @ wfc + bfc


if __name__ == "__main__":
    rep = [1, 8, 16]          # channels per layer (depth = 2)
    B = 2                     # batch

    key = jax.random.PRNGKey(0)
    key, kx = jax.random.split(key)
    x = jax.random.normal(kx, (N_POINTS, B, rep[0]), jnp.float32)
    params, wfc, bfc = init_params(rep, K_NBR, key)

    out = jax.jit(sphere_gauge_cnn_forward)(x, params, wfc, bfc)
    out = jax.block_until_ready(out)

    ref = reference_forward(x, params, wfc, bfc)
    assert out.shape == (B, NUM_CLASSES)
    np.testing.assert_allclose(np.asarray(out), np.asarray(ref),
                               rtol=1e-3, atol=1e-3)
    print("KERNEL_OK")
</pallas_src>

<mosaic_0001>
module attributes {stable_mosaic.version = 11 : i64} {
  func.func @kernel(%arg0: i32, %arg1: memref<1x2048xf32, #tpu.memory_space<vmem>>, %arg2: memref<1x2048xf32, #tpu.memory_space<vmem>>, %arg3: memref<8x13xf32, #tpu.memory_space<vmem>>, %arg4: memref<8x1xf32, #tpu.memory_space<vmem>>, %arg5: memref<16x104xf32, #tpu.memory_space<vmem>>, %arg6: memref<16x1xf32, #tpu.memory_space<vmem>>, %arg7: memref<10x16xf32, #tpu.memory_space<vmem>>, %arg8: memref<10x1xf32, #tpu.memory_space<vmem>>, %arg9: memref<1x10x2xf32, #tpu.memory_space<vmem>>, %arg10: memref<104x2048xf32, #tpu.memory_space<vmem>>) attributes {dimension_semantics = [#tpu.dimension_semantics<parallel>], iteration_bounds = array<i64: 1>, scalar_prefetch = 0 : i64, scratch_operands = 1 : i64, tpu.core_type = #tpu.core_type<tc>, window_params = [{transform_indices = @transform_0, window_bounds = array<i64: 1, 2048>}, {pipeline_mode = #tpu.pipeline_mode<synchronous>, transform_indices = @transform_1, window_bounds = array<i64: 1, 2048>}, {pipeline_mode = #tpu.pipeline_mode<synchronous>, transform_indices = @transform_2, window_bounds = array<i64: 8, 13>}, {pipeline_mode = #tpu.pipeline_mode<synchronous>, transform_indices = @transform_3, window_bounds = array<i64: 8, 1>}, {pipeline_mode = #tpu.pipeline_mode<synchronous>, transform_indices = @transform_4, window_bounds = array<i64: 16, 104>}, {pipeline_mode = #tpu.pipeline_mode<synchronous>, transform_indices = @transform_5, window_bounds = array<i64: 16, 1>}, {pipeline_mode = #tpu.pipeline_mode<synchronous>, transform_indices = @transform_6, window_bounds = array<i64: 10, 16>}, {pipeline_mode = #tpu.pipeline_mode<synchronous>, transform_indices = @transform_7, window_bounds = array<i64: 10, 1>}, {transform_indices = @transform_8, window_bounds = array<i64: 1, 10, 2>}]} {
    %c0 = arith.constant 0 : index
    %c0_0 = arith.constant 0 : index
    %0 = vector.load %arg2[%c0, %c0_0] : memref<1x2048xf32, #tpu.memory_space<vmem>>, vector<1x2048xf32>
    %c0_1 = arith.constant 0 : index
    %c0_2 = arith.constant 0 : index
    %1 = vector.load %arg1[%c0_1, %c0_2] : memref<1x2048xf32, #tpu.memory_space<vmem>>, vector<1x2048xf32>
    %c0_3 = arith.constant 0 : index
    %c0_4 = arith.constant 0 : index
    %2 = vector.load %arg3[%c0_3, %c0_4] : memref<8x13xf32, #tpu.memory_space<vmem>>, vector<8x13xf32>
    %c0_5 = arith.constant 0 : index
    %c0_6 = arith.constant 0 : index
    %3 = vector.load %arg4[%c0_5, %c0_6] : memref<8x1xf32, #tpu.memory_space<vmem>>, vector<8x1xf32>
    %c64_i32 = arith.constant 64 : i32
    %4 = tpu.dynamic_rotate %1 by %c64_i32 dim 1 : vector<1x2048xf32>, i32 -> vector<1x2048xf32>
    %c0_7 = arith.constant 0 : index
    %c0_8 = arith.constant 0 : index
    %5 = vector.load %arg10[%c0_7, %c0_8] : memref<104x2048xf32, #tpu.memory_space<vmem>>, vector<1x2048xf32>
    tpu.vector_store %arg10[%c0_7, %c0_8], %4 {strides = array<i32>} : memref<104x2048xf32, #tpu.memory_space<vmem>>, vector<1x2048xf32>,
    %c33_i32 = arith.constant 33 : i32
    %6 = tpu.dynamic_rotate %1 by %c33_i32 dim 1 : vector<1x2048xf32>, i32 -> vector<1x2048xf32>
    %c1 = arith.constant 1 : index
    %c0_9 = arith.constant 0 : index
    %7 = vector.load %arg10[%c1, %c0_9] : memref<104x2048xf32, #tpu.memory_space<vmem>>, vector<1x2048xf32>
    tpu.vector_store %arg10[%c1, %c0_9], %6 {strides = array<i32>} : memref<104x2048xf32, #tpu.memory_space<vmem>>, vector<1x2048xf32>,
    %c32_i32 = arith.constant 32 : i32
    %8 = tpu.dynamic_rotate %1 by %c32_i32 dim 1 : vector<1x2048xf32>, i32 -> vector<1x2048xf32>
    %c2 = arith.constant 2 : index
    %c0_10 = arith.constant 0 : index
    %9 = vector.load %arg10[%c2, %c0_10] : memref<104x2048xf32, #tpu.memory_space<vmem>>, vector<1x2048xf32>
    tpu.vector_store %arg10[%c2, %c0_10], %8 {strides = array<i32>} : memref<104x2048xf32, #tpu.memory_space<vmem>>, vector<1x2048xf32>,
    %c31_i32 = arith.constant 31 : i32
    %10 = tpu.dynamic_rotate %1 by %c31_i32 dim 1 : vector<1x2048xf32>, i32 -> vector<1x2048xf32>
    %c3 = arith.constant 3 : index
    %c0_11 = arith.constant 0 : index
    %11 = vector.load %arg10[%c3, %c0_11] : memref<104x2048xf32, #tpu.memory_space<vmem>>, vector<1x2048xf32>
    tpu.vector_store %arg10[%c3, %c0_11], %10 {strides = array<i32>} : memref<104x2048xf32, #tpu.memory_space<vmem>>, vector<1x2048xf32>,
    %c2_i32 = arith.constant 2 : i32
    %12 = tpu.dynamic_rotate %1 by %c2_i32 dim 1 : vector<1x2048xf32>, i32 -> vector<1x2048xf32>
    %c4 = arith.constant 4 : index
    %c0_12 = arith.constant 0 : index
    %13 = vector.load %arg10[%c4, %c0_12] : memref<104x2048xf32, #tpu.memory_space<vmem>>, vector<1x2048xf32>
    tpu.vector_store %arg10[%c4, %c0_12], %12 {strides = array<i32>} : memref<104x2048xf32, #tpu.memory_space<vmem>>, vector<1x2048xf32>,
    %c1_i32 = arith.constant 1 : i32
    %14 = tpu.dynamic_rotate %1 by %c1_i32 dim 1 : vector<1x2048xf32>, i32 -> vector<1x2048xf32>
    %c5 = arith.constant 5 : index
    %c0_13 = arith.constant 0 : index
    %15 = vector.load %arg10[%c5, %c0_13] : memref<104x2048xf32, #tpu.memory_space<vmem>>, vector<1x2048xf32>
    tpu.vector_store %arg10[%c5, %c0_13], %14 {strides = array<i32>} : memref<104x2048xf32, #tpu.memory_space<vmem>>, vector<1x2048xf32>,
    %c6 = arith.constant 6 : index
    %c0_14 = arith.constant 0 : index
    %16 = vector.load %arg10[%c6, %c0_14] : memref<104x2048xf32, #tpu.memory_space<vmem>>, vector<1x2048xf32>
    tpu.vector_store %arg10[%c6, %c0_14], %1 {strides = array<i32>} : memref<104x2048xf32, #tpu.memory_space<vmem>>, vector<1x2048xf32>,
    %c2047_i32 = arith.constant 2047 : i32
    %17 = tpu.dynamic_rotate %1 by %c2047_i32 dim 1 : vector<1x2048xf32>, i32 -> vector<1x2048xf32>
    %c7 = arith.constant 7 : index
    %c0_15 = arith.constant 0 : index
    %18 = vector.load %arg10[%c7, %c0_15] : memref<104x2048xf32, #tpu.memory_space<vmem>>, vector<1x2048xf32>
    tpu.vector_store %arg10[%c7, %c0_15], %17 {strides = array<i32>} : memref<104x2048xf32, #tpu.memory_space<vmem>>, vector<1x2048xf32>,
    %c2046_i32 = arith.constant 2046 : i32
    %19 = tpu.dynamic_rotate %1 by %c2046_i32 dim 1 : vector<1x2048xf32>, i32 -> vector<1x2048xf32>
    %c8 = arith.constant 8 : index
    %c0_16 = arith.constant 0 : index
    %20 = vector.load %arg10[%c8, %c0_16] : memref<104x2048xf32, #tpu.memory_space<vmem>>, vector<1x2048xf32>
    tpu.vector_store %arg10[%c8, %c0_16], %19 {strides = array<i32>} : memref<104x2048xf32, #tpu.memory_space<vmem>>, vector<1x2048xf32>,
    %c2017_i32 = arith.constant 2017 : i32
    %21 = tpu.dynamic_rotate %1 by %c2017_i32 dim 1 : vector<1x2048xf32>, i32 -> vector<1x2048xf32>
    %c9 = arith.constant 9 : index
    %c0_17 = arith.constant 0 : index
    %22 = vector.load %arg10[%c9, %c0_17] : memref<104x2048xf32, #tpu.memory_space<vmem>>, vector<1x2048xf32>
    tpu.vector_store %arg10[%c9, %c0_17], %21 {strides = array<i32>} : memref<104x2048xf32, #tpu.memory_space<vmem>>, vector<1x2048xf32>,
    %c2016_i32 = arith.constant 2016 : i32
    %23 = tpu.dynamic_rotate %1 by %c2016_i32 dim 1 : vector<1x2048xf32>, i32 -> vector<1x2048xf32>
    %c10 = arith.constant 10 : index
    %c0_18 = arith.constant 0 : index
    %24 = vector.load %arg10[%c10, %c0_18] : memref<104x2048xf32, #tpu.memory_space<vmem>>, vector<1x2048xf32>
    tpu.vector_store %arg10[%c10, %c0_18], %23 {strides = array<i32>} : memref<104x2048xf32, #tpu.memory_space<vmem>>, vector<1x2048xf32>,
    %c2015_i32 = arith.constant 2015 : i32
    %25 = tpu.dynamic_rotate %1 by %c2015_i32 dim 1 : vector<1x2048xf32>, i32 -> vector<1x2048xf32>
    %c11 = arith.constant 11 : index
    %c0_19 = arith.constant 0 : index
    %26 = vector.load %arg10[%c11, %c0_19] : memref<104x2048xf32, #tpu.memory_space<vmem>>, vector<1x2048xf32>
    tpu.vector_store %arg10[%c11, %c0_19], %25 {strides = array<i32>} : memref<104x2048xf32, #tpu.memory_space<vmem>>, vector<1x2048xf32>,
    %c1984_i32 = arith.constant 1984 : i32
    %27 = tpu.dynamic_rotate %1 by %c1984_i32 dim 1 : vector<1x2048xf32>, i32 -> vector<1x2048xf32>
    %c12 = arith.constant 12 : index
    %c0_20 = arith.constant 0 : index
    %28 = vector.load %arg10[%c12, %c0_20] : memref<104x2048xf32, #tpu.memory_space<vmem>>, vector<1x2048xf32>
    tpu.vector_store %arg10[%c12, %c0_20], %27 {strides = array<i32>} : memref<104x2048xf32, #tpu.memory_space<vmem>>, vector<1x2048xf32>,
    %c0_21 = arith.constant 0 : index
    %c0_22 = arith.constant 0 : index
    %29 = vector.load %arg10[%c0_21, %c0_22] : memref<104x2048xf32, #tpu.memory_space<vmem>>, vector<13x2048xf32>
    %cst = arith.constant dense<0.000000e+00> : vector<8x2048xf32>
    %30 = tpu.matmul %2, %29, %cst {dimension_numbers = #tpu.dot_dimension_numbers<[1], [0], [0], [1], [0, 0, 1, 1], [], []>} : vector<8x13xf32>, vector<13x2048xf32>, vector<8x2048xf32> -> vector<8x2048xf32>
    %31 = vector.broadcast %3 : vector<8x1xf32> to vector<8x2048xf32>
    %32 = arith.addf %30, %31 : vector<8x2048xf32>
    %33 = vector.broadcast %0 : vector<1x2048xf32> to vector<8x2048xf32>
    %34 = arith.mulf %32, %33 : vector<8x2048xf32>
    %c0_23 = arith.constant 0 : index
    %c0_24 = arith.constant 0 : index
    %35 = vector.load %arg5[%c0_23, %c0_24] : memref<16x104xf32, #tpu.memory_space<vmem>>, vector<16x104xf32>
    %c0_25 = arith.constant 0 : index
    %c0_26 = arith.constant 0 : index
    %36 = vector.load %arg6[%c0_25, %c0_26] : memref<16x1xf32, #tpu.memory_space<vmem>>, vector<16x1xf32>
    %c64_i32_27 = arith.constant 64 : i32
    %37 = tpu.dynamic_rotate %34 by %c64_i32_27 dim 1 : vector<8x2048xf32>, i32 -> vector<8x2048xf32>
    %c0_28 = arith.constant 0 : index
    %c0_29 = arith.constant 0 : index
    %38 = vector.load %arg10[%c0_28, %c0_29] : memref<104x2048xf32, #tpu.memory_space<vmem>>, vector<8x2048xf32>
    tpu.vector_store %arg10[%c0_28, %c0_29], %37 {strides = array<i32>} : memref<104x2048xf32, #tpu.memory_space<vmem>>, vector<8x2048xf32>,
    %c33_i32_30 = arith.constant 33 : i32
    %39 = tpu.dynamic_rotate %34 by %c33_i32_30 dim 1 : vector<8x2048xf32>, i32 -> vector<8x2048xf32>
    %c8_31 = arith.constant 8 : index
    %c0_32 = arith.constant 0 : index
    %40 = vector.load %arg10[%c8_31, %c0_32] : memref<104x2048xf32, #tpu.memory_space<vmem>>, vector<8x2048xf32>
    tpu.vector_store %arg10[%c8_31, %c0_32], %39 {strides = array<i32>} : memref<104x2048xf32, #tpu.memory_space<vmem>>, vector<8x2048xf32>,
    %c32_i32_33 = arith.constant 32 : i32
    %41 = tpu.dynamic_rotate %34 by %c32_i32_33 dim 1 : vector<8x2048xf32>, i32 -> vector<8x2048xf32>
    %c16 = arith.constant 16 : index
    %c0_34 = arith.constant 0 : index
    %42 = vector.load %arg10[%c16, %c0_34] : memref<104x2048xf32, #tpu.memory_space<vmem>>, vector<8x2048xf32>
    tpu.vector_store %arg10[%c16, %c0_34], %41 {strides = array<i32>} : memref<104x2048xf32, #tpu.memory_space<vmem>>, vector<8x2048xf32>,
    %c31_i32_35 = arith.constant 31 : i32
    %43 = tpu.dynamic_rotate %34 by %c31_i32_35 dim 1 : vector<8x2048xf32>, i32 -> vector<8x2048xf32>
    %c24 = arith.constant 24 : index
    %c0_36 = arith.constant 0 : index
    %44 = vector.load %arg10[%c24, %c0_36] : memref<104x2048xf32, #tpu.memory_space<vmem>>, vector<8x2048xf32>
    tpu.vector_store %arg10[%c24, %c0_36], %43 {strides = array<i32>} : memref<104x2048xf32, #tpu.memory_space<vmem>>, vector<8x2048xf32>,
    %c2_i32_37 = arith.constant 2 : i32
    %45 = tpu.dynamic_rotate %34 by %c2_i32_37 dim 1 : vector<8x2048xf32>, i32 -> vector<8x2048xf32>
    %c32 = arith.constant 32 : index
    %c0_38 = arith.constant 0 : index
    %46 = vector.load %arg10[%c32, %c0_38] : memref<104x2048xf32, #tpu.memory_space<vmem>>, vector<8x2048xf32>
    tpu.vector_store %arg10[%c32, %c0_38], %45 {strides = array<i32>} : memref<104x2048xf32, #tpu.memory_space<vmem>>, vector<8x2048xf32>,
    %c1_i32_39 = arith.constant 1 : i32
    %47 = tpu.dynamic_rotate %34 by %c1_i32_39 dim 1 : vector<8x2048xf32>, i32 -> vector<8x2048xf32>
    %c40 = arith.constant 40 : index
    %c0_40 = arith.constant 0 : index
    %48 = vector.load %arg10[%c40, %c0_40] : memref<104x2048xf32, #tpu.memory_space<vmem>>, vector<8x2048xf32>
    tpu.vector_store %arg10[%c40, %c0_40], %47 {strides = array<i32>} : memref<104x2048xf32, #tpu.memory_space<vmem>>, vector<8x2048xf32>,
    %c48 = arith.constant 48 : index
    %c0_41 = arith.constant 0 : index
    %49 = vector.load %arg10[%c48, %c0_41] : memref<104x2048xf32, #tpu.memory_space<vmem>>, vector<8x2048xf32>
    tpu.vector_store %arg10[%c48, %c0_41], %34 {strides = array<i32>} : memref<104x2048xf32, #tpu.memory_space<vmem>>, vector<8x2048xf32>,
    %c2047_i32_42 = arith.constant 2047 : i32
    %50 = tpu.dynamic_rotate %34 by %c2047_i32_42 dim 1 : vector<8x2048xf32>, i32 -> vector<8x2048xf32>
    %c56 = arith.constant 56 : index
    %c0_43 = arith.constant 0 : index
    %51 = vector.load %arg10[%c56, %c0_43] : memref<104x2048xf32, #tpu.memory_space<vmem>>, vector<8x2048xf32>
    tpu.vector_store %arg10[%c56, %c0_43], %50 {strides = array<i32>} : memref<104x2048xf32, #tpu.memory_space<vmem>>, vector<8x2048xf32>,
    %c2046_i32_44 = arith.constant 2046 : i32
    %52 = tpu.dynamic_rotate %34 by %c2046_i32_44 dim 1 : vector<8x2048xf32>, i32 -> vector<8x2048xf32>
    %c64 = arith.constant 64 : index
    %c0_45 = arith.constant 0 : index
    %53 = vector.load %arg10[%c64, %c0_45] : memref<104x2048xf32, #tpu.memory_space<vmem>>, vector<8x2048xf32>
    tpu.vector_store %arg10[%c64, %c0_45], %52 {strides = array<i32>} : memref<104x2048xf32, #tpu.memory_space<vmem>>, vector<8x2048xf32>,
    %c2017_i32_46 = arith.constant 2017 : i32
    %54 = tpu.dynamic_rotate %34 by %c2017_i32_46 dim 1 : vector<8x2048xf32>, i32 -> vector<8x2048xf32>
    %c72 = arith.constant 72 : index
    %c0_47 = arith.constant 0 : index
    %55 = vector.load %arg10[%c72, %c0_47] : memref<104x2048xf32, #tpu.memory_space<vmem>>, vector<8x2048xf32>
    tpu.vector_store %arg10[%c72, %c0_47], %54 {strides = array<i32>} : memref<104x2048xf32, #tpu.memory_space<vmem>>, vector<8x2048xf32>,
    %c2016_i32_48 = arith.constant 2016 : i32
    %56 = tpu.dynamic_rotate %34 by %c2016_i32_48 dim 1 : vector<8x2048xf32>, i32 -> vector<8x2048xf32>
    %c80 = arith.constant 80 : index
    %c0_49 = arith.constant 0 : index
    %57 = vector.load %arg10[%c80, %c0_49] : memref<104x2048xf32, #tpu.memory_space<vmem>>, vector<8x2048xf32>
    tpu.vector_store %arg10[%c80, %c0_49], %56 {strides = array<i32>} : memref<104x2048xf32, #tpu.memory_space<vmem>>, vector<8x2048xf32>,
    %c2015_i32_50 = arith.constant 2015 : i32
    %58 = tpu.dynamic_rotate %34 by %c2015_i32_50 dim 1 : vector<8x2048xf32>, i32 -> vector<8x2048xf32>
    %c88 = arith.constant 88 : index
    %c0_51 = arith.constant 0 : index
    %59 = vector.load %arg10[%c88, %c0_51] : memref<104x2048xf32, #tpu.memory_space<vmem>>, vector<8x2048xf32>
    tpu.vector_store %arg10[%c88, %c0_51], %58 {strides = array<i32>} : memref<104x2048xf32, #tpu.memory_space<vmem>>, vector<8x2048xf32>,
    %c1984_i32_52 = arith.constant 1984 : i32
    %60 = tpu.dynamic_rotate %34 by %c1984_i32_52 dim 1 : vector<8x2048xf32>, i32 -> vector<8x2048xf32>
    %c96 = arith.constant 96 : index
    %c0_53 = arith.constant 0 : index
    %61 = vector.load %arg10[%c96, %c0_53] : memref<104x2048xf32, #tpu.memory_space<vmem>>, vector<8x2048xf32>
    tpu.vector_store %arg10[%c96, %c0_53], %60 {strides = array<i32>} : memref<104x2048xf32, #tpu.memory_space<vmem>>, vector<8x2048xf32>,
    %c0_54 = arith.constant 0 : index
    %c0_55 = arith.constant 0 : index
    %62 = vector.load %arg10[%c0_54, %c0_55] : memref<104x2048xf32, #tpu.memory_space<vmem>>, vector<104x2048xf32>
    %cst_56 = arith.constant dense<0.000000e+00> : vector<16x2048xf32>
    %63 = tpu.matmul %35, %62, %cst_56 {dimension_numbers = #tpu.dot_dimension_numbers<[1], [0], [0], [1], [0, 0, 1, 1], [], []>} : vector<16x104xf32>, vector<104x2048xf32>, vector<16x2048xf32> -> vector<16x2048xf32>
    %64 = vector.broadcast %36 : vector<16x1xf32> to vector<16x2048xf32>
    %65 = arith.addf %63, %64 : vector<16x2048xf32>
    %66 = vector.broadcast %0 : vector<1x2048xf32> to vector<16x2048xf32>
    %67 = arith.mulf %65, %66 : vector<16x2048xf32>
    %68 = vector.extract_strided_slice %67 {offsets = [0, 0], sizes = [16, 1024], strides = [1, 1]} : vector<16x2048xf32> to vector<16x1024xf32>
    %cst_57 = arith.constant dense<0.000000e+00> : vector<16xf32>
    %69 = vector.multi_reduction <add>, %68, %cst_57 [1] : vector<16x1024xf32> to vector<16xf32>
    %70 = vector.shape_cast %69 : vector<16xf32> to vector<16x1xf32>
    %71 = vector.extract_strided_slice %67 {offsets = [0, 1024], sizes = [16, 1024], strides = [1, 1]} : vector<16x2048xf32> to vector<16x1024xf32>
    %cst_58 = arith.constant dense<0.000000e+00> : vector<16xf32>
    %72 = vector.multi_reduction <add>, %71, %cst_58 [1] : vector<16x1024xf32> to vector<16xf32>
    %73 = vector.shape_cast %72 : vector<16xf32> to vector<16x1xf32>
    %74 = tpu.concatenate %70, %73 in 1 : vector<16x1xf32>, vector<16x1xf32> -> vector<16x2xf32>
    %c0_59 = arith.constant 0 : index
    %c0_60 = arith.constant 0 : index
    %75 = vector.load %arg7[%c0_59, %c0_60] : memref<10x16xf32, #tpu.memory_space<vmem>>, vector<10x16xf32>
    %cst_61 = arith.constant dense<0.000000e+00> : vector<10x2xf32>
    %76 = tpu.matmul %75, %74, %cst_61 {dimension_numbers = #tpu.dot_dimension_numbers<[1], [0], [0], [1], [0, 0, 1, 1], [], []>} : vector<10x16xf32>, vector<16x2xf32>, vector<10x2xf32> -> vector<10x2xf32>
    %c0_62 = arith.constant 0 : index
    %c0_63 = arith.constant 0 : index
    %77 = vector.load %arg8[%c0_62, %c0_63] : memref<10x1xf32, #tpu.memory_space<vmem>>, vector<10x1xf32>
    %78 = vector.broadcast %77 : vector<10x1xf32> to vector<10x2xf32>
    %79 = arith.addf %76, %78 : vector<10x2xf32>
    %c0_64 = arith.constant 0 : index
    %c0_65 = arith.constant 0 : index
    %c0_66 = arith.constant 0 : index
    %80 = vector.load %arg9[%c0_64, %c0_65, %c0_66] : memref<1x10x2xf32, #tpu.memory_space<vmem>>, vector<1x10x2xf32>
    %81 = vector.shape_cast %80 : vector<1x10x2xf32> to vector<10x2xf32>
    %82 = vector.shape_cast %79 : vector<10x2xf32> to vector<1x10x2xf32>
    tpu.vector_store %arg9[%c0_64, %c0_65, %c0_66], %82 {strides = array<i32>} : memref<1x10x2xf32, #tpu.memory_space<vmem>>, vector<1x10x2xf32>,
    return
  }
  func.func @transform_0(%arg0: i32) -> (i32, i32) {
    %c0_i32 = arith.constant 0 : i32
    %c0_i32_0 = arith.constant 0 : i32
    return %c0_i32, %arg0 : i32, i32
  }
  func.func @transform_1(%arg0: i32) -> (i32, i32) {
    %c0_i32 = arith.constant 0 : i32
    %c0_i32_0 = arith.constant 0 : i32
    %c0_i32_1 = arith.constant 0 : i32
    return %c0_i32, %c0_i32_0 : i32, i32
  }
  func.func @transform_2(%arg0: i32) -> (i32, i32) {
    %c0_i32 = arith.constant 0 : i32
    %c0_i32_0 = arith.constant 0 : i32
    %c0_i32_1 = arith.constant 0 : i32
    return %c0_i32, %c0_i32_0 : i32, i32
  }
  func.func @transform_3(%arg0: i32) -> (i32, i32) {
    %c0_i32 = arith.constant 0 : i32
    %c0_i32_0 = arith.constant 0 : i32
    %c0_i32_1 = arith.constant 0 : i32
    return %c0_i32, %c0_i32_0 : i32, i32
  }
  func.func @transform_4(%arg0: i32) -> (i32, i32) {
    %c0_i32 = arith.constant 0 : i32
    %c0_i32_0 = arith.constant 0 : i32
    %c0_i32_1 = arith.constant 0 : i32
    return %c0_i32, %c0_i32_0 : i32, i32
  }
  func.func @transform_5(%arg0: i32) -> (i32, i32) {
    %c0_i32 = arith.constant 0 : i32
    %c0_i32_0 = arith.constant 0 : i32
    %c0_i32_1 = arith.constant 0 : i32
    return %c0_i32, %c0_i32_0 : i32, i32
  }
  func.func @transform_6(%arg0: i32) -> (i32, i32) {
    %c0_i32 = arith.constant 0 : i32
    %c0_i32_0 = arith.constant 0 : i32
    %c0_i32_1 = arith.constant 0 : i32
    return %c0_i32, %c0_i32_0 : i32, i32
  }
  func.func @transform_7(%arg0: i32) -> (i32, i32) {
    %c0_i32 = arith.constant 0 : i32
    %c0_i32_0 = arith.constant 0 : i32
    %c0_i32_1 = arith.constant 0 : i32
    return %c0_i32, %c0_i32_0 : i32, i32
  }
  func.func @transform_8(%arg0: i32) -> (i32, i32, i32) {
    %c0_i32 = arith.constant 0 : i32
    %c0_i32_0 = arith.constant 0 : i32
    %c0_i32_1 = arith.constant 0 : i32
    return %arg0, %c0_i32, %c0_i32_0 : i32, i32, i32
  }
}

</mosaic_0001>

<llo_original>
// kernel: sphere_gauge_cnn_forward.1
$region0: #{sphere_gauge_cnn_forward.1}
  #allocation0 [shape = 'u32[]', space=smem, size = 0x4, offset = 0x4, fixed_abs, tag = 'smem constant byte address 0x4 - core index']
  #allocation1 [shape = 'u32[144,128]{1,0:T(1,128)}', space=vmem, size = 0x12000, scoped, tag = 'internal scratch']
  #allocation2 [shape = 'f32[104,2048]{1,0:T(8,128)}', space=vmem, size = 0xd0000, scoped, tag = 'scratch operand']
  %s0 = inlined_call_operand.vmem [shape: f32[1,2048], index: 0, kind: input, shape index: {}]
  %s1 = inlined_call_operand.vmem [shape: f32[1,2048], index: 1, kind: input, shape index: {}]
  %s2 = inlined_call_operand.vmem [shape: f32[8,13], index: 2, kind: input, shape index: {}]
  %s3 = inlined_call_operand.vmem [shape: f32[8,1], index: 3, kind: input, shape index: {}]
  %s4 = inlined_call_operand.vmem [shape: f32[16,104], index: 4, kind: input, shape index: {}]
  %s5 = inlined_call_operand.vmem [shape: f32[16,1], index: 5, kind: input, shape index: {}]
  %s6 = inlined_call_operand.vmem [shape: f32[10,16], index: 6, kind: input, shape index: {}]
  %s7 = inlined_call_operand.vmem [shape: f32[10,1], index: 7, kind: input, shape index: {}]
  %s8 = inlined_call_operand.vmem [shape: f32[1,10,2], index: 8, kind: output, shape index: {}]
  %s9 = sld [smem:[#allocation0]]
  $region42: #{sphere_gauge_cnn_forward.1} parent=0
    _
  %s11 = ssub.s32 1, %s9
  %s12 = scalar_select 0, %s11, %s9
  // Predicated region
  $region2: #{sphere_gauge_cnn_forward.1} parent=0 // pred_check
    _
  $region3: #{sphere_gauge_cnn_forward.1} parent=0 // pred_check_branch
    %14 = sbr.rel (0) target = $region5
  $region4: #{sphere_gauge_cnn_forward.1} parent=0 // pred_region
    _
  $region5: #{sphere_gauge_cnn_forward.1} parent=0 // pred_fallthru
    _
  // Predicated region
  $region6: #{sphere_gauge_cnn_forward.1} parent=0 // pred_check
    _
  $region7: #{sphere_gauge_cnn_forward.1} parent=0 // pred_check_branch
    %16 = sbr.rel (0) target = $region9
  $region8: #{sphere_gauge_cnn_forward.1} parent=0 // pred_region
    _
  $region9: #{sphere_gauge_cnn_forward.1} parent=0 // pred_fallthru
    _
  // Predicated region
  $region10: #{sphere_gauge_cnn_forward.1} parent=0 // pred_check
    _
  $region11: #{sphere_gauge_cnn_forward.1} parent=0 // pred_check_branch
    %18 = sbr.rel (0) target = $region13
  $region12: #{sphere_gauge_cnn_forward.1} parent=0 // pred_region
    _
  $region13: #{sphere_gauge_cnn_forward.1} parent=0 // pred_fallthru
    _
  // Predicated region
  $region14: #{sphere_gauge_cnn_forward.1} parent=0 // pred_check
    _
  $region15: #{sphere_gauge_cnn_forward.1} parent=0 // pred_check_branch
    %20 = sbr.rel (0) target = $region17
  $region16: #{sphere_gauge_cnn_forward.1} parent=0 // pred_region
    _
  $region17: #{sphere_gauge_cnn_forward.1} parent=0 // pred_fallthru
    _
  // Predicated region
  $region18: #{sphere_gauge_cnn_forward.1} parent=0 // pred_check
    _
  $region19: #{sphere_gauge_cnn_forward.1} parent=0 // pred_check_branch
    %22 = sbr.rel (0) target = $region21
  $region20: #{sphere_gauge_cnn_forward.1} parent=0 // pred_region
    _
  $region21: #{sphere_gauge_cnn_forward.1} parent=0 // pred_fallthru
    _
  // Predicated region
  $region22: #{sphere_gauge_cnn_forward.1} parent=0 // pred_check
    _
  $region23: #{sphere_gauge_cnn_forward.1} parent=0 // pred_check_branch
    %24 = sbr.rel (0) target = $region25
  $region24: #{sphere_gauge_cnn_forward.1} parent=0 // pred_region
    _
  $region25: #{sphere_gauge_cnn_forward.1} parent=0 // pred_fallthru
    _
  // Predicated region
  $region26: #{sphere_gauge_cnn_forward.1} parent=0 // pred_check
    _
  $region27: #{sphere_gauge_cnn_forward.1} parent=0 // pred_check_branch
    %26 = sbr.rel (0) target = $region29
  $region28: #{sphere_gauge_cnn_forward.1} parent=0 // pred_region
    _
  $region29: #{sphere_gauge_cnn_forward.1} parent=0 // pred_fallthru
    _
  // Predicated region
  $region30: #{sphere_gauge_cnn_forward.1} parent=0 // pred_check
    _
  $region31: #{sphere_gauge_cnn_forward.1} parent=0 // pred_check_branch
    %28 = sbr.rel (0) target = $region33
  $region32: #{sphere_gauge_cnn_forward.1} parent=0 // pred_region
    _
  $region33: #{sphere_gauge_cnn_forward.1} parent=0 // pred_fallthru
    _
  %v29 = vld [vmem:[%s1] sm:$0xff]
  %v30 = vld [vmem:[%s1 + $0x8] sm:$0xff]
  %v31 = vld [vmem:[%s0] sm:$0xff]
  %v32 = vld [vmem:[%s0 + $0x8] sm:$0xff]
  %v33 = vld [vmem:[%s2] sm:$0xff]
  %v34 = vld [vmem:[%s3] sm:$0xff]
  %v37 = vlaneseq
  %v38 = vshrl.u32 %v37, 7
  %v39 = vsub.s32 0, %v38
  %v40 = vrot.slane %v31, %v39
  %v41 = vlaneseq
  %v42 = vshrl.u32 %v41, 7
  %v43 = vsub.s32 1, %v42
  %v44 = vrot.slane %v31, %v43
  %v45 = vlaneseq
  %v46 = vshrl.u32 %v45, 7
  %v47 = vsub.s32 2, %v46
  %v48 = vrot.slane %v31, %v47
  %v49 = vlaneseq
  %v50 = vshrl.u32 %v49, 7
  %v51 = vsub.s32 3, %v50
  %v52 = vrot.slane %v31, %v51
  %v53 = vlaneseq
  %v54 = vshrl.u32 %v53, 7
  %v55 = vsub.s32 4, %v54
  %v56 = vrot.slane %v31, %v55
  %v57 = vlaneseq
  %v58 = vshrl.u32 %v57, 7
  %v59 = vsub.s32 5, %v58
  %v60 = vrot.slane %v31, %v59
  %v61 = vlaneseq
  %v62 = vshrl.u32 %v61, 7
  %v63 = vsub.s32 6, %v62
  %v64 = vrot.slane %v31, %v63
  %v65 = vlaneseq
  %v66 = vshrl.u32 %v65, 7
  %v67 = vsub.s32 7, %v66
  %v68 = vrot.slane %v31, %v67
  %v69 = vlaneseq
  %v70 = vshrl.u32 %v69, 7
  %v71 = vsub.s32 0, %v70
  %v72 = vrot.slane %v32, %v71
  %v73 = vlaneseq
  %v74 = vshrl.u32 %v73, 7
  %v75 = vsub.s32 1, %v74
  %v76 = vrot.slane %v32, %v75
  %v77 = vlaneseq
  %v78 = vshrl.u32 %v77, 7
  %v79 = vsub.s32 2, %v78
  %v80 = vrot.slane %v32, %v79
  %v81 = vlaneseq
  %v82 = vshrl.u32 %v81, 7
  %v83 = vsub.s32 3, %v82
  %v84 = vrot.slane %v32, %v83
  %v85 = vlaneseq
  %v86 = vshrl.u32 %v85, 7
  %v87 = vsub.s32 4, %v86
  %v88 = vrot.slane %v32, %v87
  %v89 = vlaneseq
  %v90 = vshrl.u32 %v89, 7
  %v91 = vsub.s32 5, %v90
  %v92 = vrot.slane %v32, %v91
  %v93 = vlaneseq
  %v94 = vshrl.u32 %v93, 7
  %v95 = vsub.s32 6, %v94
  %v96 = vrot.slane %v32, %v95
  %v97 = vlaneseq
  %v98 = vshrl.u32 %v97, 7
  %v99 = vsub.s32 7, %v98
  %v100 = vrot.slane %v32, %v99
  %117 = vrot.lane.b32.xlu0 %v40, 64
  %v118 = vpop.permute.xlu0 %117
  %119 = vrot.lane.b32.xlu0 %v44, 64
  %v120 = vpop.permute.xlu0 %119
  %121 = vrot.lane.b32.xlu0 %v48, 64
  %v122 = vpop.permute.xlu0 %121
  %123 = vrot.lane.b32.xlu0 %v52, 64
  %v124 = vpop.permute.xlu0 %123
  %125 = vrot.lane.b32.xlu0 %v56, 64
  %v126 = vpop.permute.xlu0 %125
  %127 = vrot.lane.b32.xlu0 %v60, 64
  %v128 = vpop.permute.xlu0 %127
  %129 = vrot.lane.b32.xlu0 %v64, 64
  %v130 = vpop.permute.xlu0 %129
  %131 = vrot.lane.b32.xlu0 %v68, 64
  %v132 = vpop.permute.xlu0 %131
  %133 = vrot.lane.b32.xlu0 %v72, 64
  %v134 = vpop.permute.xlu0 %133
  %135 = vrot.lane.b32.xlu0 %v76, 64
  %v136 = vpop.permute.xlu0 %135
  %137 = vrot.lane.b32.xlu0 %v80, 64
  %v138 = vpop.permute.xlu0 %137
  %139 = vrot.lane.b32.xlu0 %v84, 64
  %v140 = vpop.permute.xlu0 %139
  %141 = vrot.lane.b32.xlu0 %v88, 64
  %v142 = vpop.permute.xlu0 %141
  %143 = vrot.lane.b32.xlu0 %v92, 64
  %v144 = vpop.permute.xlu0 %143
  %145 = vrot.lane.b32.xlu0 %v96, 64
  %v146 = vpop.permute.xlu0 %145
  %147 = vrot.lane.b32.xlu0 %v100, 64
  %v148 = vpop.permute.xlu0 %147
  %v149 = vlaneseq
  %v150 = vand.u32 %v149, 127
  %vm151 = vcmp.lt.s32.totalorder %v150, 64
  %v152 = vsel %vm151, %v146, %v148
  %v153 = vsel %vm151, %v144, %v146
  %v154 = vsel %vm151, %v142, %v144
  %v155 = vsel %vm151, %v140, %v142
  %v156 = vsel %vm151, %v138, %v140
  %v157 = vsel %vm151, %v136, %v138
  %v158 = vsel %vm151, %v134, %v136
  %v159 = vsel %vm151, %v132, %v134
  %v160 = vsel %vm151, %v130, %v132
  %v161 = vsel %vm151, %v128, %v130
  %v162 = vsel %vm151, %v126, %v128
  %v163 = vsel %vm151, %v124, %v126
  %v164 = vsel %vm151, %v122, %v124
  %v165 = vsel %vm151, %v120, %v122
  %v166 = vsel %vm151, %v118, %v120
  %v167 = vsel %vm151, %v148, %v118
  %v184 = vcombine.low %v167, %v166
  %v185 = vcombine.low %v165, %v164
  %v186 = vcombine.low %v163, %v162
  %v187 = vcombine.low %v161, %v160
  %v189 = vunpack.c.l.s4 1966171168
  %v190 = vunpack.c.0.s8 %v189
  %v191 = vlaneseq
  %v192 = vshrl.u32 %v191, 7
  %v193 = vsub.s32 %v190, %v192
  %v194 = vrot.slane %v184, %v193
  %v196 = vunpack.c.l.s4 1966171168
  %v197 = vunpack.c.0.s8 %v196
  %v198 = vlaneseq
  %v199 = vshrl.u32 %v198, 7
  %v200 = vsub.s32 %v197, %v199
  %v201 = vrot.slane %v185, %v200
  %v203 = vunpack.c.l.s4 1966171168
  %v204 = vunpack.c.0.s8 %v203
  %v205 = vlaneseq
  %v206 = vshrl.u32 %v205, 7
  %v207 = vsub.s32 %v204, %v206
  %v208 = vrot.slane %v186, %v207
  %v210 = vunpack.c.l.s4 1966171168
  %v211 = vunpack.c.0.s8 %v210
  %v212 = vlaneseq
  %v213 = vshrl.u32 %v212, 7
  %v214 = vsub.s32 %v211, %v213
  %v215 = vrot.slane %v187, %v214
  %v216 = vcombine.low %v194, %v201
  %v217 = vcombine.low %v208, %v215
  %v219 = vunpack.c.l.s4 1966171168
  %v220 = vunpack.c.0.s8 %v219
  %v221 = vlaneseq
  %v222 = vshrl.u32 %v221, 7
  %v223 = vsub.s32 %v220, %v222
  %v224 = vrot.slane %v216, %v223
  %v226 = vunpack.c.l.s4 1966171168
  %v227 = vunpack.c.0.s8 %v226
  %v228 = vlaneseq
  %v229 = vshrl.u32 %v228, 7
  %v230 = vsub.s32 %v227, %v229
  %v231 = vrot.slane %v217, %v230
  %v232 = vcombine.low %v224, %v231
  %v233 = vcombine.low %v159, %v158
  %v234 = vcombine.low %v157, %v156
  %v235 = vcombine.low %v155, %v154
  %v236 = vcombine.low %v153, %v152
  %v238 = vunpack.c.l.s4 1966171168
  %v239 = vunpack.c.0.s8 %v238
  %v240 = vlaneseq
  %v241 = vshrl.u32 %v240, 7
  %v242 = vsub.s32 %v239, %v241
  %v243 = vrot.slane %v233, %v242
  %v245 = vunpack.c.l.s4 1966171168
  %v246 = vunpack.c.0.s8 %v245
  %v247 = vlaneseq
  %v248 = vshrl.u32 %v247, 7
  %v249 = vsub.s32 %v246, %v248
  %v250 = vrot.slane %v234, %v249
  %v252 = vunpack.c.l.s4 1966171168
  %v253 = vunpack.c.0.s8 %v252
  %v254 = vlaneseq
  %v255 = vshrl.u32 %v254, 7
  %v256 = vsub.s32 %v253, %v255
  %v257 = vrot.slane %v235, %v256
  %v259 = vunpack.c.l.s4 1966171168
  %v260 = vunpack.c.0.s8 %v259
  %v261 = vlaneseq
  %v262 = vshrl.u32 %v261, 7
  %v263 = vsub.s32 %v260, %v262
  %v264 = vrot.slane %v236, %v263
  %v265 = vcombine.low %v243, %v250
  %v266 = vcombine.low %v257, %v264
  %v268 = vunpack.c.l.s4 1966171168
  %v269 = vunpack.c.0.s8 %v268
  %v270 = vlaneseq
  %v271 = vshrl.u32 %v270, 7
  %v272 = vsub.s32 %v269, %v271
  %v273 = vrot.slane %v265, %v272
  %v275 = vunpack.c.l.s4 1966171168
  %v276 = vunpack.c.0.s8 %v275
  %v277 = vlaneseq
  %v278 = vshrl.u32 %v277, 7
  %v279 = vsub.s32 %v276, %v278
  %v280 = vrot.slane %v266, %v279
  %v281 = vcombine.low %v273, %v280
  %284 = vst [vmem:[#allocation2] ss:$8 sm:$0xf] %v232
  %285 = vst [vmem:[#allocation2] ss:$8 sm:$0xf0] %v232
  %s286 = scalar_lea.vmem [#allocation2], 64
  %287 = vst [vmem:[%s286] ss:$8 sm:$0xf] %v281
  %288 = vst [vmem:[%s286] ss:$8 sm:$0xf0] %v281
  %289 = vrot.lane.b32.xlu0 %v40, 33
  %v290 = vpop.permute.xlu0 %289
  %291 = vrot.lane.b32.xlu0 %v44, 33
  %v292 = vpop.permute.xlu0 %291
  %293 = vrot.lane.b32.xlu0 %v48, 33
  %v294 = vpop.permute.xlu0 %293
  %295 = vrot.lane.b32.xlu0 %v52, 33
  %v296 = vpop.permute.xlu0 %295
  %297 = vrot.lane.b32.xlu0 %v56, 33
  %v298 = vpop.permute.xlu0 %297
  %299 = vrot.lane.b32.xlu0 %v60, 33
  %v300 = vpop.permute.xlu0 %299
  %301 = vrot.lane.b32.xlu0 %v64, 33
  %v302 = vpop.permute.xlu0 %301
  %303 = vrot.lane.b32.xlu0 %v68, 33
  %v304 = vpop.permute.xlu0 %303
  %305 = vrot.lane.b32.xlu0 %v72, 33
  %v306 = vpop.permute.xlu0 %305
  %307 = vrot.lane.b32.xlu0 %v76, 33
  %v308 = vpop.permute.xlu0 %307
  %309 = vrot.lane.b32.xlu0 %v80, 33
  %v310 = vpop.permute.xlu0 %309
  %311 = vrot.lane.b32.xlu0 %v84, 33
  %v312 = vpop.permute.xlu0 %311
  %313 = vrot.lane.b32.xlu0 %v88, 33
  %v314 = vpop.permute.xlu0 %313
  %315 = vrot.lane.b32.xlu0 %v92, 33
  %v316 = vpop.permute.xlu0 %315
  %317 = vrot.lane.b32.xlu0 %v96, 33
  %v318 = vpop.permute.xlu0 %317
  %319 = vrot.lane.b32.xlu0 %v100, 33
  %v320 = vpop.permute.xlu0 %319
  %vm321 = vcmp.lt.s32.totalorder %v150, 33
  %v322 = vsel %vm321, %v318, %v320
  %v323 = vsel %vm321, %v316, %v318
  %v324 = vsel %vm321, %v314, %v316
  %v325 = vsel %vm321, %v312, %v314
  %v326 = vsel %vm321, %v310, %v312
  %v327 = vsel %vm321, %v308, %v310
  %v328 = vsel %vm321, %v306, %v308
  %v329 = vsel %vm321, %v304, %v306
  %v330 = vsel %vm321, %v302, %v304
  %v331 = vsel %vm321, %v300, %v302
  %v332 = vsel %vm321, %v298, %v300
  %v333 = vsel %vm321, %v296, %v298
  %v334 = vsel %vm321, %v294, %v296
  %v335 = vsel %vm321, %v292, %v294
  %v336 = vsel %vm321, %v290, %v292
  %v337 = vsel %vm321, %v320, %v290
  %v354 = vcombine.low %v337, %v336
  %v355 = vcombine.low %v335, %v334
  %v356 = vcombine.low %v333, %v332
  %v357 = vcombine.low %v331, %v330
  %v359 = vunpack.c.l.s4 1966171168
  %v360 = vunpack.c.0.s8 %v359
  %v361 = vlaneseq
  %v362 = vshrl.u32 %v361, 7
  %v363 = vsub.s32 %v360, %v362
  %v364 = vrot.slane %v354, %v363
  %v366 = vunpack.c.l.s4 1966171168
  %v367 = vunpack.c.0.s8 %v366
  %v368 = vlaneseq
  %v369 = vshrl.u32 %v368, 7
  %v370 = vsub.s32 %v367, %v369
  %v371 = vrot.slane %v355, %v370
  %v373 = vunpack.c.l.s4 1966171168
  %v374 = vunpack.c.0.s8 %v373
  %v375 = vlaneseq
  %v376 = vshrl.u32 %v375, 7
  %v377 = vsub.s32 %v374, %v376
  %v378 = vrot.slane %v356, %v377
  %v380 = vunpack.c.l.s4 1966171168
  %v381 = vunpack.c.0.s8 %v380
  %v382 = vlaneseq
  %v383 = vshrl.u32 %v382, 7
  %v384 = vsub.s32 %v381, %v383
  %v385 = vrot.slane %v357, %v384
  %v386 = vcombine.low %v364, %v371
  %v387 = vcombine.low %v378, %v385
  %v389 = vunpack.c.l.s4 1966171168
  %v390 = vunpack.c.0.s8 %v389
  %v391 = vlaneseq
  %v392 = vshrl.u32 %v391, 7
  %v393 = vsub.s32 %v390, %v392
  %v394 = vrot.slane %v386, %v393
  %v396 = vunpack.c.l.s4 1966171168
  %v397 = vunpack.c.0.s8 %v396
  %v398 = vlaneseq
  %v399 = vshrl.u32 %v398, 7
  %v400 = vsub.s32 %v397, %v399
  %v401 = vrot.slane %v387, %v400
  %v402 = vcombine.low %v394, %v401
  %v403 = vcombine.low %v329, %v328
  %v404 = vcombine.low %v327, %v326
  %v405 = vcombine.low %v325, %v324
  %v406 = vcombine.low %v323, %v322
  %v408 = vunpack.c.l.s4 1966171168
  %v409 = vunpack.c.0.s8 %v408
  %v410 = vlaneseq
  %v411 = vshrl.u32 %v410, 7
  %v412 = vsub.s32 %v409, %v411
  %v413 = vrot.slane %v403, %v412
  %v415 = vunpack.c.l.s4 1966171168
  %v416 = vunpack.c.0.s8 %v415
  %v417 = vlaneseq
  %v418 = vshrl.u32 %v417, 7
  %v419 = vsub.s32 %v416, %v418
  %v420 = vrot.slane %v404, %v419
  %v422 = vunpack.c.l.s4 1966171168
  %v423 = vunpack.c.0.s8 %v422
  %v424 = vlaneseq
  %v425 = vshrl.u32 %v424, 7
  %v426 = vsub.s32 %v423, %v425
  %v427 = vrot.slane %v405, %v426
  %v429 = vunpack.c.l.s4 1966171168
  %v430 = vunpack.c.0.s8 %v429
  %v431 = vlaneseq
  %v432 = vshrl.u32 %v431, 7
  %v433 = vsub.s32 %v430, %v432
  %v434 = vrot.slane %v406, %v433
  %v435 = vcombine.low %v413, %v420
  %v436 = vcombine.low %v427, %v434
  %v438 = vunpack.c.l.s4 1966171168
  %v439 = vunpack.c.0.s8 %v438
  %v440 = vlaneseq
  %v441 = vshrl.u32 %v440, 7
  %v442 = vsub.s32 %v439, %v441
  %v443 = vrot.slane %v435, %v442
  %v445 = vunpack.c.l.s4 1966171168
  %v446 = vunpack.c.0.s8 %v445
  %v447 = vlaneseq
  %v448 = vshrl.u32 %v447, 7
  %v449 = vsub.s32 %v446, %v448
  %v450 = vrot.slane %v436, %v449
  %v451 = vcombine.low %v443, %v450
  %s454 = scalar_lea.vmem [#allocation2], 1
  %455 = vst [vmem:[%s454] ss:$8 sm:$0xf] %v402
  %456 = vst [vmem:[%s454] ss:$8 sm:$0xf0] %v402
  %s457 = scalar_lea.vmem [#allocation2], 65
  %458 = vst [vmem:[%s457] ss:$8 sm:$0xf] %v451
  %459 = vst [vmem:[%s457] ss:$8 sm:$0xf0] %v451
  %460 = vrot.lane.b32.xlu0 %v40, 32
  %v461 = vpop.permute.xlu0 %460
  %462 = vrot.lane.b32.xlu0 %v44, 32
  %v463 = vpop.permute.xlu0 %462
  %464 = vrot.lane.b32.xlu0 %v48, 32
  %v465 = vpop.permute.xlu0 %464
  %466 = vrot.lane.b32.xlu0 %v52, 32
  %v467 = vpop.permute.xlu0 %466
  %468 = vrot.lane.b32.xlu0 %v56, 32
  %v469 = vpop.permute.xlu0 %468
  %470 = vrot.lane.b32.xlu0 %v60, 32
  %v471 = vpop.permute.xlu0 %470
  %472 = vrot.lane.b32.xlu0 %v64, 32
  %v473 = vpop.permute.xlu0 %472
  %474 = vrot.lane.b32.xlu0 %v68, 32
  %v475 = vpop.permute.xlu0 %474
  %476 = vrot.lane.b32.xlu0 %v72, 32
  %v477 = vpop.permute.xlu0 %476
  %478 = vrot.lane.b32.xlu0 %v76, 32
  %v479 = vpop.permute.xlu0 %478
  %480 = vrot.lane.b32.xlu0 %v80, 32
  %v481 = vpop.permute.xlu0 %480
  %482 = vrot.lane.b32.xlu0 %v84, 32
  %v483 = vpop.permute.xlu0 %482
  %484 = vrot.lane.b32.xlu0 %v88, 32
  %v485 = vpop.permute.xlu0 %484
  %486 = vrot.lane.b32.xlu0 %v92, 32
  %v487 = vpop.permute.xlu0 %486
  %488 = vrot.lane.b32.xlu0 %v96, 32
  %v489 = vpop.permute.xlu0 %488
  %490 = vrot.lane.b32.xlu0 %v100, 32
  %v491 = vpop.permute.xlu0 %490
  %vm492 = vcmp.lt.s32.totalorder %v150, 32
  %v493 = vsel %vm492, %v489, %v491
  %v494 = vsel %vm492, %v487, %v489
  %v495 = vsel %vm492, %v485, %v487
  %v496 = vsel %vm492, %v483, %v485
  %v497 = vsel %vm492, %v481, %v483
  %v498 = vsel %vm492, %v479, %v481
  %v499 = vsel %vm492, %v477, %v479
  %v500 = vsel %vm492, %v475, %v477
  %v501 = vsel %vm492, %v473, %v475
  %v502 = vsel %vm492, %v471, %v473
  %v503 = vsel %vm492, %v469, %v471
  %v504 = vsel %vm492, %v467, %v469
  %v505 = vsel %vm492, %v465, %v467
  %v506 = vsel %vm492, %v463, %v465
  %v507 = vsel %vm492, %v461, %v463
  %v508 = vsel %vm492, %v491, %v461
  %v525 = vcombine.low %v508, %v507
  %v526 = vcombine.low %v506, %v505
  %v527 = vcombine.low %v504, %v503
  %v528 = vcombine.low %v502, %v501
  %v530 = vunpack.c.l.s4 1966171168
  %v531 = vunpack.c.0.s8 %v530
  %v532 = vlaneseq
  %v533 = vshrl.u32 %v532, 7
  %v534 = vsub.s32 %v531, %v533
  %v535 = vrot.slane %v525, %v534
  %v537 = vunpack.c.l.s4 1966171168
  %v538 = vunpack.c.0.s8 %v537
  %v539 = vlaneseq
  %v540 = vshrl.u32 %v539, 7
  %v541 = vsub.s32 %v538, %v540
  %v542 = vrot.slane %v526, %v541
  %v544 = vunpack.c.l.s4 1966171168
  %v545 = vunpack.c.0.s8 %v544
  %v546 = vlaneseq
  %v547 = vshrl.u32 %v546, 7
  %v548 = vsub.s32 %v545, %v547
  %v549 = vrot.slane %v527, %v548
  %v551 = vunpack.c.l.s4 1966171168
  %v552 = vunpack.c.0.s8 %v551
  %v553 = vlaneseq
  %v554 = vshrl.u32 %v553, 7
  %v555 = vsub.s32 %v552, %v554
  %v556 = vrot.slane %v528, %v555
  %v557 = vcombine.low %v535, %v542
  %v558 = vcombine.low %v549, %v556
  %v560 = vunpack.c.l.s4 1966171168
  %v561 = vunpack.c.0.s8 %v560
  %v562 = vlaneseq
  %v563 = vshrl.u32 %v562, 7
  %v564 = vsub.s32 %v561, %v563
  %v565 = vrot.slane %v557, %v564
  %v567 = vunpack.c.l.s4 1966171168
  %v568 = vunpack.c.0.s8 %v567
  %v569 = vlaneseq
  %v570 = vshrl.u32 %v569, 7
  %v571 = vsub.s32 %v568, %v570
  %v572 = vrot.slane %v558, %v571
  %v573 = vcombine.low %v565, %v572
  %v574 = vcombine.low %v500, %v499
  %v575 = vcombine.low %v498, %v497
  %v576 = vcombine.low %v496, %v495
  %v577 = vcombine.low %v494, %v493
  %v579 = vunpack.c.l.s4 1966171168
  %v580 = vunpack.c.0.s8 %v579
  %v581 = vlaneseq
  %v582 = vshrl.u32 %v581, 7
  %v583 = vsub.s32 %v580, %v582
  %v584 = vrot.slane %v574, %v583
  %v586 = vunpack.c.l.s4 1966171168
  %v587 = vunpack.c.0.s8 %v586
  %v588 = vlaneseq
  %v589 = vshrl.u32 %v588, 7
  %v590 = vsub.s32 %v587, %v589
  %v591 = vrot.slane %v575, %v590
  %v593 = vunpack.c.l.s4 1966171168
  %v594 = vunpack.c.0.s8 %v593
  %v595 = vlaneseq
  %v596 = vshrl.u32 %v595, 7
  %v597 = vsub.s32 %v594, %v596
  %v598 = vrot.slane %v576, %v597
  %v600 = vunpack.c.l.s4 1966171168
  %v601 = vunpack.c.0.s8 %v600
  %v602 = vlaneseq
  %v603 = vshrl.u32 %v602, 7
  %v604 = vsub.s32 %v601, %v603
  %v605 = vrot.slane %v577, %v604
  %v606 = vcombine.low %v584, %v591
  %v607 = vcombine.low %v598, %v605
  %v609 = vunpack.c.l.s4 1966171168
  %v610 = vunpack.c.0.s8 %v609
  %v611 = vlaneseq
  %v612 = vshrl.u32 %v611, 7
  %v613 = vsub.s32 %v610, %v612
  %v614 = vrot.slane %v606, %v613
  %v616 = vunpack.c.l.s4 1966171168
  %v617 = vunpack.c.0.s8 %v616
  %v618 = vlaneseq
  %v619 = vshrl.u32 %v618, 7
  %v620 = vsub.s32 %v617, %v619
  %v621 = vrot.slane %v607, %v620
  %v622 = vcombine.low %v614, %v621
  %s625 = scalar_lea.vmem [#allocation2], 2
  %626 = vst [vmem:[%s625] ss:$8 sm:$0xf] %v573
  %627 = vst [vmem:[%s625] ss:$8 sm:$0xf0] %v573
  %s628 = scalar_lea.vmem [#allocation2], 66
  %629 = vst [vmem:[%s628] ss:$8 sm:$0xf] %v622
  %630 = vst [vmem:[%s628] ss:$8 sm:$0xf0] %v622
  %631 = vrot.lane.b32.xlu0 %v40, 31
  %v632 = vpop.permute.xlu0 %631
  %633 = vrot.lane.b32.xlu0 %v44, 31
  %v634 = vpop.permute.xlu0 %633
  %635 = vrot.lane.b32.xlu0 %v48, 31
  %v636 = vpop.permute.xlu0 %635
  %637 = vrot.lane.b32.xlu0 %v52, 31
  %v638 = vpop.permute.xlu0 %637
  %639 = vrot.lane.b32.xlu0 %v56, 31
  %v640 = vpop.permute.xlu0 %639
  %641 = vrot.lane.b32.xlu0 %v60, 31
  %v642 = vpop.permute.xlu0 %641
  %643 = vrot.lane.b32.xlu0 %v64, 31
  %v644 = vpop.permute.xlu0 %643
  %645 = vrot.lane.b32.xlu0 %v68, 31
  %v646 = vpop.permute.xlu0 %645
  %647 = vrot.lane.b32.xlu0 %v72, 31
  %v648 = vpop.permute.xlu0 %647
  %649 = vrot.lane.b32.xlu0 %v76, 31
  %v650 = vpop.permute.xlu0 %649
  %651 = vrot.lane.b32.xlu0 %v80, 31
  %v652 = vpop.permute.xlu0 %651
  %653 = vrot.lane.b32.xlu0 %v84, 31
  %v654 = vpop.permute.xlu0 %653
  %655 = vrot.lane.b32.xlu0 %v88, 31
  %v656 = vpop.permute.xlu0 %655
  %657 = vrot.lane.b32.xlu0 %v92, 31
  %v658 = vpop.permute.xlu0 %657
  %659 = vrot.lane.b32.xlu0 %v96, 31
  %v660 = vpop.permute.xlu0 %659
  %661 = vrot.lane.b32.xlu0 %v100, 31
  %v662 = vpop.permute.xlu0 %661
  %vm663 = vcmp.lt.s32.totalorder %v150, 31
  %v664 = vsel %vm663, %v660, %v662
  %v665 = vsel %vm663, %v658, %v660
  %v666 = vsel %vm663, %v656, %v658
  %v667 = vsel %vm663, %v654, %v656
  %v668 = vsel %vm663, %v652, %v654
  %v669 = vsel %vm663, %v650, %v652
  %v670 = vsel %vm663, %v648, %v650
  %v671 = vsel %vm663, %v646, %v648
  %v672 = vsel %vm663, %v644, %v646
  %v673 = vsel %vm663, %v642, %v644
  %v674 = vsel %vm663, %v640, %v642
  %v675 = vsel %vm663, %v638, %v640
  %v676 = vsel %vm663, %v636, %v638
  %v677 = vsel %vm663, %v634, %v636
  %v678 = vsel %vm663, %v632, %v634
  %v679 = vsel %vm663, %v662, %v632
  %v696 = vcombine.low %v679, %v678
  %v697 = vcombine.low %v677, %v676
  %v698 = vcombine.low %v675, %v674
  %v699 = vcombine.low %v673, %v672
  %v701 = vunpack.c.l.s4 1966171168
  %v702 = vunpack.c.0.s8 %v701
  %v703 = vlaneseq
  %v704 = vshrl.u32 %v703, 7
  %v705 = vsub.s32 %v702, %v704
  %v706 = vrot.slane %v696, %v705
  %v708 = vunpack.c.l.s4 1966171168
  %v709 = vunpack.c.0.s8 %v708
  %v710 = vlaneseq
  %v711 = vshrl.u32 %v710, 7
  %v712 = vsub.s32 %v709, %v711
  %v713 = vrot.slane %v697, %v712
  %v715 = vunpack.c.l.s4 1966171168
  %v716 = vunpack.c.0.s8 %v715
  %v717 = vlaneseq
  %v718 = vshrl.u32 %v717, 7
  %v719 = vsub.s32 %v716, %v718
  %v720 = vrot.slane %v698, %v719
  %v722 = vunpack.c.l.s4 1966171168
  %v723 = vunpack.c.0.s8 %v722
  %v724 = vlaneseq
  %v725 = vshrl.u32 %v724, 7
  %v726 = vsub.s32 %v723, %v725
  %v727 = vrot.slane %v699, %v726
  %v728 = vcombine.low %v706, %v713
  %v729 = vcombine.low %v720, %v727
  %v731 = vunpack.c.l.s4 1966171168
  %v732 = vunpack.c.0.s8 %v731
  %v733 = vlaneseq
  %v734 = vshrl.u32 %v733, 7
  %v735 = vsub.s32 %v732, %v734
  %v736 = vrot.slane %v728, %v735
  %v738 = vunpack.c.l.s4 1966171168
  %v739 = vunpack.c.0.s8 %v738
  %v740 = vlaneseq
  %v741 = vshrl.u32 %v740, 7
  %v742 = vsub.s32 %v739, %v741
  %v743 = vrot.slane %v729, %v742
  %v744 = vcombine.low %v736, %v743
  %v745 = vcombine.low %v671, %v670
  %v746 = vcombine.low %v669, %v668
  %v747 = vcombine.low %v667, %v666
  %v748 = vcombine.low %v665, %v664
  %v750 = vunpack.c.l.s4 1966171168
  %v751 = vunpack.c.0.s8 %v750
  %v752 = vlaneseq
  %v753 = vshrl.u32 %v752, 7
  %v754 = vsub.s32 %v751, %v753
  %v755 = vrot.slane %v745, %v754
  %v757 = vunpack.c.l.s4 1966171168
  %v758 = vunpack.c.0.s8 %v757
  %v759 = vlaneseq
  %v760 = vshrl.u32 %v759, 7
  %v761 = vsub.s32 %v758, %v760
  %v762 = vrot.slane %v746, %v761
  %v764 = vunpack.c.l.s4 1966171168
  %v765 = vunpack.c.0.s8 %v764
  %v766 = vlaneseq
  %v767 = vshrl.u32 %v766, 7
  %v768 = vsub.s32 %v765, %v767
  %v769 = vrot.slane %v747, %v768
  %v771 = vunpack.c.l.s4 1966171168
  %v772 = vunpack.c.0.s8 %v771
  %v773 = vlaneseq
  %v774 = vshrl.u32 %v773, 7
  %v775 = vsub.s32 %v772, %v774
  %v776 = vrot.slane %v748, %v775
  %v777 = vcombine.low %v755, %v762
  %v778 = vcombine.low %v769, %v776
  %v780 = vunpack.c.l.s4 1966171168
  %v781 = vunpack.c.0.s8 %v780
  %v782 = vlaneseq
  %v783 = vshrl.u32 %v782, 7
  %v784 = vsub.s32 %v781, %v783
  %v785 = vrot.slane %v777, %v784
  %v787 = vunpack.c.l.s4 1966171168
  %v788 = vunpack.c.0.s8 %v787
  %v789 = vlaneseq
  %v790 = vshrl.u32 %v789, 7
  %v791 = vsub.s32 %v788, %v790
  %v792 = vrot.slane %v778, %v791
  %v793 = vcombine.low %v785, %v792
  %s796 = scalar_lea.vmem [#allocation2], 3
  %797 = vst [vmem:[%s796] ss:$8 sm:$0xf] %v744
  %798 = vst [vmem:[%s796] ss:$8 sm:$0xf0] %v744
  %s799 = scalar_lea.vmem [#allocation2], 67
  %800 = vst [vmem:[%s799] ss:$8 sm:$0xf] %v793
  %801 = vst [vmem:[%s799] ss:$8 sm:$0xf0] %v793
  %802 = vrot.lane.b32.xlu0 %v40, 2
  %v803 = vpop.permute.xlu0 %802
  %804 = vrot.lane.b32.xlu0 %v44, 2
  %v805 = vpop.permute.xlu0 %804
  %806 = vrot.lane.b32.xlu0 %v48, 2
  %v807 = vpop.permute.xlu0 %806
  %808 = vrot.lane.b32.xlu0 %v52, 2
  %v809 = vpop.permute.xlu0 %808
  %810 = vrot.lane.b32.xlu0 %v56, 2
  %v811 = vpop.permute.xlu0 %810
  %812 = vrot.lane.b32.xlu0 %v60, 2
  %v813 = vpop.permute.xlu0 %812
  %814 = vrot.lane.b32.xlu0 %v64, 2
  %v815 = vpop.permute.xlu0 %814
  %816 = vrot.lane.b32.xlu0 %v68, 2
  %v817 = vpop.permute.xlu0 %816
  %818 = vrot.lane.b32.xlu0 %v72, 2
  %v819 = vpop.permute.xlu0 %818
  %820 = vrot.lane.b32.xlu0 %v76, 2
  %v821 = vpop.permute.xlu0 %820
  %822 = vrot.lane.b32.xlu0 %v80, 2
  %v823 = vpop.permute.xlu0 %822
  %824 = vrot.lane.b32.xlu0 %v84, 2
  %v825 = vpop.permute.xlu0 %824
  %826 = vrot.lane.b32.xlu0 %v88, 2
  %v827 = vpop.permute.xlu0 %826
  %828 = vrot.lane.b32.xlu0 %v92, 2
  %v829 = vpop.permute.xlu0 %828
  %830 = vrot.lane.b32.xlu0 %v96, 2
  %v831 = vpop.permute.xlu0 %830
  %832 = vrot.lane.b32.xlu0 %v100, 2
  %v833 = vpop.permute.xlu0 %832
  %vm834 = vcmp.lt.s32.totalorder %v150, 2
  %v835 = vsel %vm834, %v831, %v833
  %v836 = vsel %vm834, %v829, %v831
  %v837 = vsel %vm834, %v827, %v829
  %v838 = vsel %vm834, %v825, %v827
  %v839 = vsel %vm834, %v823, %v825
  %v840 = vsel %vm834, %v821, %v823
  %v841 = vsel %vm834, %v819, %v821
  %v842 = vsel %vm834, %v817, %v819
  %v843 = vsel %vm834, %v815, %v817
  %v844 = vsel %vm834, %v813, %v815
  %v845 = vsel %vm834, %v811, %v813
  %v846 = vsel %vm834, %v809, %v811
  %v847 = vsel %vm834, %v807, %v809
  %v848 = vsel %vm834, %v805, %v807
  %v849 = vsel %vm834, %v803, %v805
  %v850 = vsel %vm834, %v833, %v803
  %v867 = vcombine.low %v850, %v849
  %v868 = vcombine.low %v848, %v847
  %v869 = vcombine.low %v846, %v845
  %v870 = vcombine.low %v844, %v843
  %v872 = vunpack.c.l.s4 1966171168
  %v873 = vunpack.c.0.s8 %v872
  %v874 = vlaneseq
  %v875 = vshrl.u32 %v874, 7
  %v876 = vsub.s32 %v873, %v875
  %v877 = vrot.slane %v867, %v876
  %v879 = vunpack.c.l.s4 1966171168
  %v880 = vunpack.c.0.s8 %v879
  %v881 = vlaneseq
  %v882 = vshrl.u32 %v881, 7
  %v883 = vsub.s32 %v880, %v882
  %v884 = vrot.slane %v868, %v883
  %v886 = vunpack.c.l.s4 1966171168
  %v887 = vunpack.c.0.s8 %v886
  %v888 = vlaneseq
  %v889 = vshrl.u32 %v888, 7
  %v890 = vsub.s32 %v887, %v889
  %v891 = vrot.slane %v869, %v890
  %v893 = vunpack.c.l.s4 1966171168
  %v894 = vunpack.c.0.s8 %v893
  %v895 = vlaneseq
  %v896 = vshrl.u32 %v895, 7
  %v897 = vsub.s32 %v894, %v896
  %v898 = vrot.slane %v870, %v897
  %v899 = vcombine.low %v877, %v884
  %v900 = vcombine.low %v891, %v898
  %v902 = vunpack.c.l.s4 1966171168
  %v903 = vunpack.c.0.s8 %v902
  %v904 = vlaneseq
  %v905 = vshrl.u32 %v904, 7
  %v906 = vsub.s32 %v903, %v905
  %v907 = vrot.slane %v899, %v906
  %v909 = vunpack.c.l.s4 1966171168
  %v910 = vunpack.c.0.s8 %v909
  %v911 = vlaneseq
  %v912 = vshrl.u32 %v911, 7
  %v913 = vsub.s32 %v910, %v912
  %v914 = vrot.slane %v900, %v913
  %v915 = vcombine.low %v907, %v914
  %v916 = vcombine.low %v842, %v841
  %v917 = vcombine.low %v840, %v839
  %v918 = vcombine.low %v838, %v837
  %v919 = vcombine.low %v836, %v835
  %v921 = vunpack.c.l.s4 1966171168
  %v922 = vunpack.c.0.s8 %v921
  %v923 = vlaneseq
  %v924 = vshrl.u32 %v923, 7
  %v925 = vsub.s32 %v922, %v924
  %v926 = vrot.slane %v916, %v925
  %v928 = vunpack.c.l.s4 1966171168
  %v929 = vunpack.c.0.s8 %v928
  %v930 = vlaneseq
  %v931 = vshrl.u32 %v930, 7
  %v932 = vsub.s32 %v929, %v931
  %v933 = vrot.slane %v917, %v932
  %v935 = vunpack.c.l.s4 1966171168
  %v936 = vunpack.c.0.s8 %v935
  %v937 = vlaneseq
  %v938 = vshrl.u32 %v937, 7
  %v939 = vsub.s32 %v936, %v938
  %v940 = vrot.slane %v918, %v939
  %v942 = vunpack.c.l.s4 1966171168
  %v943 = vunpack.c.0.s8 %v942
  %v944 = vlaneseq
  %v945 = vshrl.u32 %v944, 7
  %v946 = vsub.s32 %v943, %v945
  %v947 = vrot.slane %v919, %v946
  %v948 = vcombine.low %v926, %v933
  %v949 = vcombine.low %v940, %v947
  %v951 = vunpack.c.l.s4 1966171168
  %v952 = vunpack.c.0.s8 %v951
  %v953 = vlaneseq
  %v954 = vshrl.u32 %v953, 7
  %v955 = vsub.s32 %v952, %v954
  %v956 = vrot.slane %v948, %v955
  %v958 = vunpack.c.l.s4 1966171168
  %v959 = vunpack.c.0.s8 %v958
  %v960 = vlaneseq
  %v961 = vshrl.u32 %v960, 7
  %v962 = vsub.s32 %v959, %v961
  %v963 = vrot.slane %v949, %v962
  %v964 = vcombine.low %v956, %v963
  %s967 = scalar_lea.vmem [#allocation2], 4
  %968 = vst [vmem:[%s967] ss:$8 sm:$0xf] %v915
  %969 = vst [vmem:[%s967] ss:$8 sm:$0xf0] %v915
  %s970 = scalar_lea.vmem [#allocation2], 68
  %971 = vst [vmem:[%s970] ss:$8 sm:$0xf] %v964
  %972 = vst [vmem:[%s970] ss:$8 sm:$0xf0] %v964
  %973 = vrot.lane.b32.xlu0 %v40, 1
  %v974 = vpop.permute.xlu0 %973
  %975 = vrot.lane.b32.xlu0 %v44, 1
  %v976 = vpop.permute.xlu0 %975
  %977 = vrot.lane.b32.xlu0 %v48, 1
  %v978 = vpop.permute.xlu0 %977
  %979 = vrot.lane.b32.xlu0 %v52, 1
  %v980 = vpop.permute.xlu0 %979
  %981 = vrot.lane.b32.xlu0 %v56, 1
  %v982 = vpop.permute.xlu0 %981
  %983 = vrot.lane.b32.xlu0 %v60, 1
  %v984 = vpop.permute.xlu0 %983
  %985 = vrot.lane.b32.xlu0 %v64, 1
  %v986 = vpop.permute.xlu0 %985
  %987 = vrot.lane.b32.xlu0 %v68, 1
  %v988 = vpop.permute.xlu0 %987
  %989 = vrot.lane.b32.xlu0 %v72, 1
  %v990 = vpop.permute.xlu0 %989
  %991 = vrot.lane.b32.xlu0 %v76, 1
  %v992 = vpop.permute.xlu0 %991
  %993 = vrot.lane.b32.xlu0 %v80, 1
  %v994 = vpop.permute.xlu0 %993
  %995 = vrot.lane.b32.xlu0 %v84, 1
  %v996 = vpop.permute.xlu0 %995
  %997 = vrot.lane.b32.xlu0 %v88, 1
  %v998 = vpop.permute.xlu0 %997
  %999 = vrot.lane.b32.xlu0 %v92, 1
  %v1000 = vpop.permute.xlu0 %999
  %1001 = vrot.lane.b32.xlu0 %v96, 1
  %v1002 = vpop.permute.xlu0 %1001
  %1003 = vrot.lane.b32.xlu0 %v100, 1
  %v1004 = vpop.permute.xlu0 %1003
  %vm1005 = vcmp.lt.s32.totalorder %v150, 1
  %v1006 = vsel %vm1005, %v1002, %v1004
  %v1007 = vsel %vm1005, %v1000, %v1002
  %v1008 = vsel %vm1005, %v998, %v1000
  %v1009 = vsel %vm1005, %v996, %v998
  %v1010 = vsel %vm1005, %v994, %v996
  %v1011 = vsel %vm1005, %v992, %v994
  %v1012 = vsel %vm1005, %v990, %v992
  %v1013 = vsel %vm1005, %v988, %v990
  %v1014 = vsel %vm1005, %v986, %v988
  %v1015 = vsel %vm1005, %v984, %v986
  %v1016 = vsel %vm1005, %v982, %v984
  %v1017 = vsel %vm1005, %v980, %v982
  %v1018 = vsel %vm1005, %v978, %v980
  %v1019 = vsel %vm1005, %v976, %v978
  %v1020 = vsel %vm1005, %v974, %v976
  %v1021 = vsel %vm1005, %v1004, %v974
  %v1038 = vcombine.low %v1021, %v1020
  %v1039 = vcombine.low %v1019, %v1018
  %v1040 = vcombine.low %v1017, %v1016
  %v1041 = vcombine.low %v1015, %v1014
  %v1043 = vunpack.c.l.s4 1966171168
  %v1044 = vunpack.c.0.s8 %v1043
  %v1045 = vlaneseq
  %v1046 = vshrl.u32 %v1045, 7
  %v1047 = vsub.s32 %v1044, %v1046
  %v1048 = vrot.slane %v1038, %v1047
  %v1050 = vunpack.c.l.s4 1966171168
  %v1051 = vunpack.c.0.s8 %v1050
  %v1052 = vlaneseq
  %v1053 = vshrl.u32 %v1052, 7
  %v1054 = vsub.s32 %v1051, %v1053
  %v1055 = vrot.slane %v1039, %v1054
  %v1057 = vunpack.c.l.s4 1966171168
  %v1058 = vunpack.c.0.s8 %v1057
  %v1059 = vlaneseq
  %v1060 = vshrl.u32 %v1059, 7
  %v1061 = vsub.s32 %v1058, %v1060
  %v1062 = vrot.slane %v1040, %v1061
  %v1064 = vunpack.c.l.s4 1966171168
  %v1065 = vunpack.c.0.s8 %v1064
  %v1066 = vlaneseq
  %v1067 = vshrl.u32 %v1066, 7
  %v1068 = vsub.s32 %v1065, %v1067
  %v1069 = vrot.slane %v1041, %v1068
  %v1070 = vcombine.low %v1048, %v1055
  %v1071 = vcombine.low %v1062, %v1069
  %v1073 = vunpack.c.l.s4 1966171168
  %v1074 = vunpack.c.0.s8 %v1073
  %v1075 = vlaneseq
  %v1076 = vshrl.u32 %v1075, 7
  %v1077 = vsub.s32 %v1074, %v1076
  %v1078 = vrot.slane %v1070, %v1077
  %v1080 = vunpack.c.l.s4 1966171168
  %v1081 = vunpack.c.0.s8 %v1080
  %v1082 = vlaneseq
  %v1083 = vshrl.u32 %v1082, 7
  %v1084 = vsub.s32 %v1081, %v1083
  %v1085 = vrot.slane %v1071, %v1084
  %v1086 = vcombine.low %v1078, %v1085
  %v1087 = vcombine.low %v1013, %v1012
  %v1088 = vcombine.low %v1011, %v1010
  %v1089 = vcombine.low %v1009, %v1008
  %v1090 = vcombine.low %v1007, %v1006
  %v1092 = vunpack.c.l.s4 1966171168
  %v1093 = vunpack.c.0.s8 %v1092
  %v1094 = vlaneseq
  %v1095 = vshrl.u32 %v1094, 7
  %v1096 = vsub.s32 %v1093, %v1095
  %v1097 = vrot.slane %v1087, %v1096
  %v1099 = vunpack.c.l.s4 1966171168
  %v1100 = vunpack.c.0.s8 %v1099
  %v1101 = vlaneseq
  %v1102 = vshrl.u32 %v1101, 7
  %v1103 = vsub.s32 %v1100, %v1102
  %v1104 = vrot.slane %v1088, %v1103
  %v1106 = vunpack.c.l.s4 1966171168
  %v1107 = vunpack.c.0.s8 %v1106
  %v1108 = vlaneseq
  %v1109 = vshrl.u32 %v1108, 7
  %v1110 = vsub.s32 %v1107, %v1109
  %v1111 = vrot.slane %v1089, %v1110
  %v1113 = vunpack.c.l.s4 1966171168
  %v1114 = vunpack.c.0.s8 %v1113
  %v1115 = vlaneseq
  %v1116 = vshrl.u32 %v1115, 7
  %v1117 = vsub.s32 %v1114, %v1116
  %v1118 = vrot.slane %v1090, %v1117
  %v1119 = vcombine.low %v1097, %v1104
  %v1120 = vcombine.low %v1111, %v1118
  %v1122 = vunpack.c.l.s4 1966171168
  %v1123 = vunpack.c.0.s8 %v1122
  %v1124 = vlaneseq
  %v1125 = vshrl.u32 %v1124, 7
  %v1126 = vsub.s32 %v1123, %v1125
  %v1127 = vrot.slane %v1119, %v1126
  %v1129 = vunpack.c.l.s4 1966171168
  %v1130 = vunpack.c.0.s8 %v1129
  %v1131 = vlaneseq
  %v1132 = vshrl.u32 %v1131, 7
  %v1133 = vsub.s32 %v1130, %v1132
  %v1134 = vrot.slane %v1120, %v1133
  %v1135 = vcombine.low %v1127, %v1134
  %s1138 = scalar_lea.vmem [#allocation2], 5
  %1139 = vst [vmem:[%s1138] ss:$8 sm:$0xf] %v1086
  %1140 = vst [vmem:[%s1138] ss:$8 sm:$0xf0] %v1086
  %s1141 = scalar_lea.vmem [#allocation2], 69
  %1142 = vst [vmem:[%s1141] ss:$8 sm:$0xf] %v1135
  %1143 = vst [vmem:[%s1141] ss:$8 sm:$0xf0] %v1135
  %s1144 = scalar_lea.vmem [#allocation2], 6
  %1145 = vst [vmem:[%s1144] ss:$8 sm:$0xf] %v31
  %1146 = vst [vmem:[%s1144] ss:$8 sm:$0xf0] %v31
  %s1147 = scalar_lea.vmem [#allocation2], 70
  %1148 = vst [vmem:[%s1147] ss:$8 sm:$0xf] %v32
  %1149 = vst [vmem:[%s1147] ss:$8 sm:$0xf0] %v32
  %1150 = vrot.lane.b32.xlu0 %v40, 127
  %v1151 = vpop.permute.xlu0 %1150
  %1152 = vrot.lane.b32.xlu0 %v44, 127
  %v1153 = vpop.permute.xlu0 %1152
  %1154 = vrot.lane.b32.xlu0 %v48, 127
  %v1155 = vpop.permute.xlu0 %1154
  %1156 = vrot.lane.b32.xlu0 %v52, 127
  %v1157 = vpop.permute.xlu0 %1156
  %1158 = vrot.lane.b32.xlu0 %v56, 127
  %v1159 = vpop.permute.xlu0 %1158
  %1160 = vrot.lane.b32.xlu0 %v60, 127
  %v1161 = vpop.permute.xlu0 %1160
  %1162 = vrot.lane.b32.xlu0 %v64, 127
  %v1163 = vpop.permute.xlu0 %1162
  %1164 = vrot.lane.b32.xlu0 %v68, 127
  %v1165 = vpop.permute.xlu0 %1164
  %1166 = vrot.lane.b32.xlu0 %v72, 127
  %v1167 = vpop.permute.xlu0 %1166
  %1168 = vrot.lane.b32.xlu0 %v76, 127
  %v1169 = vpop.permute.xlu0 %1168
  %1170 = vrot.lane.b32.xlu0 %v80, 127
  %v1171 = vpop.permute.xlu0 %1170
  %1172 = vrot.lane.b32.xlu0 %v84, 127
  %v1173 = vpop.permute.xlu0 %1172
  %1174 = vrot.lane.b32.xlu0 %v88, 127
  %v1175 = vpop.permute.xlu0 %1174
  %1176 = vrot.lane.b32.xlu0 %v92, 127
  %v1177 = vpop.permute.xlu0 %1176
  %1178 = vrot.lane.b32.xlu0 %v96, 127
  %v1179 = vpop.permute.xlu0 %1178
  %1180 = vrot.lane.b32.xlu0 %v100, 127
  %v1181 = vpop.permute.xlu0 %1180
  %vm1182 = vcmp.lt.s32.totalorder %v150, 127
  %v1183 = vsel %vm1182, %v1179, %v1181
  %v1184 = vsel %vm1182, %v1177, %v1179
  %v1185 = vsel %vm1182, %v1175, %v1177
  %v1186 = vsel %vm1182, %v1173, %v1175
  %v1187 = vsel %vm1182, %v1171, %v1173
  %v1188 = vsel %vm1182, %v1169, %v1171
  %v1189 = vsel %vm1182, %v1167, %v1169
  %v1190 = vsel %vm1182, %v1165, %v1167
  %v1191 = vsel %vm1182, %v1163, %v1165
  %v1192 = vsel %vm1182, %v1161, %v1163
  %v1193 = vsel %vm1182, %v1159, %v1161
  %v1194 = vsel %vm1182, %v1157, %v1159
  %v1195 = vsel %vm1182, %v1155, %v1157
  %v1196 = vsel %vm1182, %v1153, %v1155
  %v1197 = vsel %vm1182, %v1151, %v1153
  %v1198 = vsel %vm1182, %v1181, %v1151
  %v1215 = vcombine.low %v1197, %v1196
  %v1216 = vcombine.low %v1195, %v1194
  %v1217 = vcombine.low %v1193, %v1192
  %v1218 = vcombine.low %v1191, %v1190
  %v1220 = vunpack.c.l.s4 1966171168
  %v1221 = vunpack.c.0.s8 %v1220
  %v1222 = vlaneseq
  %v1223 = vshrl.u32 %v1222, 7
  %v1224 = vsub.s32 %v1221, %v1223
  %v1225 = vrot.slane %v1215, %v1224
  %v1227 = vunpack.c.l.s4 1966171168
  %v1228 = vunpack.c.0.s8 %v1227
  %v1229 = vlaneseq
  %v1230 = vshrl.u32 %v1229, 7
  %v1231 = vsub.s32 %v1228, %v1230
  %v1232 = vrot.slane %v1216, %v1231
  %v1234 = vunpack.c.l.s4 1966171168
  %v1235 = vunpack.c.0.s8 %v1234
  %v1236 = vlaneseq
  %v1237 = vshrl.u32 %v1236, 7
  %v1238 = vsub.s32 %v1235, %v1237
  %v1239 = vrot.slane %v1217, %v1238
  %v1241 = vunpack.c.l.s4 1966171168
  %v1242 = vunpack.c.0.s8 %v1241
  %v1243 = vlaneseq
  %v1244 = vshrl.u32 %v1243, 7
  %v1245 = vsub.s32 %v1242, %v1244
  %v1246 = vrot.slane %v1218, %v1245
  %v1247 = vcombine.low %v1225, %v1232
  %v1248 = vcombine.low %v1239, %v1246
  %v1250 = vunpack.c.l.s4 1966171168
  %v1251 = vunpack.c.0.s8 %v1250
  %v1252 = vlaneseq
  %v1253 = vshrl.u32 %v1252, 7
  %v1254 = vsub.s32 %v1251, %v1253
  %v1255 = vrot.slane %v1247, %v1254
  %v1257 = vunpack.c.l.s4 1966171168
  %v1258 = vunpack.c.0.s8 %v1257
  %v1259 = vlaneseq
  %v1260 = vshrl.u32 %v1259, 7
  %v1261 = vsub.s32 %v1258, %v1260
  %v1262 = vrot.slane %v1248, %v1261
  %v1263 = vcombine.low %v1255, %v1262
  %v1264 = vcombine.low %v1189, %v1188
  %v1265 = vcombine.low %v1187, %v1186
  %v1266 = vcombine.low %v1185, %v1184
  %v1267 = vcombine.low %v1183, %v1198
  %v1269 = vunpack.c.l.s4 1966171168
  %v1270 = vunpack.c.0.s8 %v1269
  %v1271 = vlaneseq
  %v1272 = vshrl.u32 %v1271, 7
  %v1273 = vsub.s32 %v1270, %v1272
  %v1274 = vrot.slane %v1264, %v1273
  %v1276 = vunpack.c.l.s4 1966171168
  %v1277 = vunpack.c.0.s8 %v1276
  %v1278 = vlaneseq
  %v1279 = vshrl.u32 %v1278, 7
  %v1280 = vsub.s32 %v1277, %v1279
  %v1281 = vrot.slane %v1265, %v1280
  %v1283 = vunpack.c.l.s4 1966171168
  %v1284 = vunpack.c.0.s8 %v1283
  %v1285 = vlaneseq
  %v1286 = vshrl.u32 %v1285, 7
  %v1287 = vsub.s32 %v1284, %v1286
  %v1288 = vrot.slane %v1266, %v1287
  %v1290 = vunpack.c.l.s4 1966171168
  %v1291 = vunpack.c.0.s8 %v1290
  %v1292 = vlaneseq
  %v1293 = vshrl.u32 %v1292, 7
  %v1294 = vsub.s32 %v1291, %v1293
  %v1295 = vrot.slane %v1267, %v1294
  %v1296 = vcombine.low %v1274, %v1281
  %v1297 = vcombine.low %v1288, %v1295
  %v1299 = vunpack.c.l.s4 1966171168
  %v1300 = vunpack.c.0.s8 %v1299
  %v1301 = vlaneseq
  %v1302 = vshrl.u32 %v1301, 7
  %v1303 = vsub.s32 %v1300, %v1302
  %v1304 = vrot.slane %v1296, %v1303
  %v1306 = vunpack.c.l.s4 1966171168
  %v1307 = vunpack.c.0.s8 %v1306
  %v1308 = vlaneseq
  %v1309 = vshrl.u32 %v1308, 7
  %v1310 = vsub.s32 %v1307, %v1309
  %v1311 = vrot.slane %v1297, %v1310
  %v1312 = vcombine.low %v1304, %v1311
  %s1315 = scalar_lea.vmem [#allocation2], 7
  %1316 = vst [vmem:[%s1315] ss:$8 sm:$0xf] %v1263
  %1317 = vst [vmem:[%s1315] ss:$8 sm:$0xf0] %v1263
  %s1318 = scalar_lea.vmem [#allocation2], 71
  %1319 = vst [vmem:[%s1318] ss:$8 sm:$0xf] %v1312
  %1320 = vst [vmem:[%s1318] ss:$8 sm:$0xf0] %v1312
  %1321 = vrot.lane.b32.xlu0 %v40, 126
  %v1322 = vpop.permute.xlu0 %1321
  %1323 = vrot.lane.b32.xlu0 %v44, 126
  %v1324 = vpop.permute.xlu0 %1323
  %1325 = vrot.lane.b32.xlu0 %v48, 126
  %v1326 = vpop.permute.xlu0 %1325
  %1327 = vrot.lane.b32.xlu0 %v52, 126
  %v1328 = vpop.permute.xlu0 %1327
  %1329 = vrot.lane.b32.xlu0 %v56, 126
  %v1330 = vpop.permute.xlu0 %1329
  %1331 = vrot.lane.b32.xlu0 %v60, 126
  %v1332 = vpop.permute.xlu0 %1331
  %1333 = vrot.lane.b32.xlu0 %v64, 126
  %v1334 = vpop.permute.xlu0 %1333
  %1335 = vrot.lane.b32.xlu0 %v68, 126
  %v1336 = vpop.permute.xlu0 %1335
  %1337 = vrot.lane.b32.xlu0 %v72, 126
  %v1338 = vpop.permute.xlu0 %1337
  %1339 = vrot.lane.b32.xlu0 %v76, 126
  %v1340 = vpop.permute.xlu0 %1339
  %1341 = vrot.lane.b32.xlu0 %v80, 126
  %v1342 = vpop.permute.xlu0 %1341
  %1343 = vrot.lane.b32.xlu0 %v84, 126
  %v1344 = vpop.permute.xlu0 %1343
  %1345 = vrot.lane.b32.xlu0 %v88, 126
  %v1346 = vpop.permute.xlu0 %1345
  %1347 = vrot.lane.b32.xlu0 %v92, 126
  %v1348 = vpop.permute.xlu0 %1347
  %1349 = vrot.lane.b32.xlu0 %v96, 126
  %v1350 = vpop.permute.xlu0 %1349
  %1351 = vrot.lane.b32.xlu0 %v100, 126
  %v1352 = vpop.permute.xlu0 %1351
  %vm1353 = vcmp.lt.s32.totalorder %v150, 126
  %v1354 = vsel %vm1353, %v1350, %v1352
  %v1355 = vsel %vm1353, %v1348, %v1350
  %v1356 = vsel %vm1353, %v1346, %v1348
  %v1357 = vsel %vm1353, %v1344, %v1346
  %v1358 = vsel %vm1353, %v1342, %v1344
  %v1359 = vsel %vm1353, %v1340, %v1342
  %v1360 = vsel %vm1353, %v1338, %v1340
  %v1361 = vsel %vm1353, %v1336, %v1338
  %v1362 = vsel %vm1353, %v1334, %v1336
  %v1363 = vsel %vm1353, %v1332, %v1334
  %v1364 = vsel %vm1353, %v1330, %v1332
  %v1365 = vsel %vm1353, %v1328, %v1330
  %v1366 = vsel %vm1353, %v1326, %v1328
  %v1367 = vsel %vm1353, %v1324, %v1326
  %v1368 = vsel %vm1353, %v1322, %v1324
  %v1369 = vsel %vm1353, %v1352, %v1322
  %v1386 = vcombine.low %v1368, %v1367
  %v1387 = vcombine.low %v1366, %v1365
  %v1388 = vcombine.low %v1364, %v1363
  %v1389 = vcombine.low %v1362, %v1361
  %v1391 = vunpack.c.l.s4 1966171168
  %v1392 = vunpack.c.0.s8 %v1391
  %v1393 = vlaneseq
  %v1394 = vshrl.u32 %v1393, 7
  %v1395 = vsub.s32 %v1392, %v1394
  %v1396 = vrot.slane %v1386, %v1395
  %v1398 = vunpack.c.l.s4 1966171168
  %v1399 = vunpack.c.0.s8 %v1398
  %v1400 = vlaneseq
  %v1401 = vshrl.u32 %v1400, 7
  %v1402 = vsub.s32 %v1399, %v1401
  %v1403 = vrot.slane %v1387, %v1402
  %v1405 = vunpack.c.l.s4 1966171168
  %v1406 = vunpack.c.0.s8 %v1405
  %v1407 = vlaneseq
  %v1408 = vshrl.u32 %v1407, 7
  %v1409 = vsub.s32 %v1406, %v1408
  %v1410 = vrot.slane %v1388, %v1409
  %v1412 = vunpack.c.l.s4 1966171168
  %v1413 = vunpack.c.0.s8 %v1412
  %v1414 = vlaneseq
  %v1415 = vshrl.u32 %v1414, 7
  %v1416 = vsub.s32 %v1413, %v1415
  %v1417 = vrot.slane %v1389, %v1416
  %v1418 = vcombine.low %v1396, %v1403
  %v1419 = vcombine.low %v1410, %v1417
  %v1421 = vunpack.c.l.s4 1966171168
  %v1422 = vunpack.c.0.s8 %v1421
  %v1423 = vlaneseq
  %v1424 = vshrl.u32 %v1423, 7
  %v1425 = vsub.s32 %v1422, %v1424
  %v1426 = vrot.slane %v1418, %v1425
  %v1428 = vunpack.c.l.s4 1966171168
  %v1429 = vunpack.c.0.s8 %v1428
  %v1430 = vlaneseq
  %v1431 = vshrl.u32 %v1430, 7
  %v1432 = vsub.s32 %v1429, %v1431
  %v1433 = vrot.slane %v1419, %v1432
  %v1434 = vcombine.low %v1426, %v1433
  %v1435 = vcombine.low %v1360, %v1359
  %v1436 = vcombine.low %v1358, %v1357
  %v1437 = vcombine.low %v1356, %v1355
  %v1438 = vcombine.low %v1354, %v1369
  %v1440 = vunpack.c.l.s4 1966171168
  %v1441 = vunpack.c.0.s8 %v1440
  %v1442 = vlaneseq
  %v1443 = vshrl.u32 %v1442, 7
  %v1444 = vsub.s32 %v1441, %v1443
  %v1445 = vrot.slane %v1435, %v1444
  %v1447 = vunpack.c.l.s4 1966171168
  %v1448 = vunpack.c.0.s8 %v1447
  %v1449 = vlaneseq
  %v1450 = vshrl.u32 %v1449, 7
  %v1451 = vsub.s32 %v1448, %v1450
  %v1452 = vrot.slane %v1436, %v1451
  %v1454 = vunpack.c.l.s4 1966171168
  %v1455 = vunpack.c.0.s8 %v1454
  %v1456 = vlaneseq
  %v1457 = vshrl.u32 %v1456, 7
  %v1458 = vsub.s32 %v1455, %v1457
  %v1459 = vrot.slane %v1437, %v1458
  %v1461 = vunpack.c.l.s4 1966171168
  %v1462 = vunpack.c.0.s8 %v1461
  %v1463 = vlaneseq
  %v1464 = vshrl.u32 %v1463, 7
  %v1465 = vsub.s32 %v1462, %v1464
  %v1466 = vrot.slane %v1438, %v1465
  %v1467 = vcombine.low %v1445, %v1452
  %v1468 = vcombine.low %v1459, %v1466
  %v1470 = vunpack.c.l.s4 1966171168
  %v1471 = vunpack.c.0.s8 %v1470
  %v1472 = vlaneseq
  %v1473 = vshrl.u32 %v1472, 7
  %v1474 = vsub.s32 %v1471, %v1473
  %v1475 = vrot.slane %v1467, %v1474
  %v1477 = vunpack.c.l.s4 1966171168
  %v1478 = vunpack.c.0.s8 %v1477
  %v1479 = vlaneseq
  %v1480 = vshrl.u32 %v1479, 7
  %v1481 = vsub.s32 %v1478, %v1480
  %v1482 = vrot.slane %v1468, %v1481
  %v1483 = vcombine.low %v1475, %v1482
  %s1486 = scalar_lea.vmem [#allocation2], 128
  %1487 = vst [vmem:[%s1486] ss:$8 sm:$0xf] %v1434
  %1488 = vst [vmem:[%s1486] ss:$8 sm:$0xf0] %v1434
  %s1489 = scalar_lea.vmem [#allocation2], 192
  %1490 = vst [vmem:[%s1489] ss:$8 sm:$0xf] %v1483
  %1491 = vst [vmem:[%s1489] ss:$8 sm:$0xf0] %v1483
  %1492 = vrot.lane.b32.xlu0 %v40, 97
  %v1493 = vpop.permute.xlu0 %1492
  %1494 = vrot.lane.b32.xlu0 %v44, 97
  %v1495 = vpop.permute.xlu0 %1494
  %1496 = vrot.lane.b32.xlu0 %v48, 97
  %v1497 = vpop.permute.xlu0 %1496
  %1498 = vrot.lane.b32.xlu0 %v52, 97
  %v1499 = vpop.permute.xlu0 %1498
  %1500 = vrot.lane.b32.xlu0 %v56, 97
  %v1501 = vpop.permute.xlu0 %1500
  %1502 = vrot.lane.b32.xlu0 %v60, 97
  %v1503 = vpop.permute.xlu0 %1502
  %1504 = vrot.lane.b32.xlu0 %v64, 97
  %v1505 = vpop.permute.xlu0 %1504
  %1506 = vrot.lane.b32.xlu0 %v68, 97
  %v1507 = vpop.permute.xlu0 %1506
  %1508 = vrot.lane.b32.xlu0 %v72, 97
  %v1509 = vpop.permute.xlu0 %1508
  %1510 = vrot.lane.b32.xlu0 %v76, 97
  %v1511 = vpop.permute.xlu0 %1510
  %1512 = vrot.lane.b32.xlu0 %v80, 97
  %v1513 = vpop.permute.xlu0 %1512
  %1514 = vrot.lane.b32.xlu0 %v84, 97
  %v1515 = vpop.permute.xlu0 %1514
  %1516 = vrot.lane.b32.xlu0 %v88, 97
  %v1517 = vpop.permute.xlu0 %1516
  %1518 = vrot.lane.b32.xlu0 %v92, 97
  %v1519 = vpop.permute.xlu0 %1518
  %1520 = vrot.lane.b32.xlu0 %v96, 97
  %v1521 = vpop.permute.xlu0 %1520
  %1522 = vrot.lane.b32.xlu0 %v100, 97
  %v1523 = vpop.permute.xlu0 %1522
  %vm1524 = vcmp.lt.s32.totalorder %v150, 97
  %v1525 = vsel %vm1524, %v1521, %v1523
  %v1526 = vsel %vm1524, %v1519, %v1521
  %v1527 = vsel %vm1524, %v1517, %v1519
  %v1528 = vsel %vm1524, %v1515, %v1517
  %v1529 = vsel %vm1524, %v1513, %v1515
  %v1530 = vsel %vm1524, %v1511, %v1513
  %v1531 = vsel %vm1524, %v1509, %v1511
  %v1532 = vsel %vm1524, %v1507, %v1509
  %v1533 = vsel %vm1524, %v1505, %v1507
  %v1534 = vsel %vm1524, %v1503, %v1505
  %v1535 = vsel %vm1524, %v1501, %v1503
  %v1536 = vsel %vm1524, %v1499, %v1501
  %v1537 = vsel %vm1524, %v1497, %v1499
  %v1538 = vsel %vm1524, %v1495, %v1497
  %v1539 = vsel %vm1524, %v1493, %v1495
  %v1540 = vsel %vm1524, %v1523, %v1493
  %v1557 = vcombine.low %v1539, %v1538
  %v1558 = vcombine.low %v1537, %v1536
  %v1559 = vcombine.low %v1535, %v1534
  %v1560 = vcombine.low %v1533, %v1532
  %v1562 = vunpack.c.l.s4 1966171168
  %v1563 = vunpack.c.0.s8 %v1562
  %v1564 = vlaneseq
  %v1565 = vshrl.u32 %v1564, 7
  %v1566 = vsub.s32 %v1563, %v1565
  %v1567 = vrot.slane %v1557, %v1566
  %v1569 = vunpack.c.l.s4 1966171168
  %v1570 = vunpack.c.0.s8 %v1569
  %v1571 = vlaneseq
  %v1572 = vshrl.u32 %v1571, 7
  %v1573 = vsub.s32 %v1570, %v1572
  %v1574 = vrot.slane %v1558, %v1573
  %v1576 = vunpack.c.l.s4 1966171168
  %v1577 = vunpack.c.0.s8 %v1576
  %v1578 = vlaneseq
  %v1579 = vshrl.u32 %v1578, 7
  %v1580 = vsub.s32 %v1577, %v1579
  %v1581 = vrot.slane %v1559, %v1580
  %v1583 = vunpack.c.l.s4 1966171168
  %v1584 = vunpack.c.0.s8 %v1583
  %v1585 = vlaneseq
  %v1586 = vshrl.u32 %v1585, 7
  %v1587 = vsub.s32 %v1584, %v1586
  %v1588 = vrot.slane %v1560, %v1587
  %v1589 = vcombine.low %v1567, %v1574
  %v1590 = vcombine.low %v1581, %v1588
  %v1592 = vunpack.c.l.s4 1966171168
  %v1593 = vunpack.c.0.s8 %v1592
  %v1594 = vlaneseq
  %v1595 = vshrl.u32 %v1594, 7
  %v1596 = vsub.s32 %v1593, %v1595
  %v1597 = vrot.slane %v1589, %v1596
  %v1599 = vunpack.c.l.s4 1966171168
  %v1600 = vunpack.c.0.s8 %v1599
  %v1601 = vlaneseq
  %v1602 = vshrl.u32 %v1601, 7
  %v1603 = vsub.s32 %v1600, %v1602
  %v1604 = vrot.slane %v1590, %v1603
  %v1605 = vcombine.low %v1597, %v1604
  %v1606 = vcombine.low %v1531, %v1530
  %v1607 = vcombine.low %v1529, %v1528
  %v1608 = vcombine.low %v1527, %v1526
  %v1609 = vcombine.low %v1525, %v1540
  %v1611 = vunpack.c.l.s4 1966171168
  %v1612 = vunpack.c.0.s8 %v1611
  %v1613 = vlaneseq
  %v1614 = vshrl.u32 %v1613, 7
  %v1615 = vsub.s32 %v1612, %v1614
  %v1616 = vrot.slane %v1606, %v1615
  %v1618 = vunpack.c.l.s4 1966171168
  %v1619 = vunpack.c.0.s8 %v1618
  %v1620 = vlaneseq
  %v1621 = vshrl.u32 %v1620, 7
  %v1622 = vsub.s32 %v1619, %v1621
  %v1623 = vrot.slane %v1607, %v1622
  %v1625 = vunpack.c.l.s4 1966171168
  %v1626 = vunpack.c.0.s8 %v1625
  %v1627 = vlaneseq
  %v1628 = vshrl.u32 %v1627, 7
  %v1629 = vsub.s32 %v1626, %v1628
  %v1630 = vrot.slane %v1608, %v1629
  %v1632 = vunpack.c.l.s4 1966171168
  %v1633 = vunpack.c.0.s8 %v1632
  %v1634 = vlaneseq
  %v1635 = vshrl.u32 %v1634, 7
  %v1636 = vsub.s32 %v1633, %v1635
  %v1637 = vrot.slane %v1609, %v1636
  %v1638 = vcombine.low %v1616, %v1623
  %v1639 = vcombine.low %v1630, %v1637
  %v1641 = vunpack.c.l.s4 1966171168
  %v1642 = vunpack.c.0.s8 %v1641
  %v1643 = vlaneseq
  %v1644 = vshrl.u32 %v1643, 7
  %v1645 = vsub.s32 %v1642, %v1644
  %v1646 = vrot.slane %v1638, %v1645
  %v1648 = vunpack.c.l.s4 1966171168
  %v1649 = vunpack.c.0.s8 %v1648
  %v1650 = vlaneseq
  %v1651 = vshrl.u32 %v1650, 7
  %v1652 = vsub.s32 %v1649, %v1651
  %v1653 = vrot.slane %v1639, %v1652
  %v1654 = vcombine.low %v1646, %v1653
  %s1657 = scalar_lea.vmem [#allocation2], 129
  %1658 = vst [vmem:[%s1657] ss:$8 sm:$0xf] %v1605
  %1659 = vst [vmem:[%s1657] ss:$8 sm:$0xf0] %v1605
  %s1660 = scalar_lea.vmem [#allocation2], 193
  %1661 = vst [vmem:[%s1660] ss:$8 sm:$0xf] %v1654
  %1662 = vst [vmem:[%s1660] ss:$8 sm:$0xf0] %v1654
  %1663 = vrot.lane.b32.xlu0 %v40, 96
  %v1664 = vpop.permute.xlu0 %1663
  %1665 = vrot.lane.b32.xlu0 %v44, 96
  %v1666 = vpop.permute.xlu0 %1665
  %1667 = vrot.lane.b32.xlu0 %v48, 96
  %v1668 = vpop.permute.xlu0 %1667
  %1669 = vrot.lane.b32.xlu0 %v52, 96
  %v1670 = vpop.permute.xlu0 %1669
  %1671 = vrot.lane.b32.xlu0 %v56, 96
  %v1672 = vpop.permute.xlu0 %1671
  %1673 = vrot.lane.b32.xlu0 %v60, 96
  %v1674 = vpop.permute.xlu0 %1673
  %1675 = vrot.lane.b32.xlu0 %v64, 96
  %v1676 = vpop.permute.xlu0 %1675
  %1677 = vrot.lane.b32.xlu0 %v68, 96
  %v1678 = vpop.permute.xlu0 %1677
  %1679 = vrot.lane.b32.xlu0 %v72, 96
  %v1680 = vpop.permute.xlu0 %1679
  %1681 = vrot.lane.b32.xlu0 %v76, 96
  %v1682 = vpop.permute.xlu0 %1681
  %1683 = vrot.lane.b32.xlu0 %v80, 96
  %v1684 = vpop.permute.xlu0 %1683
  %1685 = vrot.lane.b32.xlu0 %v84, 96
  %v1686 = vpop.permute.xlu0 %1685
  %1687 = vrot.lane.b32.xlu0 %v88, 96
  %v1688 = vpop.permute.xlu0 %1687
  %1689 = vrot.lane.b32.xlu0 %v92, 96
  %v1690 = vpop.permute.xlu0 %1689
  %1691 = vrot.lane.b32.xlu0 %v96, 96
  %v1692 = vpop.permute.xlu0 %1691
  %1693 = vrot.lane.b32.xlu0 %v100, 96
  %v1694 = vpop.permute.xlu0 %1693
  %vm1695 = vcmp.lt.s32.totalorder %v150, 96
  %v1696 = vsel %vm1695, %v1692, %v1694
  %v1697 = vsel %vm1695, %v1690, %v1692
  %v1698 = vsel %vm1695, %v1688, %v1690
  %v1699 = vsel %vm1695, %v1686, %v1688
  %v1700 = vsel %vm1695, %v1684, %v1686
  %v1701 = vsel %vm1695, %v1682, %v1684
  %v1702 = vsel %vm1695, %v1680, %v1682
  %v1703 = vsel %vm1695, %v1678, %v1680
  %v1704 = vsel %vm1695, %v1676, %v1678
  %v1705 = vsel %vm1695, %v1674, %v1676
  %v1706 = vsel %vm1695, %v1672, %v1674
  %v1707 = vsel %vm1695, %v1670, %v1672
  %v1708 = vsel %vm1695, %v1668, %v1670
  %v1709 = vsel %vm1695, %v1666, %v1668
  %v1710 = vsel %vm1695, %v1664, %v1666
  %v1711 = vsel %vm1695, %v1694, %v1664
  %v1728 = vcombine.low %v1710, %v1709
  %v1729 = vcombine.low %v1708, %v1707
  %v1730 = vcombine.low %v1706, %v1705
  %v1731 = vcombine.low %v1704, %v1703
  %v1733 = vunpack.c.l.s4 1966171168
  %v1734 = vunpack.c.0.s8 %v1733
  %v1735 = vlaneseq
  %v1736 = vshrl.u32 %v1735, 7
  %v1737 = vsub.s32 %v1734, %v1736
  %v1738 = vrot.slane %v1728, %v1737
  %v1740 = vunpack.c.l.s4 1966171168
  %v1741 = vunpack.c.0.s8 %v1740
  %v1742 = vlaneseq
  %v1743 = vshrl.u32 %v1742, 7
  %v1744 = vsub.s32 %v1741, %v1743
  %v1745 = vrot.slane %v1729, %v1744
  %v1747 = vunpack.c.l.s4 1966171168
  %v1748 = vunpack.c.0.s8 %v1747
  %v1749 = vlaneseq
  %v1750 = vshrl.u32 %v1749, 7
  %v1751 = vsub.s32 %v1748, %v1750
  %v1752 = vrot.slane %v1730, %v1751
  %v1754 = vunpack.c.l.s4 1966171168
  %v1755 = vunpack.c.0.s8 %v1754
  %v1756 = vlaneseq
  %v1757 = vshrl.u32 %v1756, 7
  %v1758 = vsub.s32 %v1755, %v1757
  %v1759 = vrot.slane %v1731, %v1758
  %v1760 = vcombine.low %v1738, %v1745
  %v1761 = vcombine.low %v1752, %v1759
  %v1763 = vunpack.c.l.s4 1966171168
  %v1764 = vunpack.c.0.s8 %v1763
  %v1765 = vlaneseq
  %v1766 = vshrl.u32 %v1765, 7
  %v1767 = vsub.s32 %v1764, %v1766
  %v1768 = vrot.slane %v1760, %v1767
  %v1770 = vunpack.c.l.s4 1966171168
  %v1771 = vunpack.c.0.s8 %v1770
  %v1772 = vlaneseq
  %v1773 = vshrl.u32 %v1772, 7
  %v1774 = vsub.s32 %v1771, %v1773
  %v1775 = vrot.slane %v1761, %v1774
  %v1776 = vcombine.low %v1768, %v1775
  %v1777 = vcombine.low %v1702, %v1701
  %v1778 = vcombine.low %v1700, %v1699
  %v1779 = vcombine.low %v1698, %v1697
  %v1780 = vcombine.low %v1696, %v1711
  %v1782 = vunpack.c.l.s4 1966171168
  %v1783 = vunpack.c.0.s8 %v1782
  %v1784 = vlaneseq
  %v1785 = vshrl.u32 %v1784, 7
  %v1786 = vsub.s32 %v1783, %v1785
  %v1787 = vrot.slane %v1777, %v1786
  %v1789 = vunpack.c.l.s4 1966171168
  %v1790 = vunpack.c.0.s8 %v1789
  %v1791 = vlaneseq
  %v1792 = vshrl.u32 %v1791, 7
  %v1793 = vsub.s32 %v1790, %v1792
  %v1794 = vrot.slane %v1778, %v1793
  %v1796 = vunpack.c.l.s4 1966171168
  %v1797 = vunpack.c.0.s8 %v1796
  %v1798 = vlaneseq
  %v1799 = vshrl.u32 %v1798, 7
  %v1800 = vsub.s32 %v1797, %v1799
  %v1801 = vrot.slane %v1779, %v1800
  %v1803 = vunpack.c.l.s4 1966171168
  %v1804 = vunpack.c.0.s8 %v1803
  %v1805 = vlaneseq
  %v1806 = vshrl.u32 %v1805, 7
  %v1807 = vsub.s32 %v1804, %v1806
  %v1808 = vrot.slane %v1780, %v1807
  %v1809 = vcombine.low %v1787, %v1794
  %v1810 = vcombine.low %v1801, %v1808
  %v1812 = vunpack.c.l.s4 1966171168
  %v1813 = vunpack.c.0.s8 %v1812
  %v1814 = vlaneseq
  %v1815 = vshrl.u32 %v1814, 7
  %v1816 = vsub.s32 %v1813, %v1815
  %v1817 = vrot.slane %v1809, %v1816
  %v1819 = vunpack.c.l.s4 1966171168
  %v1820 = vunpack.c.0.s8 %v1819
  %v1821 = vlaneseq
  %v1822 = vshrl.u32 %v1821, 7
  %v1823 = vsub.s32 %v1820, %v1822
  %v1824 = vrot.slane %v1810, %v1823
  %v1825 = vcombine.low %v1817, %v1824
  %s1828 = scalar_lea.vmem [#allocation2], 130
  %1829 = vst [vmem:[%s1828] ss:$8 sm:$0xf] %v1776
  %1830 = vst [vmem:[%s1828] ss:$8 sm:$0xf0] %v1776
  %s1831 = scalar_lea.vmem [#allocation2], 194
  %1832 = vst [vmem:[%s1831] ss:$8 sm:$0xf] %v1825
  %1833 = vst [vmem:[%s1831] ss:$8 sm:$0xf0] %v1825
  %1834 = vrot.lane.b32.xlu0 %v40, 95
  %v1835 = vpop.permute.xlu0 %1834
  %1836 = vrot.lane.b32.xlu0 %v44, 95
  %v1837 = vpop.permute.xlu0 %1836
  %1838 = vrot.lane.b32.xlu0 %v48, 95
  %v1839 = vpop.permute.xlu0 %1838
  %1840 = vrot.lane.b32.xlu0 %v52, 95
  %v1841 = vpop.permute.xlu0 %1840
  %1842 = vrot.lane.b32.xlu0 %v56, 95
  %v1843 = vpop.permute.xlu0 %1842
  %1844 = vrot.lane.b32.xlu0 %v60, 95
  %v1845 = vpop.permute.xlu0 %1844
  %1846 = vrot.lane.b32.xlu0 %v64, 95
  %v1847 = vpop.permute.xlu0 %1846
  %1848 = vrot.lane.b32.xlu0 %v68, 95
  %v1849 = vpop.permute.xlu0 %1848
  %1850 = vrot.lane.b32.xlu0 %v72, 95
  %v1851 = vpop.permute.xlu0 %1850
  %1852 = vrot.lane.b32.xlu0 %v76, 95
  %v1853 = vpop.permute.xlu0 %1852
  %1854 = vrot.lane.b32.xlu0 %v80, 95
  %v1855 = vpop.permute.xlu0 %1854
  %1856 = vrot.lane.b32.xlu0 %v84, 95
  %v1857 = vpop.permute.xlu0 %1856
  %1858 = vrot.lane.b32.xlu0 %v88, 95
  %v1859 = vpop.permute.xlu0 %1858
  %1860 = vrot.lane.b32.xlu0 %v92, 95
  %v1861 = vpop.permute.xlu0 %1860
  %1862 = vrot.lane.b32.xlu0 %v96, 95
  %v1863 = vpop.permute.xlu0 %1862
  %1864 = vrot.lane.b32.xlu0 %v100, 95
  %v1865 = vpop.permute.xlu0 %1864
  %vm1866 = vcmp.lt.s32.totalorder %v150, 95
  %v1867 = vsel %vm1866, %v1863, %v1865
  %v1868 = vsel %vm1866, %v1861, %v1863
  %v1869 = vsel %vm1866, %v1859, %v1861
  %v1870 = vsel %vm1866, %v1857, %v1859
  %v1871 = vsel %vm1866, %v1855, %v1857
  %v1872 = vsel %vm1866, %v1853, %v1855
  %v1873 = vsel %vm1866, %v1851, %v1853
  %v1874 = vsel %vm1866, %v1849, %v1851
  %v1875 = vsel %vm1866, %v1847, %v1849
  %v1876 = vsel %vm1866, %v1845, %v1847
  %v1877 = vsel %vm1866, %v1843, %v1845
  %v1878 = vsel %vm1866, %v1841, %v1843
  %v1879 = vsel %vm1866, %v1839, %v1841
  %v1880 = vsel %vm1866, %v1837, %v1839
  %v1881 = vsel %vm1866, %v1835, %v1837
  %v1882 = vsel %vm1866, %v1865, %v1835
  %v1899 = vcombine.low %v1881, %v1880
  %v1900 = vcombine.low %v1879, %v1878
  %v1901 = vcombine.low %v1877, %v1876
  %v1902 = vcombine.low %v1875, %v1874
  %v1904 = vunpack.c.l.s4 1966171168
  %v1905 = vunpack.c.0.s8 %v1904
  %v1906 = vlaneseq
  %v1907 = vshrl.u32 %v1906, 7
  %v1908 = vsub.s32 %v1905, %v1907
  %v1909 = vrot.slane %v1899, %v1908
  %v1911 = vunpack.c.l.s4 1966171168
  %v1912 = vunpack.c.0.s8 %v1911
  %v1913 = vlaneseq
  %v1914 = vshrl.u32 %v1913, 7
  %v1915 = vsub.s32 %v1912, %v1914
  %v1916 = vrot.slane %v1900, %v1915
  %v1918 = vunpack.c.l.s4 1966171168
  %v1919 = vunpack.c.0.s8 %v1918
  %v1920 = vlaneseq
  %v1921 = vshrl.u32 %v1920, 7
  %v1922 = vsub.s32 %v1919, %v1921
  %v1923 = vrot.slane %v1901, %v1922
  %v1925 = vunpack.c.l.s4 1966171168
  %v1926 = vunpack.c.0.s8 %v1925
  %v1927 = vlaneseq
  %v1928 = vshrl.u32 %v1927, 7
  %v1929 = vsub.s32 %v1926, %v1928
  %v1930 = vrot.slane %v1902, %v1929
  %v1931 = vcombine.low %v1909, %v1916
  %v1932 = vcombine.low %v1923, %v1930
  %v1934 = vunpack.c.l.s4 1966171168
  %v1935 = vunpack.c.0.s8 %v1934
  %v1936 = vlaneseq
  %v1937 = vshrl.u32 %v1936, 7
  %v1938 = vsub.s32 %v1935, %v1937
  %v1939 = vrot.slane %v1931, %v1938
  %v1941 = vunpack.c.l.s4 1966171168
  %v1942 = vunpack.c.0.s8 %v1941
  %v1943 = vlaneseq
  %v1944 = vshrl.u32 %v1943, 7
  %v1945 = vsub.s32 %v1942, %v1944
  %v1946 = vrot.slane %v1932, %v1945
  %v1947 = vcombine.low %v1939, %v1946
  %v1948 = vcombine.low %v1873, %v1872
  %v1949 = vcombine.low %v1871, %v1870
  %v1950 = vcombine.low %v1869, %v1868
  %v1951 = vcombine.low %v1867, %v1882
  %v1953 = vunpack.c.l.s4 1966171168
  %v1954 = vunpack.c.0.s8 %v1953
  %v1955 = vlaneseq
  %v1956 = vshrl.u32 %v1955, 7
  %v1957 = vsub.s32 %v1954, %v1956
  %v1958 = vrot.slane %v1948, %v1957
  %v1960 = vunpack.c.l.s4 1966171168
  %v1961 = vunpack.c.0.s8 %v1960
  %v1962 = vlaneseq
  %v1963 = vshrl.u32 %v1962, 7
  %v1964 = vsub.s32 %v1961, %v1963
  %v1965 = vrot.slane %v1949, %v1964
  %v1967 = vunpack.c.l.s4 1966171168
  %v1968 = vunpack.c.0.s8 %v1967
  %v1969 = vlaneseq
  %v1970 = vshrl.u32 %v1969, 7
  %v1971 = vsub.s32 %v1968, %v1970
  %v1972 = vrot.slane %v1950, %v1971
  %v1974 = vunpack.c.l.s4 1966171168
  %v1975 = vunpack.c.0.s8 %v1974
  %v1976 = vlaneseq
  %v1977 = vshrl.u32 %v1976, 7
  %v1978 = vsub.s32 %v1975, %v1977
  %v1979 = vrot.slane %v1951, %v1978
  %v1980 = vcombine.low %v1958, %v1965
  %v1981 = vcombine.low %v1972, %v1979
  %v1983 = vunpack.c.l.s4 1966171168
  %v1984 = vunpack.c.0.s8 %v1983
  %v1985 = vlaneseq
  %v1986 = vshrl.u32 %v1985, 7
  %v1987 = vsub.s32 %v1984, %v1986
  %v1988 = vrot.slane %v1980, %v1987
  %v1990 = vunpack.c.l.s4 1966171168
  %v1991 = vunpack.c.0.s8 %v1990
  %v1992 = vlaneseq
  %v1993 = vshrl.u32 %v1992, 7
  %v1994 = vsub.s32 %v1991, %v1993
  %v1995 = vrot.slane %v1981, %v1994
  %v1996 = vcombine.low %v1988, %v1995
  %s1999 = scalar_lea.vmem [#allocation2], 131
  %2000 = vst [vmem:[%s1999] ss:$8 sm:$0xf] %v1947
  %2001 = vst [vmem:[%s1999] ss:$8 sm:$0xf0] %v1947
  %s2002 = scalar_lea.vmem [#allocation2], 195
  %2003 = vst [vmem:[%s2002] ss:$8 sm:$0xf] %v1996
  %2004 = vst [vmem:[%s2002] ss:$8 sm:$0xf0] %v1996
  %v2005 = vcombine.low %v166, %v165
  %v2006 = vcombine.low %v164, %v163
  %v2007 = vcombine.low %v162, %v161
  %v2008 = vcombine.low %v160, %v159
  %v2010 = vunpack.c.l.s4 1966171168
  %v2011 = vunpack.c.0.s8 %v2010
  %v2012 = vlaneseq
  %v2013 = vshrl.u32 %v2012, 7
  %v2014 = vsub.s32 %v2011, %v2013
  %v2015 = vrot.slane %v2005, %v2014
  %v2017 = vunpack.c.l.s4 1966171168
  %v2018 = vunpack.c.0.s8 %v2017
  %v2019 = vlaneseq
  %v2020 = vshrl.u32 %v2019, 7
  %v2021 = vsub.s32 %v2018, %v2020
  %v2022 = vrot.slane %v2006, %v2021
  %v2024 = vunpack.c.l.s4 1966171168
  %v2025 = vunpack.c.0.s8 %v2024
  %v2026 = vlaneseq
  %v2027 = vshrl.u32 %v2026, 7
  %v2028 = vsub.s32 %v2025, %v2027
  %v2029 = vrot.slane %v2007, %v2028
  %v2031 = vunpack.c.l.s4 1966171168
  %v2032 = vunpack.c.0.s8 %v2031
  %v2033 = vlaneseq
  %v2034 = vshrl.u32 %v2033, 7
  %v2035 = vsub.s32 %v2032, %v2034
  %v2036 = vrot.slane %v2008, %v2035
  %v2037 = vcombine.low %v2015, %v2022
  %v2038 = vcombine.low %v2029, %v2036
  %v2040 = vunpack.c.l.s4 1966171168
  %v2041 = vunpack.c.0.s8 %v2040
  %v2042 = vlaneseq
  %v2043 = vshrl.u32 %v2042, 7
  %v2044 = vsub.s32 %v2041, %v2043
  %v2045 = vrot.slane %v2037, %v2044
  %v2047 = vunpack.c.l.s4 1966171168
  %v2048 = vunpack.c.0.s8 %v2047
  %v2049 = vlaneseq
  %v2050 = vshrl.u32 %v2049, 7
  %v2051 = vsub.s32 %v2048, %v2050
  %v2052 = vrot.slane %v2038, %v2051
  %v2053 = vcombine.low %v2045, %v2052
  %v2054 = vcombine.low %v158, %v157
  %v2055 = vcombine.low %v156, %v155
  %v2056 = vcombine.low %v154, %v153
  %v2057 = vcombine.low %v152, %v167
  %v2059 = vunpack.c.l.s4 1966171168
  %v2060 = vunpack.c.0.s8 %v2059
  %v2061 = vlaneseq
  %v2062 = vshrl.u32 %v2061, 7
  %v2063 = vsub.s32 %v2060, %v2062
  %v2064 = vrot.slane %v2054, %v2063
  %v2066 = vunpack.c.l.s4 1966171168
  %v2067 = vunpack.c.0.s8 %v2066
  %v2068 = vlaneseq
  %v2069 = vshrl.u32 %v2068, 7
  %v2070 = vsub.s32 %v2067, %v2069
  %v2071 = vrot.slane %v2055, %v2070
  %v2073 = vunpack.c.l.s4 1966171168
  %v2074 = vunpack.c.0.s8 %v2073
  %v2075 = vlaneseq
  %v2076 = vshrl.u32 %v2075, 7
  %v2077 = vsub.s32 %v2074, %v2076
  %v2078 = vrot.slane %v2056, %v2077
  %v2080 = vunpack.c.l.s4 1966171168
  %v2081 = vunpack.c.0.s8 %v2080
  %v2082 = vlaneseq
  %v2083 = vshrl.u32 %v2082, 7
  %v2084 = vsub.s32 %v2081, %v2083
  %v2085 = vrot.slane %v2057, %v2084
  %v2086 = vcombine.low %v2064, %v2071
  %v2087 = vcombine.low %v2078, %v2085
  %v2089 = vunpack.c.l.s4 1966171168
  %v2090 = vunpack.c.0.s8 %v2089
  %v2091 = vlaneseq
  %v2092 = vshrl.u32 %v2091, 7
  %v2093 = vsub.s32 %v2090, %v2092
  %v2094 = vrot.slane %v2086, %v2093
  %v2096 = vunpack.c.l.s4 1966171168
  %v2097 = vunpack.c.0.s8 %v2096
  %v2098 = vlaneseq
  %v2099 = vshrl.u32 %v2098, 7
  %v2100 = vsub.s32 %v2097, %v2099
  %v2101 = vrot.slane %v2087, %v2100
  %v2102 = vcombine.low %v2094, %v2101
  %s2105 = scalar_lea.vmem [#allocation2], 132
  %2106 = vst [vmem:[%s2105] ss:$8 sm:$0xf] %v2053
  %2107 = vst [vmem:[%s2105] ss:$8 sm:$0xf0] %v2053
  %s2108 = scalar_lea.vmem [#allocation2], 196
  %2109 = vst [vmem:[%s2108] ss:$8 sm:$0xf] %v2102
  %2110 = vst [vmem:[%s2108] ss:$8 sm:$0xf0] %v2102
  %v2111 = vld [vmem:[#allocation2] sm:$0xff]
  %v2112 = vld [vmem:[#allocation2 + $0x8] sm:$0xff]
  %v2113 = vld [vmem:[#allocation2 + $0x10] sm:$0xff]
  %v2114 = vld [vmem:[#allocation2 + $0x18] sm:$0xff]
  %v2115 = vld [vmem:[#allocation2 + $0x20] sm:$0xff]
  %v2116 = vld [vmem:[#allocation2 + $0x28] sm:$0xff]
  %v2117 = vld [vmem:[#allocation2 + $0x30] sm:$0xff]
  %v2118 = vld [vmem:[#allocation2 + $0x38] sm:$0xff]
  %v2119 = vld [vmem:[#allocation2 + $0x40] sm:$0xff]
  %v2120 = vld [vmem:[#allocation2 + $0x48] sm:$0xff]
  %v2121 = vld [vmem:[#allocation2 + $0x50] sm:$0xff]
  %v2122 = vld [vmem:[#allocation2 + $0x58] sm:$0xff]
  %v2123 = vld [vmem:[#allocation2 + $0x60] sm:$0xff]
  %v2124 = vld [vmem:[#allocation2 + $0x68] sm:$0xff]
  %v2125 = vld [vmem:[#allocation2 + $0x70] sm:$0xff]
  %v2126 = vld [vmem:[#allocation2 + $0x78] sm:$0xff]
  %v2127 = vld [vmem:[#allocation2 + $0x80] sm:$0x1f]
  %v2128 = vld [vmem:[#allocation2 + $0x88] sm:$0x1f]
  %v2129 = vld [vmem:[#allocation2 + $0x90] sm:$0x1f]
  %v2130 = vld [vmem:[#allocation2 + $0x98] sm:$0x1f]
  %v2131 = vld [vmem:[#allocation2 + $0xa0] sm:$0x1f]
  %v2132 = vld [vmem:[#allocation2 + $0xa8] sm:$0x1f]
  %v2133 = vld [vmem:[#allocation2 + $0xb0] sm:$0x1f]
  %v2134 = vld [vmem:[#allocation2 + $0xb8] sm:$0x1f]
  %v2135 = vld [vmem:[#allocation2 + $0xc0] sm:$0x1f]
  %v2136 = vld [vmem:[#allocation2 + $0xc8] sm:$0x1f]
  %v2137 = vld [vmem:[#allocation2 + $0xd0] sm:$0x1f]
  %v2138 = vld [vmem:[#allocation2 + $0xd8] sm:$0x1f]
  %v2139 = vld [vmem:[#allocation2 + $0xe0] sm:$0x1f]
  %v2140 = vld [vmem:[#allocation2 + $0xe8] sm:$0x1f]
  %v2141 = vld [vmem:[#allocation2 + $0xf0] sm:$0x1f]
  %v2142 = vld [vmem:[#allocation2 + $0xf8] sm:$0x1f]
  %2144 = vset.pattern.permute.xlu0 0
  %2145 = vperm.xlu0 %2144, %v34
  %v2146 = vpop.permute.xlu0 %2145
  %vm2148 = vcmask 105472
  %v2150 = vsel %vm2148, %v33, 0
  %vm2152 = vcmask 1044480
  %v2154 = vsel %vm2152, %v2127, 0
  %v2157 = vsel %vm2152, %v2128, 0
  %v2160 = vsel %vm2152, %v2129, 0
  %v2163 = vsel %vm2152, %v2130, 0
  %v2166 = vsel %vm2152, %v2131, 0
  %v2169 = vsel %vm2152, %v2132, 0
  %v2172 = vsel %vm2152, %v2133, 0
  %v2175 = vsel %vm2152, %v2134, 0
  %v2178 = vsel %vm2152, %v2135, 0
  %v2181 = vsel %vm2152, %v2136, 0
  %v2184 = vsel %vm2152, %v2137, 0
  %v2187 = vsel %vm2152, %v2138, 0
  %v2190 = vsel %vm2152, %v2139, 0
  %v2193 = vsel %vm2152, %v2140, 0
  %v2196 = vsel %vm2152, %v2141, 0
  %v2199 = vsel %vm2152, %v2142, 0
  %2201 = vmatprep.subr.mxu0 %v2112
  %2202 = vmatpush1.msra.mxu0 %v2111
  %2203 = vmatprep.subr.mxu0 %v2157
  %2204 = vmatpush1.msra.mxu0 %v2154
  %2205 = vmatprep.subr.mxu0 0.0
  %2206 = vmatpush1.msra.mxu0 0.0
  %2207 = vmatprep.subr.mxu0 0.0
  %2208 = vmatpush1.msra.mxu0 0.0
  %2209 = vmatprep.subr.mxu0 0.0
  %2210 = vmatpush1.msra.mxu0 0.0
  %2211 = vmatprep.subr.mxu0 0.0
  %2212 = vmatpush1.msra.mxu0 0.0
  %2213 = vmatprep.subr.mxu0 0.0
  %2214 = vmatpush1.msra.mxu0 0.0
  %2215 = vmatprep.subr.mxu0 0.0
  %2216 = vmatpush1.msra.mxu0 0.0
  %2217 = vmatprep.subr.mxu0 0.0
  %2218 = vmatpush1.msra.mxu0 0.0
  %2219 = vmatprep.subr.mxu0 0.0
  %2220 = vmatpush1.msra.mxu0 0.0
  %2221 = vmatprep.subr.mxu0 0.0
  %2222 = vmatpush1.msra.mxu0 0.0
  %2223 = vmatprep.subr.mxu0 0.0
  %2224 = vmatpush1.msra.mxu0 0.0
  %2225 = vmatprep.subr.mxu0 0.0
  %2226 = vmatpush1.msra.mxu0 0.0
  %2227 = vmatprep.subr.mxu0 0.0
  %2228 = vmatpush1.msra.mxu0 0.0
  %2229 = vmatprep.subr.mxu0 0.0
  %2230 = vmatpush1.msra.mxu0 0.0
  %2231 = vmatprep.subr.mxu0 0.0
  %2232 = vmatpush1.msra.mxu0 0.0
  %2233 = vmatprep.subr.mxu0 0.0
  %2234 = vmatpush1.msra.mxu0 0.0
  %2235 = vmatprep.subr.mxu0 0.0
  %2236 = vmatpush1.msra.mxu0 0.0
  %2237 = vmatprep.subr.mxu0 0.0
  %2238 = vmatpush1.msra.mxu0 0.0
  %2239 = vmatprep.subr.mxu0 0.0
  %2240 = vmatpush1.msra.mxu0 0.0
  %2241 = vmatprep.subr.mxu0 0.0
  %2242 = vmatpush1.msra.mxu0 0.0
  %2243 = vmatprep.subr.mxu0 0.0
  %2244 = vmatpush1.msra.mxu0 0.0
  %2245 = vmatprep.subr.mxu0 0.0
  %2246 = vmatpush1.msra.mxu0 0.0
  %2247 = vmatprep.subr.mxu0 0.0
  %2248 = vmatpush1.msra.mxu0 0.0
  %2249 = vmatprep.subr.mxu0 0.0
  %2250 = vmatpush1.msra.mxu0 0.0
  %2251 = vmatprep.subr.mxu0 0.0
  %2252 = vmatpush1.msra.mxu0 0.0
  %2253 = vmatprep.subr.mxu0 0.0
  %2254 = vmatpush1.msra.mxu0 0.0
  %2255 = vmatprep.subr.mxu0 0.0
  %2256 = vmatpush1.msra.mxu0 0.0
  %2257 = vmatprep.subr.mxu0 0.0
  %2258 = vmatpush1.msra.mxu0 0.0
  %2259 = vmatprep.subr.mxu0 0.0
  %2260 = vmatpush1.msra.mxu0 0.0
  %2261 = vmatprep.subr.mxu0 0.0
  %2262 = vmatpush1.msra.mxu0 0.0
  %2263 = vmatprep.subr.mxu0 0.0
  %2264 = vmatpush1.msra.mxu0 0.0
  %2265 = vmatprep.mubr.f32.mxu0 0.0
  %2266 = vmatmul.mubr.f32.gmra.mrb[0].mxu0 %v2150
  %v2267 = vpop.f32.mrb[0].mxu0
  %v2268 = vadd.f32 %v2146, %v2267
  %v2269 = vpop.f32.mrb[0].mxu0
  %v2270 = vadd.f32 %v2146, %v2269
  %2271 = vdwg.mxu0
  %2272 = vmatprep.subr.mxu0 %v2114
  %2273 = vmatpush1.msra.mxu0 %v2113
  %2274 = vmatprep.subr.mxu0 %v2163
  %2275 = vmatpush1.msra.mxu0 %v2160
  %2276 = vmatprep.subr.mxu0 0.0
  %2277 = vmatpush1.msra.mxu0 0.0
  %2278 = vmatprep.subr.mxu0 0.0
  %2279 = vmatpush1.msra.mxu0 0.0
  %2280 = vmatprep.subr.mxu0 0.0
  %2281 = vmatpush1.msra.mxu0 0.0
  %2282 = vmatprep.subr.mxu0 0.0
  %2283 = vmatpush1.msra.mxu0 0.0
  %2284 = vmatprep.subr.mxu0 0.0
  %2285 = vmatpush1.msra.mxu0 0.0
  %2286 = vmatprep.subr.mxu0 0.0
  %2287 = vmatpush1.msra.mxu0 0.0
  %2288 = vmatprep.subr.mxu0 0.0
  %2289 = vmatpush1.msra.mxu0 0.0
  %2290 = vmatprep.subr.mxu0 0.0
  %2291 = vmatpush1.msra.mxu0 0.0
  %2292 = vmatprep.subr.mxu0 0.0
  %2293 = vmatpush1.msra.mxu0 0.0
  %2294 = vmatprep.subr.mxu0 0.0
  %2295 = vmatpush1.msra.mxu0 0.0
  %2296 = vmatprep.subr.mxu0 0.0
  %2297 = vmatpush1.msra.mxu0 0.0
  %2298 = vmatprep.subr.mxu0 0.0
  %2299 = vmatpush1.msra.mxu0 0.0
  %2300 = vmatprep.subr.mxu0 0.0
  %2301 = vmatpush1.msra.mxu0 0.0
  %2302 = vmatprep.subr.mxu0 0.0
  %2303 = vmatpush1.msra.mxu0 0.0
  %2304 = vmatprep.subr.mxu0 0.0
  %2305 = vmatpush1.msra.mxu0 0.0
  %2306 = vmatprep.subr.mxu0 0.0
  %2307 = vmatpush1.msra.mxu0 0.0
  %2308 = vmatprep.subr.mxu0 0.0
  %2309 = vmatpush1.msra.mxu0 0.0
  %2310 = vmatprep.subr.mxu0 0.0
  %2311 = vmatpush1.msra.mxu0 0.0
  %2312 = vmatprep.subr.mxu0 0.0
  %2313 = vmatpush1.msra.mxu0 0.0
  %2314 = vmatprep.subr.mxu0 0.0
  %2315 = vmatpush1.msra.mxu0 0.0
  %2316 = vmatprep.subr.mxu0 0.0
  %2317 = vmatpush1.msra.mxu0 0.0
  %2318 = vmatprep.subr.mxu0 0.0
  %2319 = vmatpush1.msra.mxu0 0.0
  %2320 = vmatprep.subr.mxu0 0.0
  %2321 = vmatpush1.msra.mxu0 0.0
  %2322 = vmatprep.subr.mxu0 0.0
  %2323 = vmatpush1.msra.mxu0 0.0
  %2324 = vmatprep.subr.mxu0 0.0
  %2325 = vmatpush1.msra.mxu0 0.0
  %2326 = vmatprep.subr.mxu0 0.0
  %2327 = vmatpush1.msra.mxu0 0.0
  %2328 = vmatprep.subr.mxu0 0.0
  %2329 = vmatpush1.msra.mxu0 0.0
  %2330 = vmatprep.subr.mxu0 0.0
  %2331 = vmatpush1.msra.mxu0 0.0
  %2332 = vmatprep.subr.mxu0 0.0
  %2333 = vmatpush1.msra.mxu0 0.0
  %2334 = vmatprep.subr.mxu0 0.0
  %2335 = vmatpush1.msra.mxu0 0.0
  %2336 = vmatprep.mubr.f32.mxu0 0.0
  %2337 = vmatmul.mubr.f32.gmra.mrb[0].mxu0 %v2150
  %v2338 = vpop.f32.mrb[0].mxu0
  %v2339 = vadd.f32 %v2146, %v2338
  %v2340 = vpop.f32.mrb[0].mxu0
  %v2341 = vadd.f32 %v2146, %v2340
  %2342 = vdwg.mxu0
  %2343 = vmatprep.subr.mxu0 %v2116
  %2344 = vmatpush1.msra.mxu0 %v2115
  %2345 = vmatprep.subr.mxu0 %v2169
  %2346 = vmatpush1.msra.mxu0 %v2166
  %2347 = vmatprep.subr.mxu0 0.0
  %2348 = vmatpush1.msra.mxu0 0.0
  %2349 = vmatprep.subr.mxu0 0.0
  %2350 = vmatpush1.msra.mxu0 0.0
  %2351 = vmatprep.subr.mxu0 0.0
  %2352 = vmatpush1.msra.mxu0 0.0
  %2353 = vmatprep.subr.mxu0 0.0
  %2354 = vmatpush1.msra.mxu0 0.0
  %2355 = vmatprep.subr.mxu0 0.0
  %2356 = vmatpush1.msra.mxu0 0.0
  %2357 = vmatprep.subr.mxu0 0.0
  %2358 = vmatpush1.msra.mxu0 0.0
  %2359 = vmatprep.subr.mxu0 0.0
  %2360 = vmatpush1.msra.mxu0 0.0
  %2361 = vmatprep.subr.mxu0 0.0
  %2362 = vmatpush1.msra.mxu0 0.0
  %2363 = vmatprep.subr.mxu0 0.0
  %2364 = vmatpush1.msra.mxu0 0.0
  %2365 = vmatprep.subr.mxu0 0.0
  %2366 = vmatpush1.msra.mxu0 0.0
  %2367 = vmatprep.subr.mxu0 0.0
  %2368 = vmatpush1.msra.mxu0 0.0
  %2369 = vmatprep.subr.mxu0 0.0
  %2370 = vmatpush1.msra.mxu0 0.0
  %2371 = vmatprep.subr.mxu0 0.0
  %2372 = vmatpush1.msra.mxu0 0.0
  %2373 = vmatprep.subr.mxu0 0.0
  %2374 = vmatpush1.msra.mxu0 0.0
  %2375 = vmatprep.subr.mxu0 0.0
  %2376 = vmatpush1.msra.mxu0 0.0
  %2377 = vmatprep.subr.mxu0 0.0
  %2378 = vmatpush1.msra.mxu0 0.0
  %2379 = vmatprep.subr.mxu0 0.0
  %2380 = vmatpush1.msra.mxu0 0.0
  %2381 = vmatprep.subr.mxu0 0.0
  %2382 = vmatpush1.msra.mxu0 0.0
  %2383 = vmatprep.subr.mxu0 0.0
  %2384 = vmatpush1.msra.mxu0 0.0
  %2385 = vmatprep.subr.mxu0 0.0
  %2386 = vmatpush1.msra.mxu0 0.0
  %2387 = vmatprep.subr.mxu0 0.0
  %2388 = vmatpush1.msra.mxu0 0.0
  %2389 = vmatprep.subr.mxu0 0.0
  %2390 = vmatpush1.msra.mxu0 0.0
  %2391 = vmatprep.subr.mxu0 0.0
  %2392 = vmatpush1.msra.mxu0 0.0
  %2393 = vmatprep.subr.mxu0 0.0
  %2394 = vmatpush1.msra.mxu0 0.0
  %2395 = vmatprep.subr.mxu0 0.0
  %2396 = vmatpush1.msra.mxu0 0.0
  %2397 = vmatprep.subr.mxu0 0.0
  %2398 = vmatpush1.msra.mxu0 0.0
  %2399 = vmatprep.subr.mxu0 0.0
  %2400 = vmatpush1.msra.mxu0 0.0
  %2401 = vmatprep.subr.mxu0 0.0
  %2402 = vmatpush1.msra.mxu0 0.0
  %2403 = vmatprep.subr.mxu0 0.0
  %2404 = vmatpush1.msra.mxu0 0.0
  %2405 = vmatprep.subr.mxu0 0.0
  %2406 = vmatpush1.msra.mxu0 0.0
  %2407 = vmatprep.mubr.f32.mxu0 0.0
  %2408 = vmatmul.mubr.f32.gmra.mrb[0].mxu0 %v2150
  %v2409 = vpop.f32.mrb[0].mxu0
  %v2410 = vadd.f32 %v2146, %v2409
  %v2411 = vpop.f32.mrb[0].mxu0
  %v2412 = vadd.f32 %v2146, %v2411
  %2413 = vdwg.mxu0
  %2414 = vmatprep.subr.mxu0 %v2118
  %2415 = vmatpush1.msra.mxu0 %v2117
  %2416 = vmatprep.subr.mxu0 %v2175
  %2417 = vmatpush1.msra.mxu0 %v2172
  %2418 = vmatprep.subr.mxu0 0.0
  %2419 = vmatpush1.msra.mxu0 0.0
  %2420 = vmatprep.subr.mxu0 0.0
  %2421 = vmatpush1.msra.mxu0 0.0
  %2422 = vmatprep.subr.mxu0 0.0
  %2423 = vmatpush1.msra.mxu0 0.0
  %2424 = vmatprep.subr.mxu0 0.0
  %2425 = vmatpush1.msra.mxu0 0.0
  %2426 = vmatprep.subr.mxu0 0.0
  %2427 = vmatpush1.msra.mxu0 0.0
  %2428 = vmatprep.subr.mxu0 0.0
  %2429 = vmatpush1.msra.mxu0 0.0
  %2430 = vmatprep.subr.mxu0 0.0
  %2431 = vmatpush1.msra.mxu0 0.0
  %2432 = vmatprep.subr.mxu0 0.0
  %2433 = vmatpush1.msra.mxu0 0.0
  %2434 = vmatprep.subr.mxu0 0.0
  %2435 = vmatpush1.msra.mxu0 0.0
  %2436 = vmatprep.subr.mxu0 0.0
  %2437 = vmatpush1.msra.mxu0 0.0
  %2438 = vmatprep.subr.mxu0 0.0
  %2439 = vmatpush1.msra.mxu0 0.0
  %2440 = vmatprep.subr.mxu0 0.0
  %2441 = vmatpush1.msra.mxu0 0.0
  %2442 = vmatprep.subr.mxu0 0.0
  %2443 = vmatpush1.msra.mxu0 0.0
  %2444 = vmatprep.subr.mxu0 0.0
  %2445 = vmatpush1.msra.mxu0 0.0
  %2446 = vmatprep.subr.mxu0 0.0
  %2447 = vmatpush1.msra.mxu0 0.0
  %2448 = vmatprep.subr.mxu0 0.0
  %2449 = vmatpush1.msra.mxu0 0.0
  %2450 = vmatprep.subr.mxu0 0.0
  %2451 = vmatpush1.msra.mxu0 0.0
  %2452 = vmatprep.subr.mxu0 0.0
  %2453 = vmatpush1.msra.mxu0 0.0
  %2454 = vmatprep.subr.mxu0 0.0
  %2455 = vmatpush1.msra.mxu0 0.0
  %2456 = vmatprep.subr.mxu0 0.0
  %2457 = vmatpush1.msra.mxu0 0.0
  %2458 = vmatprep.subr.mxu0 0.0
  %2459 = vmatpush1.msra.mxu0 0.0
  %2460 = vmatprep.subr.mxu0 0.0
  %2461 = vmatpush1.msra.mxu0 0.0
  %2462 = vmatprep.subr.mxu0 0.0
  %2463 = vmatpush1.msra.mxu0 0.0
  %2464 = vmatprep.subr.mxu0 0.0
  %2465 = vmatpush1.msra.mxu0 0.0
  %2466 = vmatprep.subr.mxu0 0.0
  %2467 = vmatpush1.msra.mxu0 0.0
  %2468 = vmatprep.subr.mxu0 0.0
  %2469 = vmatpush1.msra.mxu0 0.0
  %2470 = vmatprep.subr.mxu0 0.0
  %2471 = vmatpush1.msra.mxu0 0.0
  %2472 = vmatprep.subr.mxu0 0.0
  %2473 = vmatpush1.msra.mxu0 0.0
  %2474 = vmatprep.subr.mxu0 0.0
  %2475 = vmatpush1.msra.mxu0 0.0
  %2476 = vmatprep.subr.mxu0 0.0
  %2477 = vmatpush1.msra.mxu0 0.0
  %2478 = vmatprep.mubr.f32.mxu0 0.0
  %2479 = vmatmul.mubr.f32.gmra.mrb[0].mxu0 %v2150
  %v2480 = vpop.f32.mrb[0].mxu0
  %v2481 = vadd.f32 %v2146, %v2480
  %v2482 = vpop.f32.mrb[0].mxu0
  %v2483 = vadd.f32 %v2146, %v2482
  %2484 = vdwg.mxu0
  %2485 = vmatprep.subr.mxu0 %v2120
  %2486 = vmatpush1.msra.mxu0 %v2119
  %2487 = vmatprep.subr.mxu0 %v2181
  %2488 = vmatpush1.msra.mxu0 %v2178
  %2489 = vmatprep.subr.mxu0 0.0
  %2490 = vmatpush1.msra.mxu0 0.0
  %2491 = vmatprep.subr.mxu0 0.0
  %2492 = vmatpush1.msra.mxu0 0.0
  %2493 = vmatprep.subr.mxu0 0.0
  %2494 = vmatpush1.msra.mxu0 0.0
  %2495 = vmatprep.subr.mxu0 0.0
  %2496 = vmatpush1.msra.mxu0 0.0
  %2497 = vmatprep.subr.mxu0 0.0
  %2498 = vmatpush1.msra.mxu0 0.0
  %2499 = vmatprep.subr.mxu0 0.0
  %2500 = vmatpush1.msra.mxu0 0.0
  %2501 = vmatprep.subr.mxu0 0.0
  %2502 = vmatpush1.msra.mxu0 0.0
  %2503 = vmatprep.subr.mxu0 0.0
  %2504 = vmatpush1.msra.mxu0 0.0
  %2505 = vmatprep.subr.mxu0 0.0
  %2506 = vmatpush1.msra.mxu0 0.0
  %2507 = vmatprep.subr.mxu0 0.0
  %2508 = vmatpush1.msra.mxu0 0.0
  %2509 = vmatprep.subr.mxu0 0.0
  %2510 = vmatpush1.msra.mxu0 0.0
  %2511 = vmatprep.subr.mxu0 0.0
  %2512 = vmatpush1.msra.mxu0 0.0
  %2513 = vmatprep.subr.mxu0 0.0
  %2514 = vmatpush1.msra.mxu0 0.0
  %2515 = vmatprep.subr.mxu0 0.0
  %2516 = vmatpush1.msra.mxu0 0.0
  %2517 = vmatprep.subr.mxu0 0.0
  %2518 = vmatpush1.msra.mxu0 0.0
  %2519 = vmatprep.subr.mxu0 0.0
  %2520 = vmatpush1.msra.mxu0 0.0
  %2521 = vmatprep.subr.mxu0 0.0
  %2522 = vmatpush1.msra.mxu0 0.0
  %2523 = vmatprep.subr.mxu0 0.0
  %2524 = vmatpush1.msra.mxu0 0.0
  %2525 = vmatprep.subr.mxu0 0.0
  %2526 = vmatpush1.msra.mxu0 0.0
  %2527 = vmatprep.subr.mxu0 0.0
  %2528 = vmatpush1.msra.mxu0 0.0
  %2529 = vmatprep.subr.mxu0 0.0
  %2530 = vmatpush1.msra.mxu0 0.0
  %2531 = vmatprep.subr.mxu0 0.0
  %2532 = vmatpush1.msra.mxu0 0.0
  %2533 = vmatprep.subr.mxu0 0.0
  %2534 = vmatpush1.msra.mxu0 0.0
  %2535 = vmatprep.subr.mxu0 0.0
  %2536 = vmatpush1.msra.mxu0 0.0
  %2537 = vmatprep.subr.mxu0 0.0
  %2538 = vmatpush1.msra.mxu0 0.0
  %2539 = vmatprep.subr.mxu0 0.0
  %2540 = vmatpush1.msra.mxu0 0.0
  %2541 = vmatprep.subr.mxu0 0.0
  %2542 = vmatpush1.msra.mxu0 0.0
  %2543 = vmatprep.subr.mxu0 0.0
  %2544 = vmatpush1.msra.mxu0 0.0
  %2545 = vmatprep.subr.mxu0 0.0
  %2546 = vmatpush1.msra.mxu0 0.0
  %2547 = vmatprep.subr.mxu0 0.0
  %2548 = vmatpush1.msra.mxu0 0.0
  %2549 = vmatprep.mubr.f32.mxu0 0.0
  %2550 = vmatmul.mubr.f32.gmra.mrb[0].mxu0 %v2150
  %v2551 = vpop.f32.mrb[0].mxu0
  %v2552 = vadd.f32 %v2146, %v2551
  %v2553 = vpop.f32.mrb[0].mxu0
  %v2554 = vadd.f32 %v2146, %v2553
  %2555 = vdwg.mxu0
  %2556 = vmatprep.subr.mxu0 %v2122
  %2557 = vmatpush1.msra.mxu0 %v2121
  %2558 = vmatprep.subr.mxu0 %v2187
  %2559 = vmatpush1.msra.mxu0 %v2184
  %2560 = vmatprep.subr.mxu0 0.0
  %2561 = vmatpush1.msra.mxu0 0.0
  %2562 = vmatprep.subr.mxu0 0.0
  %2563 = vmatpush1.msra.mxu0 0.0
  %2564 = vmatprep.subr.mxu0 0.0
  %2565 = vmatpush1.msra.mxu0 0.0
  %2566 = vmatprep.subr.mxu0 0.0
  %2567 = vmatpush1.msra.mxu0 0.0
  %2568 = vmatprep.subr.mxu0 0.0
  %2569 = vmatpush1.msra.mxu0 0.0
  %2570 = vmatprep.subr.mxu0 0.0
  %2571 = vmatpush1.msra.mxu0 0.0
  %2572 = vmatprep.subr.mxu0 0.0
  %2573 = vmatpush1.msra.mxu0 0.0
  %2574 = vmatprep.subr.mxu0 0.0
  %2575 = vmatpush1.msra.mxu0 0.0
  %2576 = vmatprep.subr.mxu0 0.0
  %2577 = vmatpush1.msra.mxu0 0.0
  %2578 = vmatprep.subr.mxu0 0.0
  %2579 = vmatpush1.msra.mxu0 0.0
  %2580 = vmatprep.subr.mxu0 0.0
  %2581 = vmatpush1.msra.mxu0 0.0
  %2582 = vmatprep.subr.mxu0 0.0
  %2583 = vmatpush1.msra.mxu0 0.0
  %2584 = vmatprep.subr.mxu0 0.0
  %2585 = vmatpush1.msra.mxu0 0.0
  %2586 = vmatprep.subr.mxu0 0.0
  %2587 = vmatpush1.msra.mxu0 0.0
  %2588 = vmatprep.subr.mxu0 0.0
  %2589 = vmatpush1.msra.mxu0 0.0
  %2590 = vmatprep.subr.mxu0 0.0
  %2591 = vmatpush1.msra.mxu0 0.0
  %2592 = vmatprep.subr.mxu0 0.0
  %2593 = vmatpush1.msra.mxu0 0.0
  %2594 = vmatprep.subr.mxu0 0.0
  %2595 = vmatpush1.msra.mxu0 0.0
  %2596 = vmatprep.subr.mxu0 0.0
  %2597 = vmatpush1.msra.mxu0 0.0
  %2598 = vmatprep.subr.mxu0 0.0
  %2599 = vmatpush1.msra.mxu0 0.0
  %2600 = vmatprep.subr.mxu0 0.0
  %2601 = vmatpush1.msra.mxu0 0.0
  %2602 = vmatprep.subr.mxu0 0.0
  %2603 = vmatpush1.msra.mxu0 0.0
  %2604 = vmatprep.subr.mxu0 0.0
  %2605 = vmatpush1.msra.mxu0 0.0
  %2606 = vmatprep.subr.mxu0 0.0
  %2607 = vmatpush1.msra.mxu0 0.0
  %2608 = vmatprep.subr.mxu0 0.0
  %2609 = vmatpush1.msra.mxu0 0.0
  %2610 = vmatprep.subr.mxu0 0.0
  %2611 = vmatpush1.msra.mxu0 0.0
  %2612 = vmatprep.subr.mxu0 0.0
  %2613 = vmatpush1.msra.mxu0 0.0
  %2614 = vmatprep.subr.mxu0 0.0
  %2615 = vmatpush1.msra.mxu0 0.0
  %2616 = vmatprep.subr.mxu0 0.0
  %2617 = vmatpush1.msra.mxu0 0.0
  %2618 = vmatprep.subr.mxu0 0.0
  %2619 = vmatpush1.msra.mxu0 0.0
  %2620 = vmatprep.mubr.f32.mxu0 0.0
  %2621 = vmatmul.mubr.f32.gmra.mrb[0].mxu0 %v2150
  %v2622 = vpop.f32.mrb[0].mxu0
  %v2623 = vadd.f32 %v2146, %v2622
  %v2624 = vpop.f32.mrb[0].mxu0
  %v2625 = vadd.f32 %v2146, %v2624
  %2626 = vdwg.mxu0
  %2627 = vmatprep.subr.mxu0 %v2124
  %2628 = vmatpush1.msra.mxu0 %v2123
  %2629 = vmatprep.subr.mxu0 %v2193
  %2630 = vmatpush1.msra.mxu0 %v2190
  %2631 = vmatprep.subr.mxu0 0.0
  %2632 = vmatpush1.msra.mxu0 0.0
  %2633 = vmatprep.subr.mxu0 0.0
  %2634 = vmatpush1.msra.mxu0 0.0
  %2635 = vmatprep.subr.mxu0 0.0
  %2636 = vmatpush1.msra.mxu0 0.0
  %2637 = vmatprep.subr.mxu0 0.0
  %2638 = vmatpush1.msra.mxu0 0.0
  %2639 = vmatprep.subr.mxu0 0.0
  %2640 = vmatpush1.msra.mxu0 0.0
  %2641 = vmatprep.subr.mxu0 0.0
  %2642 = vmatpush1.msra.mxu0 0.0
  %2643 = vmatprep.subr.mxu0 0.0
  %2644 = vmatpush1.msra.mxu0 0.0
  %2645 = vmatprep.subr.mxu0 0.0
  %2646 = vmatpush1.msra.mxu0 0.0
  %2647 = vmatprep.subr.mxu0 0.0
  %2648 = vmatpush1.msra.mxu0 0.0
  %2649 = vmatprep.subr.mxu0 0.0
  %2650 = vmatpush1.msra.mxu0 0.0
  %2651 = vmatprep.subr.mxu0 0.0
  %2652 = vmatpush1.msra.mxu0 0.0
  %2653 = vmatprep.subr.mxu0 0.0
  %2654 = vmatpush1.msra.mxu0 0.0
  %2655 = vmatprep.subr.mxu0 0.0
  %2656 = vmatpush1.msra.mxu0 0.0
  %2657 = vmatprep.subr.mxu0 0.0
  %2658 = vmatpush1.msra.mxu0 0.0
  %2659 = vmatprep.subr.mxu0 0.0
  %2660 = vmatpush1.msra.mxu0 0.0
  %2661 = vmatprep.subr.mxu0 0.0
  %2662 = vmatpush1.msra.mxu0 0.0
  %2663 = vmatprep.subr.mxu0 0.0
  %2664 = vmatpush1.msra.mxu0 0.0
  %2665 = vmatprep.subr.mxu0 0.0
  %2666 = vmatpush1.msra.mxu0 0.0
  %2667 = vmatprep.subr.mxu0 0.0
  %2668 = vmatpush1.msra.mxu0 0.0
  %2669 = vmatprep.subr.mxu0 0.0
  %2670 = vmatpush1.msra.mxu0 0.0
  %2671 = vmatprep.subr.mxu0 0.0
  %2672 = vmatpush1.msra.mxu0 0.0
  %2673 = vmatprep.subr.mxu0 0.0
  %2674 = vmatpush1.msra.mxu0 0.0
  %2675 = vmatprep.subr.mxu0 0.0
  %2676 = vmatpush1.msra.mxu0 0.0
  %2677 = vmatprep.subr.mxu0 0.0
  %2678 = vmatpush1.msra.mxu0 0.0
  %2679 = vmatprep.subr.mxu0 0.0
  %2680 = vmatpush1.msra.mxu0 0.0
  %2681 = vmatprep.subr.mxu0 0.0
  %2682 = vmatpush1.msra.mxu0 0.0
  %2683 = vmatprep.subr.mxu0 0.0
  %2684 = vmatpush1.msra.mxu0 0.0
  %2685 = vmatprep.subr.mxu0 0.0
  %2686 = vmatpush1.msra.mxu0 0.0
  %2687 = vmatprep.subr.mxu0 0.0
  %2688 = vmatpush1.msra.mxu0 0.0
  %2689 = vmatprep.subr.mxu0 0.0
  %2690 = vmatpush1.msra.mxu0 0.0
  %2691 = vmatprep.mubr.f32.mxu0 0.0
  %2692 = vmatmul.mubr.f32.gmra.mrb[0].mxu0 %v2150
  %v2693 = vpop.f32.mrb[0].mxu0
  %v2694 = vadd.f32 %v2146, %v2693
  %v2695 = vpop.f32.mrb[0].mxu0
  %v2696 = vadd.f32 %v2146, %v2695
  %2697 = vdwg.mxu0
  %2698 = vmatprep.subr.mxu0 %v2126
  %2699 = vmatpush1.msra.mxu0 %v2125
  %2700 = vmatprep.subr.mxu0 %v2199
  %2701 = vmatpush1.msra.mxu0 %v2196
  %2702 = vmatprep.subr.mxu0 0.0
  %2703 = vmatpush1.msra.mxu0 0.0
  %2704 = vmatprep.subr.mxu0 0.0
  %2705 = vmatpush1.msra.mxu0 0.0
  %2706 = vmatprep.subr.mxu0 0.0
  %2707 = vmatpush1.msra.mxu0 0.0
  %2708 = vmatprep.subr.mxu0 0.0
  %2709 = vmatpush1.msra.mxu0 0.0
  %2710 = vmatprep.subr.mxu0 0.0
  %2711 = vmatpush1.msra.mxu0 0.0
  %2712 = vmatprep.subr.mxu0 0.0
  %2713 = vmatpush1.msra.mxu0 0.0
  %2714 = vmatprep.subr.mxu0 0.0
  %2715 = vmatpush1.msra.mxu0 0.0
  %2716 = vmatprep.subr.mxu0 0.0
  %2717 = vmatpush1.msra.mxu0 0.0
  %2718 = vmatprep.subr.mxu0 0.0
  %2719 = vmatpush1.msra.mxu0 0.0
  %2720 = vmatprep.subr.mxu0 0.0
  %2721 = vmatpush1.msra.mxu0 0.0
  %2722 = vmatprep.subr.mxu0 0.0
  %2723 = vmatpush1.msra.mxu0 0.0
  %2724 = vmatprep.subr.mxu0 0.0
  %2725 = vmatpush1.msra.mxu0 0.0
  %2726 = vmatprep.subr.mxu0 0.0
  %2727 = vmatpush1.msra.mxu0 0.0
  %2728 = vmatprep.subr.mxu0 0.0
  %2729 = vmatpush1.msra.mxu0 0.0
  %2730 = vmatprep.subr.mxu0 0.0
  %2731 = vmatpush1.msra.mxu0 0.0
  %2732 = vmatprep.subr.mxu0 0.0
  %2733 = vmatpush1.msra.mxu0 0.0
  %2734 = vmatprep.subr.mxu0 0.0
  %2735 = vmatpush1.msra.mxu0 0.0
  %2736 = vmatprep.subr.mxu0 0.0
  %2737 = vmatpush1.msra.mxu0 0.0
  %2738 = vmatprep.subr.mxu0 0.0
  %2739 = vmatpush1.msra.mxu0 0.0
  %2740 = vmatprep.subr.mxu0 0.0
  %2741 = vmatpush1.msra.mxu0 0.0
  %2742 = vmatprep.subr.mxu0 0.0
  %2743 = vmatpush1.msra.mxu0 0.0
  %2744 = vmatprep.subr.mxu0 0.0
  %2745 = vmatpush1.msra.mxu0 0.0
  %2746 = vmatprep.subr.mxu0 0.0
  %2747 = vmatpush1.msra.mxu0 0.0
  %2748 = vmatprep.subr.mxu0 0.0
  %2749 = vmatpush1.msra.mxu0 0.0
  %2750 = vmatprep.subr.mxu0 0.0
  %2751 = vmatpush1.msra.mxu0 0.0
  %2752 = vmatprep.subr.mxu0 0.0
  %2753 = vmatpush1.msra.mxu0 0.0
  %2754 = vmatprep.subr.mxu0 0.0
  %2755 = vmatpush1.msra.mxu0 0.0
  %2756 = vmatprep.subr.mxu0 0.0
  %2757 = vmatpush1.msra.mxu0 0.0
  %2758 = vmatprep.subr.mxu0 0.0
  %2759 = vmatpush1.msra.mxu0 0.0
  %2760 = vmatprep.subr.mxu0 0.0
  %2761 = vmatpush1.msra.mxu0 0.0
  %2762 = vmatprep.mubr.f32.mxu0 0.0
  %2763 = vmatmul.mubr.f32.gmra.mrb[0].mxu0 %v2150
  %v2764 = vpop.f32.mrb[0].mxu0
  %v2765 = vadd.f32 %v2146, %v2764
  %v2766 = vpop.f32.mrb[0].mxu0
  %v2767 = vadd.f32 %v2146, %v2766
  %2768 = vdwg.mxu0
  %v2771 = vlaneseq
  %v2772 = vshrl.u32 %v2771, 7
  %v2773 = vsub.s32 0, %v2772
  %v2774 = vrot.slane %v29, %v2773
  %v2775 = vlaneseq
  %v2776 = vshrl.u32 %v2775, 7
  %v2777 = vsub.s32 1, %v2776
  %v2778 = vrot.slane %v29, %v2777
  %v2779 = vlaneseq
  %v2780 = vshrl.u32 %v2779, 7
  %v2781 = vsub.s32 2, %v2780
  %v2782 = vrot.slane %v29, %v2781
  %v2783 = vlaneseq
  %v2784 = vshrl.u32 %v2783, 7
  %v2785 = vsub.s32 3, %v2784
  %v2786 = vrot.slane %v29, %v2785
  %v2787 = vlaneseq
  %v2788 = vshrl.u32 %v2787, 7
  %v2789 = vsub.s32 4, %v2788
  %v2790 = vrot.slane %v29, %v2789
  %v2791 = vlaneseq
  %v2792 = vshrl.u32 %v2791, 7
  %v2793 = vsub.s32 5, %v2792
  %v2794 = vrot.slane %v29, %v2793
  %v2795 = vlaneseq
  %v2796 = vshrl.u32 %v2795, 7
  %v2797 = vsub.s32 6, %v2796
  %v2798 = vrot.slane %v29, %v2797
  %v2799 = vlaneseq
  %v2800 = vshrl.u32 %v2799, 7
  %v2801 = vsub.s32 7, %v2800
  %v2802 = vrot.slane %v29, %v2801
  %v2803 = vlaneseq
  %v2804 = vshrl.u32 %v2803, 7
  %v2805 = vsub.s32 0, %v2804
  %v2806 = vrot.slane %v30, %v2805
  %v2807 = vlaneseq
  %v2808 = vshrl.u32 %v2807, 7
  %v2809 = vsub.s32 1, %v2808
  %v2810 = vrot.slane %v30, %v2809
  %v2811 = vlaneseq
  %v2812 = vshrl.u32 %v2811, 7
  %v2813 = vsub.s32 2, %v2812
  %v2814 = vrot.slane %v30, %v2813
  %v2815 = vlaneseq
  %v2816 = vshrl.u32 %v2815, 7
  %v2817 = vsub.s32 3, %v2816
  %v2818 = vrot.slane %v30, %v2817
  %v2819 = vlaneseq
  %v2820 = vshrl.u32 %v2819, 7
  %v2821 = vsub.s32 4, %v2820
  %v2822 = vrot.slane %v30, %v2821
  %v2823 = vlaneseq
  %v2824 = vshrl.u32 %v2823, 7
  %v2825 = vsub.s32 5, %v2824
  %v2826 = vrot.slane %v30, %v2825
  %v2827 = vlaneseq
  %v2828 = vshrl.u32 %v2827, 7
  %v2829 = vsub.s32 6, %v2828
  %v2830 = vrot.slane %v30, %v2829
  %v2831 = vlaneseq
  %v2832 = vshrl.u32 %v2831, 7
  %v2833 = vsub.s32 7, %v2832
  %v2834 = vrot.slane %v30, %v2833
  %v2851 = vmul.f32 %v2268, %v2774
  %v2852 = vmul.f32 %v2270, %v2778
  %v2853 = vmul.f32 %v2339, %v2782
  %v2854 = vmul.f32 %v2341, %v2786
  %v2855 = vmul.f32 %v2410, %v2790
  %v2856 = vmul.f32 %v2412, %v2794
  %v2857 = vmul.f32 %v2481, %v2798
  %v2858 = vmul.f32 %v2483, %v2802
  %v2859 = vmul.f32 %v2552, %v2806
  %v2860 = vmul.f32 %v2554, %v2810
  %v2861 = vmul.f32 %v2623, %v2814
  %v2862 = vmul.f32 %v2625, %v2818
  %v2863 = vmul.f32 %v2694, %v2822
  %v2864 = vmul.f32 %v2696, %v2826
  %v2865 = vmul.f32 %v2765, %v2830
  %v2866 = vmul.f32 %v2767, %v2834
  %v2867 = vld [vmem:[%s4] sm:$0xff]
  %v2868 = vld [vmem:[%s4 + $0x8] sm:$0xff]
  %v2869 = vld [vmem:[%s5] sm:$0xff]
  %v2870 = vld [vmem:[%s5 + $0x8] sm:$0xff]
  %2871 = vrot.lane.b32.xlu0 %v2851, 64
  %v2872 = vpop.permute.xlu0 %2871
  %2873 = vrot.lane.b32.xlu0 %v2852, 64
  %v2874 = vpop.permute.xlu0 %2873
  %2875 = vrot.lane.b32.xlu0 %v2853, 64
  %v2876 = vpop.permute.xlu0 %2875
  %2877 = vrot.lane.b32.xlu0 %v2854, 64
  %v2878 = vpop.permute.xlu0 %2877
  %2879 = vrot.lane.b32.xlu0 %v2855, 64
  %v2880 = vpop.permute.xlu0 %2879
  %2881 = vrot.lane.b32.xlu0 %v2856, 64
  %v2882 = vpop.permute.xlu0 %2881
  %2883 = vrot.lane.b32.xlu0 %v2857, 64
  %v2884 = vpop.permute.xlu0 %2883
  %2885 = vrot.lane.b32.xlu0 %v2858, 64
  %v2886 = vpop.permute.xlu0 %2885
  %2887 = vrot.lane.b32.xlu0 %v2859, 64
  %v2888 = vpop.permute.xlu0 %2887
  %2889 = vrot.lane.b32.xlu0 %v2860, 64
  %v2890 = vpop.permute.xlu0 %2889
  %2891 = vrot.lane.b32.xlu0 %v2861, 64
  %v2892 = vpop.permute.xlu0 %2891
  %2893 = vrot.lane.b32.xlu0 %v2862, 64
  %v2894 = vpop.permute.xlu0 %2893
  %2895 = vrot.lane.b32.xlu0 %v2863, 64
  %v2896 = vpop.permute.xlu0 %2895
  %2897 = vrot.lane.b32.xlu0 %v2864, 64
  %v2898 = vpop.permute.xlu0 %2897
  %2899 = vrot.lane.b32.xlu0 %v2865, 64
  %v2900 = vpop.permute.xlu0 %2899
  %2901 = vrot.lane.b32.xlu0 %v2866, 64
  %v2902 = vpop.permute.xlu0 %2901
  %v2903 = vsel %vm151, %v2900, %v2902
  %v2904 = vsel %vm151, %v2898, %v2900
  %v2905 = vsel %vm151, %v2896, %v2898
  %v2906 = vsel %vm151, %v2894, %v2896
  %v2907 = vsel %vm151, %v2892, %v2894
  %v2908 = vsel %vm151, %v2890, %v2892
  %v2909 = vsel %vm151, %v2888, %v2890
  %v2910 = vsel %vm151, %v2886, %v2888
  %v2911 = vsel %vm151, %v2884, %v2886
  %v2912 = vsel %vm151, %v2882, %v2884
  %v2913 = vsel %vm151, %v2880, %v2882
  %v2914 = vsel %vm151, %v2878, %v2880
  %v2915 = vsel %vm151, %v2876, %v2878
  %v2916 = vsel %vm151, %v2874, %v2876
  %v2917 = vsel %vm151, %v2872, %v2874
  %v2918 = vsel %vm151, %v2902, %v2872
  %2919 = vst [vmem:[#allocation2] sm:$0xff] %v2918
  %2920 = vst [vmem:[#allocation2 + $0x8] sm:$0xff] %v2917
  %2921 = vst [vmem:[#allocation2 + $0x10] sm:$0xff] %v2916
  %2922 = vst [vmem:[#allocation2 + $0x18] sm:$0xff] %v2915
  %2923 = vst [vmem:[#allocation2 + $0x20] sm:$0xff] %v2914
  %2924 = vst [vmem:[#allocation2 + $0x28] sm:$0xff] %v2913
  %2925 = vst [vmem:[#allocation2 + $0x30] sm:$0xff] %v2912
  %2926 = vst [vmem:[#allocation2 + $0x38] sm:$0xff] %v2911
  %2927 = vst [vmem:[#allocation2 + $0x40] sm:$0xff] %v2910
  %2928 = vst [vmem:[#allocation2 + $0x48] sm:$0xff] %v2909
  %2929 = vst [vmem:[#allocation2 + $0x50] sm:$0xff] %v2908
  %2930 = vst [vmem:[#allocation2 + $0x58] sm:$0xff] %v2907
  %2931 = vst [vmem:[#allocation2 + $0x60] sm:$0xff] %v2906
  %2932 = vst [vmem:[#allocation2 + $0x68] sm:$0xff] %v2905
  %2933 = vst [vmem:[#allocation2 + $0x70] sm:$0xff] %v2904
  %2934 = vst [vmem:[#allocation2 + $0x78] sm:$0xff] %v2903
  %2935 = vrot.lane.b32.xlu0 %v2851, 33
  %v2936 = vpop.permute.xlu0 %2935
  %2937 = vrot.lane.b32.xlu0 %v2852, 33
  %v2938 = vpop.permute.xlu0 %2937
  %2939 = vrot.lane.b32.xlu0 %v2853, 33
  %v2940 = vpop.permute.xlu0 %2939
  %2941 = vrot.lane.b32.xlu0 %v2854, 33
  %v2942 = vpop.permute.xlu0 %2941
  %2943 = vrot.lane.b32.xlu0 %v2855, 33
  %v2944 = vpop.permute.xlu0 %2943
  %2945 = vrot.lane.b32.xlu0 %v2856, 33
  %v2946 = vpop.permute.xlu0 %2945
  %2947 = vrot.lane.b32.xlu0 %v2857, 33
  %v2948 = vpop.permute.xlu0 %2947
  %2949 = vrot.lane.b32.xlu0 %v2858, 33
  %v2950 = vpop.permute.xlu0 %2949
  %2951 = vrot.lane.b32.xlu0 %v2859, 33
  %v2952 = vpop.permute.xlu0 %2951
  %2953 = vrot.lane.b32.xlu0 %v2860, 33
  %v2954 = vpop.permute.xlu0 %2953
  %2955 = vrot.lane.b32.xlu0 %v2861, 33
  %v2956 = vpop.permute.xlu0 %2955
  %2957 = vrot.lane.b32.xlu0 %v2862, 33
  %v2958 = vpop.permute.xlu0 %2957
  %2959 = vrot.lane.b32.xlu0 %v2863, 33
  %v2960 = vpop.permute.xlu0 %2959
  %2961 = vrot.lane.b32.xlu0 %v2864, 33
  %v2962 = vpop.permute.xlu0 %2961
  %2963 = vrot.lane.b32.xlu0 %v2865, 33
  %v2964 = vpop.permute.xlu0 %2963
  %2965 = vrot.lane.b32.xlu0 %v2866, 33
  %v2966 = vpop.permute.xlu0 %2965
  %v2967 = vsel %vm321, %v2964, %v2966
  %v2968 = vsel %vm321, %v2962, %v2964
  %v2969 = vsel %vm321, %v2960, %v2962
  %v2970 = vsel %vm321, %v2958, %v2960
  %v2971 = vsel %vm321, %v2956, %v2958
  %v2972 = vsel %vm321, %v2954, %v2956
  %v2973 = vsel %vm321, %v2952, %v2954
  %v2974 = vsel %vm321, %v2950, %v2952
  %v2975 = vsel %vm321, %v2948, %v2950
  %v2976 = vsel %vm321, %v2946, %v2948
  %v2977 = vsel %vm321, %v2944, %v2946
  %v2978 = vsel %vm321, %v2942, %v2944
  %v2979 = vsel %vm321, %v2940, %v2942
  %v2980 = vsel %vm321, %v2938, %v2940
  %v2981 = vsel %vm321, %v2936, %v2938
  %v2982 = vsel %vm321, %v2966, %v2936
  %2983 = vst [vmem:[#allocation2 + $0x80] sm:$0xff] %v2982
  %2984 = vst [vmem:[#allocation2 + $0x88] sm:$0xff] %v2981
  %2985 = vst [vmem:[#allocation2 + $0x90] sm:$0xff] %v2980
  %2986 = vst [vmem:[#allocation2 + $0x98] sm:$0xff] %v2979
  %2987 = vst [vmem:[#allocation2 + $0xa0] sm:$0xff] %v2978
  %2988 = vst [vmem:[#allocation2 + $0xa8] sm:$0xff] %v2977
  %2989 = vst [vmem:[#allocation2 + $0xb0] sm:$0xff] %v2976
  %2990 = vst [vmem:[#allocation2 + $0xb8] sm:$0xff] %v2975
  %2991 = vst [vmem:[#allocation2 + $0xc0] sm:$0xff] %v2974
  %2992 = vst [vmem:[#allocation2 + $0xc8] sm:$0xff] %v2973
  %2993 = vst [vmem:[#allocation2 + $0xd0] sm:$0xff] %v2972
  %2994 = vst [vmem:[#allocation2 + $0xd8] sm:$0xff] %v2971
  %2995 = vst [vmem:[#allocation2 + $0xe0] sm:$0xff] %v2970
  %2996 = vst [vmem:[#allocation2 + $0xe8] sm:$0xff] %v2969
  %2997 = vst [vmem:[#allocation2 + $0xf0] sm:$0xff] %v2968
  %2998 = vst [vmem:[#allocation2 + $0xf8] sm:$0xff] %v2967
  %2999 = vrot.lane.b32.xlu0 %v2851, 32
  %v3000 = vpop.permute.xlu0 %2999
  %3001 = vrot.lane.b32.xlu0 %v2852, 32
  %v3002 = vpop.permute.xlu0 %3001
  %3003 = vrot.lane.b32.xlu0 %v2853, 32
  %v3004 = vpop.permute.xlu0 %3003
  %3005 = vrot.lane.b32.xlu0 %v2854, 32
  %v3006 = vpop.permute.xlu0 %3005
  %3007 = vrot.lane.b32.xlu0 %v2855, 32
  %v3008 = vpop.permute.xlu0 %3007
  %3009 = vrot.lane.b32.xlu0 %v2856, 32
  %v3010 = vpop.permute.xlu0 %3009
  %3011 = vrot.lane.b32.xlu0 %v2857, 32
  %v3012 = vpop.permute.xlu0 %3011
  %3013 = vrot.lane.b32.xlu0 %v2858, 32
  %v3014 = vpop.permute.xlu0 %3013
  %3015 = vrot.lane.b32.xlu0 %v2859, 32
  %v3016 = vpop.permute.xlu0 %3015
  %3017 = vrot.lane.b32.xlu0 %v2860, 32
  %v3018 = vpop.permute.xlu0 %3017
  %3019 = vrot.lane.b32.xlu0 %v2861, 32
  %v3020 = vpop.permute.xlu0 %3019
  %3021 = vrot.lane.b32.xlu0 %v2862, 32
  %v3022 = vpop.permute.xlu0 %3021
  %3023 = vrot.lane.b32.xlu0 %v2863, 32
  %v3024 = vpop.permute.xlu0 %3023
  %3025 = vrot.lane.b32.xlu0 %v2864, 32
  %v3026 = vpop.permute.xlu0 %3025
  %3027 = vrot.lane.b32.xlu0 %v2865, 32
  %v3028 = vpop.permute.xlu0 %3027
  %3029 = vrot.lane.b32.xlu0 %v2866, 32
  %v3030 = vpop.permute.xlu0 %3029
  %v3031 = vsel %vm492, %v3028, %v3030
  %v3032 = vsel %vm492, %v3026, %v3028
  %v3033 = vsel %vm492, %v3024, %v3026
  %v3034 = vsel %vm492, %v3022, %v3024
  %v3035 = vsel %vm492, %v3020, %v3022
  %v3036 = vsel %vm492, %v3018, %v3020
  %v3037 = vsel %vm492, %v3016, %v3018
  %v3038 = vsel %vm492, %v3014, %v3016
  %v3039 = vsel %vm492, %v3012, %v3014
  %v3040 = vsel %vm492, %v3010, %v3012
  %v3041 = vsel %vm492, %v3008, %v3010
  %v3042 = vsel %vm492, %v3006, %v3008
  %v3043 = vsel %vm492, %v3004, %v3006
  %v3044 = vsel %vm492, %v3002, %v3004
  %v3045 = vsel %vm492, %v3000, %v3002
  %v3046 = vsel %vm492, %v3030, %v3000
  %3047 = vst [vmem:[#allocation2 + $0x100] sm:$0xff] %v3046
  %3048 = vst [vmem:[#allocation2 + $0x108] sm:$0xff] %v3045
  %3049 = vst [vmem:[#allocation2 + $0x110] sm:$0xff] %v3044
  %3050 = vst [vmem:[#allocation2 + $0x118] sm:$0xff] %v3043
  %3051 = vst [vmem:[#allocation2 + $0x120] sm:$0xff] %v3042
  %3052 = vst [vmem:[#allocation2 + $0x128] sm:$0xff] %v3041
  %3053 = vst [vmem:[#allocation2 + $0x130] sm:$0xff] %v3040
  %3054 = vst [vmem:[#allocation2 + $0x138] sm:$0xff] %v3039
  %3055 = vst [vmem:[#allocation2 + $0x140] sm:$0xff] %v3038
  %3056 = vst [vmem:[#allocation2 + $0x148] sm:$0xff] %v3037
  %3057 = vst [vmem:[#allocation2 + $0x150] sm:$0xff] %v3036
  %3058 = vst [vmem:[#allocation2 + $0x158] sm:$0xff] %v3035
  %3059 = vst [vmem:[#allocation2 + $0x160] sm:$0xff] %v3034
  %3060 = vst [vmem:[#allocation2 + $0x168] sm:$0xff] %v3033
  %3061 = vst [vmem:[#allocation2 + $0x170] sm:$0xff] %v3032
  %3062 = vst [vmem:[#allocation2 + $0x178] sm:$0xff] %v3031
  %3063 = vrot.lane.b32.xlu0 %v2851, 31
  %v3064 = vpop.permute.xlu0 %3063
  %3065 = vrot.lane.b32.xlu0 %v2852, 31
  %v3066 = vpop.permute.xlu0 %3065
  %3067 = vrot.lane.b32.xlu0 %v2853, 31
  %v3068 = vpop.permute.xlu0 %3067
  %3069 = vrot.lane.b32.xlu0 %v2854, 31
  %v3070 = vpop.permute.xlu0 %3069
  %3071 = vrot.lane.b32.xlu0 %v2855, 31
  %v3072 = vpop.permute.xlu0 %3071
  %3073 = vrot.lane.b32.xlu0 %v2856, 31
  %v3074 = vpop.permute.xlu0 %3073
  %3075 = vrot.lane.b32.xlu0 %v2857, 31
  %v3076 = vpop.permute.xlu0 %3075
  %3077 = vrot.lane.b32.xlu0 %v2858, 31
  %v3078 = vpop.permute.xlu0 %3077
  %3079 = vrot.lane.b32.xlu0 %v2859, 31
  %v3080 = vpop.permute.xlu0 %3079
  %3081 = vrot.lane.b32.xlu0 %v2860, 31
  %v3082 = vpop.permute.xlu0 %3081
  %3083 = vrot.lane.b32.xlu0 %v2861, 31
  %v3084 = vpop.permute.xlu0 %3083
  %3085 = vrot.lane.b32.xlu0 %v2862, 31
  %v3086 = vpop.permute.xlu0 %3085
  %3087 = vrot.lane.b32.xlu0 %v2863, 31
  %v3088 = vpop.permute.xlu0 %3087
  %3089 = vrot.lane.b32.xlu0 %v2864, 31
  %v3090 = vpop.permute.xlu0 %3089
  %3091 = vrot.lane.b32.xlu0 %v2865, 31
  %v3092 = vpop.permute.xlu0 %3091
  %3093 = vrot.lane.b32.xlu0 %v2866, 31
  %v3094 = vpop.permute.xlu0 %3093
  %v3095 = vsel %vm663, %v3092, %v3094
  %v3096 = vsel %vm663, %v3090, %v3092
  %v3097 = vsel %vm663, %v3088, %v3090
  %v3098 = vsel %vm663, %v3086, %v3088
  %v3099 = vsel %vm663, %v3084, %v3086
  %v3100 = vsel %vm663, %v3082, %v3084
  %v3101 = vsel %vm663, %v3080, %v3082
  %v3102 = vsel %vm663, %v3078, %v3080
  %v3103 = vsel %vm663, %v3076, %v3078
  %v3104 = vsel %vm663, %v3074, %v3076
  %v3105 = vsel %vm663, %v3072, %v3074
  %v3106 = vsel %vm663, %v3070, %v3072
  %v3107 = vsel %vm663, %v3068, %v3070
  %v3108 = vsel %vm663, %v3066, %v3068
  %v3109 = vsel %vm663, %v3064, %v3066
  %v3110 = vsel %vm663, %v3094, %v3064
  %3111 = vst [vmem:[#allocation2 + $0x180] sm:$0xff] %v3110
  %3112 = vst [vmem:[#allocation2 + $0x188] sm:$0xff] %v3109
  %3113 = vst [vmem:[#allocation2 + $0x190] sm:$0xff] %v3108
  %3114 = vst [vmem:[#allocation2 + $0x198] sm:$0xff] %v3107
  %3115 = vst [vmem:[#allocation2 + $0x1a0] sm:$0xff] %v3106
  %3116 = vst [vmem:[#allocation2 + $0x1a8] sm:$0xff] %v3105
  %3117 = vst [vmem:[#allocation2 + $0x1b0] sm:$0xff] %v3104
  %3118 = vst [vmem:[#allocation2 + $0x1b8] sm:$0xff] %v3103
  %3119 = vst [vmem:[#allocation2 + $0x1c0] sm:$0xff] %v3102
  %3120 = vst [vmem:[#allocation2 + $0x1c8] sm:$0xff] %v3101
  %3121 = vst [vmem:[#allocation2 + $0x1d0] sm:$0xff] %v3100
  %3122 = vst [vmem:[#allocation2 + $0x1d8] sm:$0xff] %v3099
  %3123 = vst [vmem:[#allocation2 + $0x1e0] sm:$0xff] %v3098
  %3124 = vst [vmem:[#allocation2 + $0x1e8] sm:$0xff] %v3097
  %3125 = vst [vmem:[#allocation2 + $0x1f0] sm:$0xff] %v3096
  %3126 = vst [vmem:[#allocation2 + $0x1f8] sm:$0xff] %v3095
  %3127 = vrot.lane.b32.xlu0 %v2851, 2
  %v3128 = vpop.permute.xlu0 %3127
  %3129 = vrot.lane.b32.xlu0 %v2852, 2
  %v3130 = vpop.permute.xlu0 %3129
  %3131 = vrot.lane.b32.xlu0 %v2853, 2
  %v3132 = vpop.permute.xlu0 %3131
  %3133 = vrot.lane.b32.xlu0 %v2854, 2
  %v3134 = vpop.permute.xlu0 %3133
  %3135 = vrot.lane.b32.xlu0 %v2855, 2
  %v3136 = vpop.permute.xlu0 %3135
  %3137 = vrot.lane.b32.xlu0 %v2856, 2
  %v3138 = vpop.permute.xlu0 %3137
  %3139 = vrot.lane.b32.xlu0 %v2857, 2
  %v3140 = vpop.permute.xlu0 %3139
  %3141 = vrot.lane.b32.xlu0 %v2858, 2
  %v3142 = vpop.permute.xlu0 %3141
  %3143 = vrot.lane.b32.xlu0 %v2859, 2
  %v3144 = vpop.permute.xlu0 %3143
  %3145 = vrot.lane.b32.xlu0 %v2860, 2
  %v3146 = vpop.permute.xlu0 %3145
  %3147 = vrot.lane.b32.xlu0 %v2861, 2
  %v3148 = vpop.permute.xlu0 %3147
  %3149 = vrot.lane.b32.xlu0 %v2862, 2
  %v3150 = vpop.permute.xlu0 %3149
  %3151 = vrot.lane.b32.xlu0 %v2863, 2
  %v3152 = vpop.permute.xlu0 %3151
  %3153 = vrot.lane.b32.xlu0 %v2864, 2
  %v3154 = vpop.permute.xlu0 %3153
  %3155 = vrot.lane.b32.xlu0 %v2865, 2
  %v3156 = vpop.permute.xlu0 %3155
  %3157 = vrot.lane.b32.xlu0 %v2866, 2
  %v3158 = vpop.permute.xlu0 %3157
  %v3159 = vsel %vm834, %v3156, %v3158
  %v3160 = vsel %vm834, %v3154, %v3156
  %v3161 = vsel %vm834, %v3152, %v3154
  %v3162 = vsel %vm834, %v3150, %v3152
  %v3163 = vsel %vm834, %v3148, %v3150
  %v3164 = vsel %vm834, %v3146, %v3148
  %v3165 = vsel %vm834, %v3144, %v3146
  %v3166 = vsel %vm834, %v3142, %v3144
  %v3167 = vsel %vm834, %v3140, %v3142
  %v3168 = vsel %vm834, %v3138, %v3140
  %v3169 = vsel %vm834, %v3136, %v3138
  %v3170 = vsel %vm834, %v3134, %v3136
  %v3171 = vsel %vm834, %v3132, %v3134
  %v3172 = vsel %vm834, %v3130, %v3132
  %v3173 = vsel %vm834, %v3128, %v3130
  %v3174 = vsel %vm834, %v3158, %v3128
  %3175 = vst [vmem:[#allocation2 + $0x200] sm:$0xff] %v3174
  %3176 = vst [vmem:[#allocation2 + $0x208] sm:$0xff] %v3173
  %3177 = vst [vmem:[#allocation2 + $0x210] sm:$0xff] %v3172
  %3178 = vst [vmem:[#allocation2 + $0x218] sm:$0xff] %v3171
  %3179 = vst [vmem:[#allocation2 + $0x220] sm:$0xff] %v3170
  %3180 = vst [vmem:[#allocation2 + $0x228] sm:$0xff] %v3169
  %3181 = vst [vmem:[#allocation2 + $0x230] sm:$0xff] %v3168
  %3182 = vst [vmem:[#allocation2 + $0x238] sm:$0xff] %v3167
  %3183 = vst [vmem:[#allocation2 + $0x240] sm:$0xff] %v3166
  %3184 = vst [vmem:[#allocation2 + $0x248] sm:$0xff] %v3165
  %3185 = vst [vmem:[#allocation2 + $0x250] sm:$0xff] %v3164
  %3186 = vst [vmem:[#allocation2 + $0x258] sm:$0xff] %v3163
  %3187 = vst [vmem:[#allocation2 + $0x260] sm:$0xff] %v3162
  %3188 = vst [vmem:[#allocation2 + $0x268] sm:$0xff] %v3161
  %3189 = vst [vmem:[#allocation2 + $0x270] sm:$0xff] %v3160
  %3190 = vst [vmem:[#allocation2 + $0x278] sm:$0xff] %v3159
  %3191 = vrot.lane.b32.xlu0 %v2851, 1
  %v3192 = vpop.permute.xlu0 %3191
  %3193 = vrot.lane.b32.xlu0 %v2852, 1
  %v3194 = vpop.permute.xlu0 %3193
  %3195 = vrot.lane.b32.xlu0 %v2853, 1
  %v3196 = vpop.permute.xlu0 %3195
  %3197 = vrot.lane.b32.xlu0 %v2854, 1
  %v3198 = vpop.permute.xlu0 %3197
  %3199 = vrot.lane.b32.xlu0 %v2855, 1
  %v3200 = vpop.permute.xlu0 %3199
  %3201 = vrot.lane.b32.xlu0 %v2856, 1
  %v3202 = vpop.permute.xlu0 %3201
  %3203 = vrot.lane.b32.xlu0 %v2857, 1
  %v3204 = vpop.permute.xlu0 %3203
  %3205 = vrot.lane.b32.xlu0 %v2858, 1
  %v3206 = vpop.permute.xlu0 %3205
  %3207 = vrot.lane.b32.xlu0 %v2859, 1
  %v3208 = vpop.permute.xlu0 %3207
  %3209 = vrot.lane.b32.xlu0 %v2860, 1
  %v3210 = vpop.permute.xlu0 %3209
  %3211 = vrot.lane.b32.xlu0 %v2861, 1
  %v3212 = vpop.permute.xlu0 %3211
  %3213 = vrot.lane.b32.xlu0 %v2862, 1
  %v3214 = vpop.permute.xlu0 %3213
  %3215 = vrot.lane.b32.xlu0 %v2863, 1
  %v3216 = vpop.permute.xlu0 %3215
  %3217 = vrot.lane.b32.xlu0 %v2864, 1
  %v3218 = vpop.permute.xlu0 %3217
  %3219 = vrot.lane.b32.xlu0 %v2865, 1
  %v3220 = vpop.permute.xlu0 %3219
  %3221 = vrot.lane.b32.xlu0 %v2866, 1
  %v3222 = vpop.permute.xlu0 %3221
  %v3223 = vsel %vm1005, %v3220, %v3222
  %v3224 = vsel %vm1005, %v3218, %v3220
  %v3225 = vsel %vm1005, %v3216, %v3218
  %v3226 = vsel %vm1005, %v3214, %v3216
  %v3227 = vsel %vm1005, %v3212, %v3214
  %v3228 = vsel %vm1005, %v3210, %v3212
  %v3229 = vsel %vm1005, %v3208, %v3210
  %v3230 = vsel %vm1005, %v3206, %v3208
  %v3231 = vsel %vm1005, %v3204, %v3206
  %v3232 = vsel %vm1005, %v3202, %v3204
  %v3233 = vsel %vm1005, %v3200, %v3202
  %v3234 = vsel %vm1005, %v3198, %v3200
  %v3235 = vsel %vm1005, %v3196, %v3198
  %v3236 = vsel %vm1005, %v3194, %v3196
  %v3237 = vsel %vm1005, %v3192, %v3194
  %v3238 = vsel %vm1005, %v3222, %v3192
  %3239 = vst [vmem:[#allocation2 + $0x280] sm:$0xff] %v3238
  %3240 = vst [vmem:[#allocation2 + $0x288] sm:$0xff] %v3237
  %3241 = vst [vmem:[#allocation2 + $0x290] sm:$0xff] %v3236
  %3242 = vst [vmem:[#allocation2 + $0x298] sm:$0xff] %v3235
  %3243 = vst [vmem:[#allocation2 + $0x2a0] sm:$0xff] %v3234
  %3244 = vst [vmem:[#allocation2 + $0x2a8] sm:$0xff] %v3233
  %3245 = vst [vmem:[#allocation2 + $0x2b0] sm:$0xff] %v3232
  %3246 = vst [vmem:[#allocation2 + $0x2b8] sm:$0xff] %v3231
  %3247 = vst [vmem:[#allocation2 + $0x2c0] sm:$0xff] %v3230
  %3248 = vst [vmem:[#allocation2 + $0x2c8] sm:$0xff] %v3229
  %3249 = vst [vmem:[#allocation2 + $0x2d0] sm:$0xff] %v3228
  %3250 = vst [vmem:[#allocation2 + $0x2d8] sm:$0xff] %v3227
  %3251 = vst [vmem:[#allocation2 + $0x2e0] sm:$0xff] %v3226
  %3252 = vst [vmem:[#allocation2 + $0x2e8] sm:$0xff] %v3225
  %3253 = vst [vmem:[#allocation2 + $0x2f0] sm:$0xff] %v3224
  %3254 = vst [vmem:[#allocation2 + $0x2f8] sm:$0xff] %v3223
  %3255 = vst [vmem:[#allocation2 + $0x300] sm:$0xff] %v2851
  %3256 = vst [vmem:[#allocation2 + $0x308] sm:$0xff] %v2852
  %3257 = vst [vmem:[#allocation2 + $0x310] sm:$0xff] %v2853
  %3258 = vst [vmem:[#allocation2 + $0x318] sm:$0xff] %v2854
  %3259 = vst [vmem:[#allocation2 + $0x320] sm:$0xff] %v2855
  %3260 = vst [vmem:[#allocation2 + $0x328] sm:$0xff] %v2856
  %3261 = vst [vmem:[#allocation2 + $0x330] sm:$0xff] %v2857
  %3262 = vst [vmem:[#allocation2 + $0x338] sm:$0xff] %v2858
  %3263 = vst [vmem:[#allocation2 + $0x340] sm:$0xff] %v2859
  %3264 = vst [vmem:[#allocation2 + $0x348] sm:$0xff] %v2860
  %3265 = vst [vmem:[#allocation2 + $0x350] sm:$0xff] %v2861
  %3266 = vst [vmem:[#allocation2 + $0x358] sm:$0xff] %v2862
  %3267 = vst [vmem:[#allocation2 + $0x360] sm:$0xff] %v2863
  %3268 = vst [vmem:[#allocation2 + $0x368] sm:$0xff] %v2864
  %3269 = vst [vmem:[#allocation2 + $0x370] sm:$0xff] %v2865
  %3270 = vst [vmem:[#allocation2 + $0x378] sm:$0xff] %v2866
  %3271 = vrot.lane.b32.xlu0 %v2851, 127
  %v3272 = vpop.permute.xlu0 %3271
  %3273 = vrot.lane.b32.xlu0 %v2852, 127
  %v3274 = vpop.permute.xlu0 %3273
  %3275 = vrot.lane.b32.xlu0 %v2853, 127
  %v3276 = vpop.permute.xlu0 %3275
  %3277 = vrot.lane.b32.xlu0 %v2854, 127
  %v3278 = vpop.permute.xlu0 %3277
  %3279 = vrot.lane.b32.xlu0 %v2855, 127
  %v3280 = vpop.permute.xlu0 %3279
  %3281 = vrot.lane.b32.xlu0 %v2856, 127
  %v3282 = vpop.permute.xlu0 %3281
  %3283 = vrot.lane.b32.xlu0 %v2857, 127
  %v3284 = vpop.permute.xlu0 %3283
  %3285 = vrot.lane.b32.xlu0 %v2858, 127
  %v3286 = vpop.permute.xlu0 %3285
  %3287 = vrot.lane.b32.xlu0 %v2859, 127
  %v3288 = vpop.permute.xlu0 %3287
  %3289 = vrot.lane.b32.xlu0 %v2860, 127
  %v3290 = vpop.permute.xlu0 %3289
  %3291 = vrot.lane.b32.xlu0 %v2861, 127
  %v3292 = vpop.permute.xlu0 %3291
  %3293 = vrot.lane.b32.xlu0 %v2862, 127
  %v3294 = vpop.permute.xlu0 %3293
  %3295 = vrot.lane.b32.xlu0 %v2863, 127
  %v3296 = vpop.permute.xlu0 %3295
  %3297 = vrot.lane.b32.xlu0 %v2864, 127
  %v3298 = vpop.permute.xlu0 %3297
  %3299 = vrot.lane.b32.xlu0 %v2865, 127
  %v3300 = vpop.permute.xlu0 %3299
  %3301 = vrot.lane.b32.xlu0 %v2866, 127
  %v3302 = vpop.permute.xlu0 %3301
  %v3303 = vsel %vm1182, %v3300, %v3302
  %v3304 = vsel %vm1182, %v3298, %v3300
  %v3305 = vsel %vm1182, %v3296, %v3298
  %v3306 = vsel %vm1182, %v3294, %v3296
  %v3307 = vsel %vm1182, %v3292, %v3294
  %v3308 = vsel %vm1182, %v3290, %v3292
  %v3309 = vsel %vm1182, %v3288, %v3290
  %v3310 = vsel %vm1182, %v3286, %v3288
  %v3311 = vsel %vm1182, %v3284, %v3286
  %v3312 = vsel %vm1182, %v3282, %v3284
  %v3313 = vsel %vm1182, %v3280, %v3282
  %v3314 = vsel %vm1182, %v3278, %v3280
  %v3315 = vsel %vm1182, %v3276, %v3278
  %v3316 = vsel %vm1182, %v3274, %v3276
  %v3317 = vsel %vm1182, %v3272, %v3274
  %v3318 = vsel %vm1182, %v3302, %v3272
  %3319 = vst [vmem:[#allocation2 + $0x380] sm:$0xff] %v3317
  %3320 = vst [vmem:[#allocation2 + $0x388] sm:$0xff] %v3316
  %3321 = vst [vmem:[#allocation2 + $0x390] sm:$0xff] %v3315
  %3322 = vst [vmem:[#allocation2 + $0x398] sm:$0xff] %v3314
  %3323 = vst [vmem:[#allocation2 + $0x3a0] sm:$0xff] %v3313
  %3324 = vst [vmem:[#allocation2 + $0x3a8] sm:$0xff] %v3312
  %3325 = vst [vmem:[#allocation2 + $0x3b0] sm:$0xff] %v3311
  %3326 = vst [vmem:[#allocation2 + $0x3b8] sm:$0xff] %v3310
  %3327 = vst [vmem:[#allocation2 + $0x3c0] sm:$0xff] %v3309
  %3328 = vst [vmem:[#allocation2 + $0x3c8] sm:$0xff] %v3308
  %3329 = vst [vmem:[#allocation2 + $0x3d0] sm:$0xff] %v3307
  %3330 = vst [vmem:[#allocation2 + $0x3d8] sm:$0xff] %v3306
  %3331 = vst [vmem:[#allocation2 + $0x3e0] sm:$0xff] %v3305
  %3332 = vst [vmem:[#allocation2 + $0x3e8] sm:$0xff] %v3304
  %3333 = vst [vmem:[#allocation2 + $0x3f0] sm:$0xff] %v3303
  %3334 = vst [vmem:[#allocation2 + $0x3f8] sm:$0xff] %v3318
  %3335 = vrot.lane.b32.xlu0 %v2851, 126
  %v3336 = vpop.permute.xlu0 %3335
  %3337 = vrot.lane.b32.xlu0 %v2852, 126
  %v3338 = vpop.permute.xlu0 %3337
  %3339 = vrot.lane.b32.xlu0 %v2853, 126
  %v3340 = vpop.permute.xlu0 %3339
  %3341 = vrot.lane.b32.xlu0 %v2854, 126
  %v3342 = vpop.permute.xlu0 %3341
  %3343 = vrot.lane.b32.xlu0 %v2855, 126
  %v3344 = vpop.permute.xlu0 %3343
  %3345 = vrot.lane.b32.xlu0 %v2856, 126
  %v3346 = vpop.permute.xlu0 %3345
  %3347 = vrot.lane.b32.xlu0 %v2857, 126
  %v3348 = vpop.permute.xlu0 %3347
  %3349 = vrot.lane.b32.xlu0 %v2858, 126
  %v3350 = vpop.permute.xlu0 %3349
  %3351 = vrot.lane.b32.xlu0 %v2859, 126
  %v3352 = vpop.permute.xlu0 %3351
  %3353 = vrot.lane.b32.xlu0 %v2860, 126
  %v3354 = vpop.permute.xlu0 %3353
  %3355 = vrot.lane.b32.xlu0 %v2861, 126
  %v3356 = vpop.permute.xlu0 %3355
  %3357 = vrot.lane.b32.xlu0 %v2862, 126
  %v3358 = vpop.permute.xlu0 %3357
  %3359 = vrot.lane.b32.xlu0 %v2863, 126
  %v3360 = vpop.permute.xlu0 %3359
  %3361 = vrot.lane.b32.xlu0 %v2864, 126
  %v3362 = vpop.permute.xlu0 %3361
  %3363 = vrot.lane.b32.xlu0 %v2865, 126
  %v3364 = vpop.permute.xlu0 %3363
  %3365 = vrot.lane.b32.xlu0 %v2866, 126
  %v3366 = vpop.permute.xlu0 %3365
  %v3367 = vsel %vm1353, %v3364, %v3366
  %v3368 = vsel %vm1353, %v3362, %v3364
  %v3369 = vsel %vm1353, %v3360, %v3362
  %v3370 = vsel %vm1353, %v3358, %v3360
  %v3371 = vsel %vm1353, %v3356, %v3358
  %v3372 = vsel %vm1353, %v3354, %v3356
  %v3373 = vsel %vm1353, %v3352, %v3354
  %v3374 = vsel %vm1353, %v3350, %v3352
  %v3375 = vsel %vm1353, %v3348, %v3350
  %v3376 = vsel %vm1353, %v3346, %v3348
  %v3377 = vsel %vm1353, %v3344, %v3346
  %v3378 = vsel %vm1353, %v3342, %v3344
  %v3379 = vsel %vm1353, %v3340, %v3342
  %v3380 = vsel %vm1353, %v3338, %v3340
  %v3381 = vsel %vm1353, %v3336, %v3338
  %v3382 = vsel %vm1353, %v3366, %v3336
  %3383 = vst [vmem:[#allocation2 + $0x400] sm:$0xff] %v3381
  %3384 = vst [vmem:[#allocation2 + $0x408] sm:$0xff] %v3380
  %3385 = vst [vmem:[#allocation2 + $0x410] sm:$0xff] %v3379
  %3386 = vst [vmem:[#allocation2 + $0x418] sm:$0xff] %v3378
  %3387 = vst [vmem:[#allocation2 + $0x420] sm:$0xff] %v3377
  %3388 = vst [vmem:[#allocation2 + $0x428] sm:$0xff] %v3376
  %3389 = vst [vmem:[#allocation2 + $0x430] sm:$0xff] %v3375
  %3390 = vst [vmem:[#allocation2 + $0x438] sm:$0xff] %v3374
  %3391 = vst [vmem:[#allocation2 + $0x440] sm:$0xff] %v3373
  %3392 = vst [vmem:[#allocation2 + $0x448] sm:$0xff] %v3372
  %3393 = vst [vmem:[#allocation2 + $0x450] sm:$0xff] %v3371
  %3394 = vst [vmem:[#allocation2 + $0x458] sm:$0xff] %v3370
  %3395 = vst [vmem:[#allocation2 + $0x460] sm:$0xff] %v3369
  %3396 = vst [vmem:[#allocation2 + $0x468] sm:$0xff] %v3368
  %3397 = vst [vmem:[#allocation2 + $0x470] sm:$0xff] %v3367
  %3398 = vst [vmem:[#allocation2 + $0x478] sm:$0xff] %v3382
  %3399 = vrot.lane.b32.xlu0 %v2851, 97
  %v3400 = vpop.permute.xlu0 %3399
  %3401 = vrot.lane.b32.xlu0 %v2852, 97
  %v3402 = vpop.permute.xlu0 %3401
  %3403 = vrot.lane.b32.xlu0 %v2853, 97
  %v3404 = vpop.permute.xlu0 %3403
  %3405 = vrot.lane.b32.xlu0 %v2854, 97
  %v3406 = vpop.permute.xlu0 %3405
  %3407 = vrot.lane.b32.xlu0 %v2855, 97
  %v3408 = vpop.permute.xlu0 %3407
  %3409 = vrot.lane.b32.xlu0 %v2856, 97
  %v3410 = vpop.permute.xlu0 %3409
  %3411 = vrot.lane.b32.xlu0 %v2857, 97
  %v3412 = vpop.permute.xlu0 %3411
  %3413 = vrot.lane.b32.xlu0 %v2858, 97
  %v3414 = vpop.permute.xlu0 %3413
  %3415 = vrot.lane.b32.xlu0 %v2859, 97
  %v3416 = vpop.permute.xlu0 %3415
  %3417 = vrot.lane.b32.xlu0 %v2860, 97
  %v3418 = vpop.permute.xlu0 %3417
  %3419 = vrot.lane.b32.xlu0 %v2861, 97
  %v3420 = vpop.permute.xlu0 %3419
  %3421 = vrot.lane.b32.xlu0 %v2862, 97
  %v3422 = vpop.permute.xlu0 %3421
  %3423 = vrot.lane.b32.xlu0 %v2863, 97
  %v3424 = vpop.permute.xlu0 %3423
  %3425 = vrot.lane.b32.xlu0 %v2864, 97
  %v3426 = vpop.permute.xlu0 %3425
  %3427 = vrot.lane.b32.xlu0 %v2865, 97
  %v3428 = vpop.permute.xlu0 %3427
  %3429 = vrot.lane.b32.xlu0 %v2866, 97
  %v3430 = vpop.permute.xlu0 %3429
  %v3431 = vsel %vm1524, %v3428, %v3430
  %v3432 = vsel %vm1524, %v3426, %v3428
  %v3433 = vsel %vm1524, %v3424, %v3426
  %v3434 = vsel %vm1524, %v3422, %v3424
  %v3435 = vsel %vm1524, %v3420, %v3422
  %v3436 = vsel %vm1524, %v3418, %v3420
  %v3437 = vsel %vm1524, %v3416, %v3418
  %v3438 = vsel %vm1524, %v3414, %v3416
  %v3439 = vsel %vm1524, %v3412, %v3414
  %v3440 = vsel %vm1524, %v3410, %v3412
  %v3441 = vsel %vm1524, %v3408, %v3410
  %v3442 = vsel %vm1524, %v3406, %v3408
  %v3443 = vsel %vm1524, %v3404, %v3406
  %v3444 = vsel %vm1524, %v3402, %v3404
  %v3445 = vsel %vm1524, %v3400, %v3402
  %v3446 = vsel %vm1524, %v3430, %v3400
  %3447 = vst [vmem:[#allocation2 + $0x480] sm:$0xff] %v3445
  %3448 = vst [vmem:[#allocation2 + $0x488] sm:$0xff] %v3444
  %3449 = vst [vmem:[#allocation2 + $0x490] sm:$0xff] %v3443
  %3450 = vst [vmem:[#allocation2 + $0x498] sm:$0xff] %v3442
  %3451 = vst [vmem:[#allocation2 + $0x4a0] sm:$0xff] %v3441
  %3452 = vst [vmem:[#allocation2 + $0x4a8] sm:$0xff] %v3440
  %3453 = vst [vmem:[#allocation2 + $0x4b0] sm:$0xff] %v3439
  %3454 = vst [vmem:[#allocation2 + $0x4b8] sm:$0xff] %v3438
  %3455 = vst [vmem:[#allocation2 + $0x4c0] sm:$0xff] %v3437
  %3456 = vst [vmem:[#allocation2 + $0x4c8] sm:$0xff] %v3436
  %3457 = vst [vmem:[#allocation2 + $0x4d0] sm:$0xff] %v3435
  %3458 = vst [vmem:[#allocation2 + $0x4d8] sm:$0xff] %v3434
  %3459 = vst [vmem:[#allocation2 + $0x4e0] sm:$0xff] %v3433
  %3460 = vst [vmem:[#allocation2 + $0x4e8] sm:$0xff] %v3432
  %3461 = vst [vmem:[#allocation2 + $0x4f0] sm:$0xff] %v3431
  %3462 = vst [vmem:[#allocation2 + $0x4f8] sm:$0xff] %v3446
  %3463 = vrot.lane.b32.xlu0 %v2851, 96
  %v3464 = vpop.permute.xlu0 %3463
  %3465 = vrot.lane.b32.xlu0 %v2852, 96
  %v3466 = vpop.permute.xlu0 %3465
  %3467 = vrot.lane.b32.xlu0 %v2853, 96
  %v3468 = vpop.permute.xlu0 %3467
  %3469 = vrot.lane.b32.xlu0 %v2854, 96
  %v3470 = vpop.permute.xlu0 %3469
  %3471 = vrot.lane.b32.xlu0 %v2855, 96
  %v3472 = vpop.permute.xlu0 %3471
  %3473 = vrot.lane.b32.xlu0 %v2856, 96
  %v3474 = vpop.permute.xlu0 %3473
  %3475 = vrot.lane.b32.xlu0 %v2857, 96
  %v3476 = vpop.permute.xlu0 %3475
  %3477 = vrot.lane.b32.xlu0 %v2858, 96
  %v3478 = vpop.permute.xlu0 %3477
  %3479 = vrot.lane.b32.xlu0 %v2859, 96
  %v3480 = vpop.permute.xlu0 %3479
  %3481 = vrot.lane.b32.xlu0 %v2860, 96
  %v3482 = vpop.permute.xlu0 %3481
  %3483 = vrot.lane.b32.xlu0 %v2861, 96
  %v3484 = vpop.permute.xlu0 %3483
  %3485 = vrot.lane.b32.xlu0 %v2862, 96
  %v3486 = vpop.permute.xlu0 %3485
  %3487 = vrot.lane.b32.xlu0 %v2863, 96
  %v3488 = vpop.permute.xlu0 %3487
  %3489 = vrot.lane.b32.xlu0 %v2864, 96
  %v3490 = vpop.permute.xlu0 %3489
  %3491 = vrot.lane.b32.xlu0 %v2865, 96
  %v3492 = vpop.permute.xlu0 %3491
  %3493 = vrot.lane.b32.xlu0 %v2866, 96
  %v3494 = vpop.permute.xlu0 %3493
  %v3495 = vsel %vm1695, %v3492, %v3494
  %v3496 = vsel %vm1695, %v3490, %v3492
  %v3497 = vsel %vm1695, %v3488, %v3490
  %v3498 = vsel %vm1695, %v3486, %v3488
  %v3499 = vsel %vm1695, %v3484, %v3486
  %v3500 = vsel %vm1695, %v3482, %v3484
  %v3501 = vsel %vm1695, %v3480, %v3482
  %v3502 = vsel %vm1695, %v3478, %v3480
  %v3503 = vsel %vm1695, %v3476, %v3478
  %v3504 = vsel %vm1695, %v3474, %v3476
  %v3505 = vsel %vm1695, %v3472, %v3474
  %v3506 = vsel %vm1695, %v3470, %v3472
  %v3507 = vsel %vm1695, %v3468, %v3470
  %v3508 = vsel %vm1695, %v3466, %v3468
  %v3509 = vsel %vm1695, %v3464, %v3466
  %v3510 = vsel %vm1695, %v3494, %v3464
  %3511 = vst [vmem:[#allocation2 + $0x500] sm:$0xff] %v3509
  %3512 = vst [vmem:[#allocation2 + $0x508] sm:$0xff] %v3508
  %3513 = vst [vmem:[#allocation2 + $0x510] sm:$0xff] %v3507
  %3514 = vst [vmem:[#allocation2 + $0x518] sm:$0xff] %v3506
  %3515 = vst [vmem:[#allocation2 + $0x520] sm:$0xff] %v3505
  %3516 = vst [vmem:[#allocation2 + $0x528] sm:$0xff] %v3504
  %3517 = vst [vmem:[#allocation2 + $0x530] sm:$0xff] %v3503
  %3518 = vst [vmem:[#allocation2 + $0x538] sm:$0xff] %v3502
  %3519 = vst [vmem:[#allocation2 + $0x540] sm:$0xff] %v3501
  %3520 = vst [vmem:[#allocation2 + $0x548] sm:$0xff] %v3500
  %3521 = vst [vmem:[#allocation2 + $0x550] sm:$0xff] %v3499
  %3522 = vst [vmem:[#allocation2 + $0x558] sm:$0xff] %v3498
  %3523 = vst [vmem:[#allocation2 + $0x560] sm:$0xff] %v3497
  %3524 = vst [vmem:[#allocation2 + $0x568] sm:$0xff] %v3496
  %3525 = vst [vmem:[#allocation2 + $0x570] sm:$0xff] %v3495
  %3526 = vst [vmem:[#allocation2 + $0x578] sm:$0xff] %v3510
  %3527 = vrot.lane.b32.xlu0 %v2851, 95
  %v3528 = vpop.permute.xlu0 %3527
  %3529 = vrot.lane.b32.xlu0 %v2852, 95
  %v3530 = vpop.permute.xlu0 %3529
  %3531 = vrot.lane.b32.xlu0 %v2853, 95
  %v3532 = vpop.permute.xlu0 %3531
  %3533 = vrot.lane.b32.xlu0 %v2854, 95
  %v3534 = vpop.permute.xlu0 %3533
  %3535 = vrot.lane.b32.xlu0 %v2855, 95
  %v3536 = vpop.permute.xlu0 %3535
  %3537 = vrot.lane.b32.xlu0 %v2856, 95
  %v3538 = vpop.permute.xlu0 %3537
  %3539 = vrot.lane.b32.xlu0 %v2857, 95
  %v3540 = vpop.permute.xlu0 %3539
  %3541 = vrot.lane.b32.xlu0 %v2858, 95
  %v3542 = vpop.permute.xlu0 %3541
  %3543 = vrot.lane.b32.xlu0 %v2859, 95
  %v3544 = vpop.permute.xlu0 %3543
  %3545 = vrot.lane.b32.xlu0 %v2860, 95
  %v3546 = vpop.permute.xlu0 %3545
  %3547 = vrot.lane.b32.xlu0 %v2861, 95
  %v3548 = vpop.permute.xlu0 %3547
  %3549 = vrot.lane.b32.xlu0 %v2862, 95
  %v3550 = vpop.permute.xlu0 %3549
  %3551 = vrot.lane.b32.xlu0 %v2863, 95
  %v3552 = vpop.permute.xlu0 %3551
  %3553 = vrot.lane.b32.xlu0 %v2864, 95
  %v3554 = vpop.permute.xlu0 %3553
  %3555 = vrot.lane.b32.xlu0 %v2865, 95
  %v3556 = vpop.permute.xlu0 %3555
  %3557 = vrot.lane.b32.xlu0 %v2866, 95
  %v3558 = vpop.permute.xlu0 %3557
  %v3559 = vsel %vm1866, %v3556, %v3558
  %v3560 = vsel %vm1866, %v3554, %v3556
  %v3561 = vsel %vm1866, %v3552, %v3554
  %v3562 = vsel %vm1866, %v3550, %v3552
  %v3563 = vsel %vm1866, %v3548, %v3550
  %v3564 = vsel %vm1866, %v3546, %v3548
  %v3565 = vsel %vm1866, %v3544, %v3546
  %v3566 = vsel %vm1866, %v3542, %v3544
  %v3567 = vsel %vm1866, %v3540, %v3542
  %v3568 = vsel %vm1866, %v3538, %v3540
  %v3569 = vsel %vm1866, %v3536, %v3538
  %v3570 = vsel %vm1866, %v3534, %v3536
  %v3571 = vsel %vm1866, %v3532, %v3534
  %v3572 = vsel %vm1866, %v3530, %v3532
  %v3573 = vsel %vm1866, %v3528, %v3530
  %v3574 = vsel %vm1866, %v3558, %v3528
  %3575 = vst [vmem:[#allocation2 + $0x580] sm:$0xff] %v3573
  %3576 = vst [vmem:[#allocation2 + $0x588] sm:$0xff] %v3572
  %3577 = vst [vmem:[#allocation2 + $0x590] sm:$0xff] %v3571
  %3578 = vst [vmem:[#allocation2 + $0x598] sm:$0xff] %v3570
  %3579 = vst [vmem:[#allocation2 + $0x5a0] sm:$0xff] %v3569
  %3580 = vst [vmem:[#allocation2 + $0x5a8] sm:$0xff] %v3568
  %3581 = vst [vmem:[#allocation2 + $0x5b0] sm:$0xff] %v3567
  %3582 = vst [vmem:[#allocation2 + $0x5b8] sm:$0xff] %v3566
  %3583 = vst [vmem:[#allocation2 + $0x5c0] sm:$0xff] %v3565
  %3584 = vst [vmem:[#allocation2 + $0x5c8] sm:$0xff] %v3564
  %3585 = vst [vmem:[#allocation2 + $0x5d0] sm:$0xff] %v3563
  %3586 = vst [vmem:[#allocation2 + $0x5d8] sm:$0xff] %v3562
  %3587 = vst [vmem:[#allocation2 + $0x5e0] sm:$0xff] %v3561
  %3588 = vst [vmem:[#allocation2 + $0x5e8] sm:$0xff] %v3560
  %3589 = vst [vmem:[#allocation2 + $0x5f0] sm:$0xff] %v3559
  %3590 = vst [vmem:[#allocation2 + $0x5f8] sm:$0xff] %v3574
  %3591 = vst [vmem:[#allocation2 + $0x600] sm:$0xff] %v2917
  %3592 = vst [vmem:[#allocation2 + $0x608] sm:$0xff] %v2916
  %3593 = vst [vmem:[#allocation2 + $0x610] sm:$0xff] %v2915
  %3594 = vst [vmem:[#allocation2 + $0x618] sm:$0xff] %v2914
  %3595 = vst [vmem:[#allocation2 + $0x620] sm:$0xff] %v2913
  %3596 = vst [vmem:[#allocation2 + $0x628] sm:$0xff] %v2912
  %3597 = vst [vmem:[#allocation2 + $0x630] sm:$0xff] %v2911
  %3598 = vst [vmem:[#allocation2 + $0x638] sm:$0xff] %v2910
  %3599 = vst [vmem:[#allocation2 + $0x640] sm:$0xff] %v2909
  %3600 = vst [vmem:[#allocation2 + $0x648] sm:$0xff] %v2908
  %3601 = vst [vmem:[#allocation2 + $0x650] sm:$0xff] %v2907
  %3602 = vst [vmem:[#allocation2 + $0x658] sm:$0xff] %v2906
  %3603 = vst [vmem:[#allocation2 + $0x660] sm:$0xff] %v2905
  %3604 = vst [vmem:[#allocation2 + $0x668] sm:$0xff] %v2904
  %3605 = vst [vmem:[#allocation2 + $0x670] sm:$0xff] %v2903
  %3606 = vst [vmem:[#allocation2 + $0x678] sm:$0xff] %v2918
  %v3607 = vld [vmem:[#allocation2] sm:$0xff]
  %v3608 = vld [vmem:[#allocation2 + $0x8] sm:$0xff]
  %v3609 = vld [vmem:[#allocation2 + $0x10] sm:$0xff]
  %v3610 = vld [vmem:[#allocation2 + $0x18] sm:$0xff]
  %v3611 = vld [vmem:[#allocation2 + $0x20] sm:$0xff]
  %v3612 = vld [vmem:[#allocation2 + $0x28] sm:$0xff]
  %v3613 = vld [vmem:[#allocation2 + $0x30] sm:$0xff]
  %v3614 = vld [vmem:[#allocation2 + $0x38] sm:$0xff]
  %v3615 = vld [vmem:[#allocation2 + $0x40] sm:$0xff]
  %v3616 = vld [vmem:[#allocation2 + $0x48] sm:$0xff]
  %v3617 = vld [vmem:[#allocation2 + $0x50] sm:$0xff]
  %v3618 = vld [vmem:[#allocation2 + $0x58] sm:$0xff]
  %v3619 = vld [vmem:[#allocation2 + $0x60] sm:$0xff]
  %v3620 = vld [vmem:[#allocation2 + $0x68] sm:$0xff]
  %v3621 = vld [vmem:[#allocation2 + $0x70] sm:$0xff]
  %v3622 = vld [vmem:[#allocation2 + $0x78] sm:$0xff]
  %v3623 = vld [vmem:[#allocation2 + $0x80] sm:$0xff]
  %v3624 = vld [vmem:[#allocation2 + $0x88] sm:$0xff]
  %v3625 = vld [vmem:[#allocation2 + $0x90] sm:$0xff]
  %v3626 = vld [vmem:[#allocation2 + $0x98] sm:$0xff]
  %v3627 = vld [vmem:[#allocation2 + $0xa0] sm:$0xff]
  %v3628 = vld [vmem:[#allocation2 + $0xa8] sm:$0xff]
  %v3629 = vld [vmem:[#allocation2 + $0xb0] sm:$0xff]
  %v3630 = vld [vmem:[#allocation2 + $0xb8] sm:$0xff]
  %v3631 = vld [vmem:[#allocation2 + $0xc0] sm:$0xff]
  %v3632 = vld [vmem:[#allocation2 + $0xc8] sm:$0xff]
  %v3633 = vld [vmem:[#allocation2 + $0xd0] sm:$0xff]
  %v3634 = vld [vmem:[#allocation2 + $0xd8] sm:$0xff]
  %v3635 = vld [vmem:[#allocation2 + $0xe0] sm:$0xff]
  %v3636 = vld [vmem:[#allocation2 + $0xe8] sm:$0xff]
  %v3637 = vld [vmem:[#allocation2 + $0xf0] sm:$0xff]
  %v3638 = vld [vmem:[#allocation2 + $0xf8] sm:$0xff]
  %v3639 = vld [vmem:[#allocation2 + $0x100] sm:$0xff]
  %v3640 = vld [vmem:[#allocation2 + $0x108] sm:$0xff]
  %v3641 = vld [vmem:[#allocation2 + $0x110] sm:$0xff]
  %v3642 = vld [vmem:[#allocation2 + $0x118] sm:$0xff]
  %v3643 = vld [vmem:[#allocation2 + $0x120] sm:$0xff]
  %v3644 = vld [vmem:[#allocation2 + $0x128] sm:$0xff]
  %v3645 = vld [vmem:[#allocation2 + $0x130] sm:$0xff]
  %v3646 = vld [vmem:[#allocation2 + $0x138] sm:$0xff]
  %v3647 = vld [vmem:[#allocation2 + $0x140] sm:$0xff]
  %v3648 = vld [vmem:[#allocation2 + $0x148] sm:$0xff]
  %v3649 = vld [vmem:[#allocation2 + $0x150] sm:$0xff]
  %v3650 = vld [vmem:[#allocation2 + $0x158] sm:$0xff]
  %v3651 = vld [vmem:[#allocation2 + $0x160] sm:$0xff]
  %v3652 = vld [vmem:[#allocation2 + $0x168] sm:$0xff]
  %v3653 = vld [vmem:[#allocation2 + $0x170] sm:$0xff]
  %v3654 = vld [vmem:[#allocation2 + $0x178] sm:$0xff]
  %v3655 = vld [vmem:[#allocation2 + $0x180] sm:$0xff]
  %v3656 = vld [vmem:[#allocation2 + $0x188] sm:$0xff]
  %v3657 = vld [vmem:[#allocation2 + $0x190] sm:$0xff]
  %v3658 = vld [vmem:[#allocation2 + $0x198] sm:$0xff]
  %v3659 = vld [vmem:[#allocation2 + $0x1a0] sm:$0xff]
  %v3660 = vld [vmem:[#allocation2 + $0x1a8] sm:$0xff]
  %v3661 = vld [vmem:[#allocation2 + $0x1b0] sm:$0xff]
  %v3662 = vld [vmem:[#allocation2 + $0x1b8] sm:$0xff]
  %v3663 = vld [vmem:[#allocation2 + $0x1c0] sm:$0xff]
  %v3664 = vld [vmem:[#allocation2 + $0x1c8] sm:$0xff]
  %v3665 = vld [vmem:[#allocation2 + $0x1d0] sm:$0xff]
  %v3666 = vld [vmem:[#allocation2 + $0x1d8] sm:$0xff]
  %v3667 = vld [vmem:[#allocation2 + $0x1e0] sm:$0xff]
  %v3668 = vld [vmem:[#allocation2 + $0x1e8] sm:$0xff]
  %v3669 = vld [vmem:[#allocation2 + $0x1f0] sm:$0xff]
  %v3670 = vld [vmem:[#allocation2 + $0x1f8] sm:$0xff]
  %v3671 = vld [vmem:[#allocation2 + $0x200] sm:$0xff]
  %v3672 = vld [vmem:[#allocation2 + $0x208] sm:$0xff]
  %v3673 = vld [vmem:[#allocation2 + $0x210] sm:$0xff]
  %v3674 = vld [vmem:[#allocation2 + $0x218] sm:$0xff]
  %v3675 = vld [vmem:[#allocation2 + $0x220] sm:$0xff]
  %v3676 = vld [vmem:[#allocation2 + $0x228] sm:$0xff]
  %v3677 = vld [vmem:[#allocation2 + $0x230] sm:$0xff]
  %v3678 = vld [vmem:[#allocation2 + $0x238] sm:$0xff]
  %v3679 = vld [vmem:[#allocation2 + $0x240] sm:$0xff]
  %v3680 = vld [vmem:[#allocation2 + $0x248] sm:$0xff]
  %v3681 = vld [vmem:[#allocation2 + $0x250] sm:$0xff]
  %v3682 = vld [vmem:[#allocation2 + $0x258] sm:$0xff]
  %v3683 = vld [vmem:[#allocation2 + $0x260] sm:$0xff]
  %v3684 = vld [vmem:[#allocation2 + $0x268] sm:$0xff]
  %v3685 = vld [vmem:[#allocation2 + $0x270] sm:$0xff]
  %v3686 = vld [vmem:[#allocation2 + $0x278] sm:$0xff]
  %v3687 = vld [vmem:[#allocation2 + $0x280] sm:$0xff]
  %v3688 = vld [vmem:[#allocation2 + $0x288] sm:$0xff]
  %v3689 = vld [vmem:[#allocation2 + $0x290] sm:$0xff]
  %v3690 = vld [vmem:[#allocation2 + $0x298] sm:$0xff]
  %v3691 = vld [vmem:[#allocation2 + $0x2a0] sm:$0xff]
  %v3692 = vld [vmem:[#allocation2 + $0x2a8] sm:$0xff]
  %v3693 = vld [vmem:[#allocation2 + $0x2b0] sm:$0xff]
  %v3694 = vld [vmem:[#allocation2 + $0x2b8] sm:$0xff]
  %v3695 = vld [vmem:[#allocation2 + $0x2c0] sm:$0xff]
  %v3696 = vld [vmem:[#allocation2 + $0x2c8] sm:$0xff]
  %v3697 = vld [vmem:[#allocation2 + $0x2d0] sm:$0xff]
  %v3698 = vld [vmem:[#allocation2 + $0x2d8] sm:$0xff]
  %v3699 = vld [vmem:[#allocation2 + $0x2e0] sm:$0xff]
  %v3700 = vld [vmem:[#allocation2 + $0x2e8] sm:$0xff]
  %v3701 = vld [vmem:[#allocation2 + $0x2f0] sm:$0xff]
  %v3702 = vld [vmem:[#allocation2 + $0x2f8] sm:$0xff]
  %v3703 = vld [vmem:[#allocation2 + $0x300] sm:$0xff]
  %v3704 = vld [vmem:[#allocation2 + $0x308] sm:$0xff]
  %v3705 = vld [vmem:[#allocation2 + $0x310] sm:$0xff]
  %v3706 = vld [vmem:[#allocation2 + $0x318] sm:$0xff]
  %v3707 = vld [vmem:[#allocation2 + $0x320] sm:$0xff]
  %v3708 = vld [vmem:[#allocation2 + $0x328] sm:$0xff]
  %v3709 = vld [vmem:[#allocation2 + $0x330] sm:$0xff]
  %v3710 = vld [vmem:[#allocation2 + $0x338] sm:$0xff]
  %v3711 = vld [vmem:[#allocation2 + $0x340] sm:$0xff]
  %v3712 = vld [vmem:[#allocation2 + $0x348] sm:$0xff]
  %v3713 = vld [vmem:[#allocation2 + $0x350] sm:$0xff]
  %v3714 = vld [vmem:[#allocation2 + $0x358] sm:$0xff]
  %v3715 = vld [vmem:[#allocation2 + $0x360] sm:$0xff]
  %v3716 = vld [vmem:[#allocation2 + $0x368] sm:$0xff]
  %v3717 = vld [vmem:[#allocation2 + $0x370] sm:$0xff]
  %v3718 = vld [vmem:[#allocation2 + $0x378] sm:$0xff]
  %v3719 = vld [vmem:[#allocation2 + $0x380] sm:$0xff]
  %v3720 = vld [vmem:[#allocation2 + $0x388] sm:$0xff]
  %v3721 = vld [vmem:[#allocation2 + $0x390] sm:$0xff]
  %v3722 = vld [vmem:[#allocation2 + $0x398] sm:$0xff]
  %v3723 = vld [vmem:[#allocation2 + $0x3a0] sm:$0xff]
  %v3724 = vld [vmem:[#allocation2 + $0x3a8] sm:$0xff]
  %v3725 = vld [vmem:[#allocation2 + $0x3b0] sm:$0xff]
  %v3726 = vld [vmem:[#allocation2 + $0x3b8] sm:$0xff]
  %v3727 = vld [vmem:[#allocation2 + $0x3c0] sm:$0xff]
  %v3728 = vld [vmem:[#allocation2 + $0x3c8] sm:$0xff]
  %v3729 = vld [vmem:[#allocation2 + $0x3d0] sm:$0xff]
  %v3730 = vld [vmem:[#allocation2 + $0x3d8] sm:$0xff]
  %v3731 = vld [vmem:[#allocation2 + $0x3e0] sm:$0xff]
  %v3732 = vld [vmem:[#allocation2 + $0x3e8] sm:$0xff]
  %v3733 = vld [vmem:[#allocation2 + $0x3f0] sm:$0xff]
  %v3734 = vld [vmem:[#allocation2 + $0x3f8] sm:$0xff]
  %v3735 = vld [vmem:[#allocation2 + $0x400] sm:$0xff]
  %v3736 = vld [vmem:[#allocation2 + $0x408] sm:$0xff]
  %v3737 = vld [vmem:[#allocation2 + $0x410] sm:$0xff]
  %v3738 = vld [vmem:[#allocation2 + $0x418] sm:$0xff]
  %v3739 = vld [vmem:[#allocation2 + $0x420] sm:$0xff]
  %v3740 = vld [vmem:[#allocation2 + $0x428] sm:$0xff]
  %v3741 = vld [vmem:[#allocation2 + $0x430] sm:$0xff]
  %v3742 = vld [vmem:[#allocation2 + $0x438] sm:$0xff]
  %v3743 = vld [vmem:[#allocation2 + $0x440] sm:$0xff]
  %v3744 = vld [vmem:[#allocation2 + $0x448] sm:$0xff]
  %v3745 = vld [vmem:[#allocation2 + $0x450] sm:$0xff]
  %v3746 = vld [vmem:[#allocation2 + $0x458] sm:$0xff]
  %v3747 = vld [vmem:[#allocation2 + $0x460] sm:$0xff]
  %v3748 = vld [vmem:[#allocation2 + $0x468] sm:$0xff]
  %v3749 = vld [vmem:[#allocation2 + $0x470] sm:$0xff]
  %v3750 = vld [vmem:[#allocation2 + $0x478] sm:$0xff]
  %v3751 = vld [vmem:[#allocation2 + $0x480] sm:$0xff]
  %v3752 = vld [vmem:[#allocation2 + $0x488] sm:$0xff]
  %v3753 = vld [vmem:[#allocation2 + $0x490] sm:$0xff]
  %v3754 = vld [vmem:[#allocation2 + $0x498] sm:$0xff]
  %v3755 = vld [vmem:[#allocation2 + $0x4a0] sm:$0xff]
  %v3756 = vld [vmem:[#allocation2 + $0x4a8] sm:$0xff]
  %v3757 = vld [vmem:[#allocation2 + $0x4b0] sm:$0xff]
  %v3758 = vld [vmem:[#allocation2 + $0x4b8] sm:$0xff]
  %v3759 = vld [vmem:[#allocation2 + $0x4c0] sm:$0xff]
  %v3760 = vld [vmem:[#allocation2 + $0x4c8] sm:$0xff]
  %v3761 = vld [vmem:[#allocation2 + $0x4d0] sm:$0xff]
  %v3762 = vld [vmem:[#allocation2 + $0x4d8] sm:$0xff]
  %v3763 = vld [vmem:[#allocation2 + $0x4e0] sm:$0xff]
  %v3764 = vld [vmem:[#allocation2 + $0x4e8] sm:$0xff]
  %v3765 = vld [vmem:[#allocation2 + $0x4f0] sm:$0xff]
  %v3766 = vld [vmem:[#allocation2 + $0x4f8] sm:$0xff]
  %v3767 = vld [vmem:[#allocation2 + $0x500] sm:$0xff]
  %v3768 = vld [vmem:[#allocation2 + $0x508] sm:$0xff]
  %v3769 = vld [vmem:[#allocation2 + $0x510] sm:$0xff]
  %v3770 = vld [vmem:[#allocation2 + $0x518] sm:$0xff]
  %v3771 = vld [vmem:[#allocation2 + $0x520] sm:$0xff]
  %v3772 = vld [vmem:[#allocation2 + $0x528] sm:$0xff]
  %v3773 = vld [vmem:[#allocation2 + $0x530] sm:$0xff]
  %v3774 = vld [vmem:[#allocation2 + $0x538] sm:$0xff]
  %v3775 = vld [vmem:[#allocation2 + $0x540] sm:$0xff]
  %v3776 = vld [vmem:[#allocation2 + $0x548] sm:$0xff]
  %v3777 = vld [vmem:[#allocation2 + $0x550] sm:$0xff]
  %v3778 = vld [vmem:[#allocation2 + $0x558] sm:$0xff]
  %v3779 = vld [vmem:[#allocation2 + $0x560] sm:$0xff]
  %v3780 = vld [vmem:[#allocation2 + $0x568] sm:$0xff]
  %v3781 = vld [vmem:[#allocation2 + $0x570] sm:$0xff]
  %v3782 = vld [vmem:[#allocation2 + $0x578] sm:$0xff]
  %v3783 = vld [vmem:[#allocation2 + $0x580] sm:$0xff]
  %v3784 = vld [vmem:[#allocation2 + $0x588] sm:$0xff]
  %v3785 = vld [vmem:[#allocation2 + $0x590] sm:$0xff]
  %v3786 = vld [vmem:[#allocation2 + $0x598] sm:$0xff]
  %v3787 = vld [vmem:[#allocation2 + $0x5a0] sm:$0xff]
  %v3788 = vld [vmem:[#allocation2 + $0x5a8] sm:$0xff]
  %v3789 = vld [vmem:[#allocation2 + $0x5b0] sm:$0xff]
  %v3790 = vld [vmem:[#allocation2 + $0x5b8] sm:$0xff]
  %v3791 = vld [vmem:[#allocation2 + $0x5c0] sm:$0xff]
  %v3792 = vld [vmem:[#allocation2 + $0x5c8] sm:$0xff]
  %v3793 = vld [vmem:[#allocation2 + $0x5d0] sm:$0xff]
  %v3794 = vld [vmem:[#allocation2 + $0x5d8] sm:$0xff]
  %v3795 = vld [vmem:[#allocation2 + $0x5e0] sm:$0xff]
  %v3796 = vld [vmem:[#allocation2 + $0x5e8] sm:$0xff]
  %v3797 = vld [vmem:[#allocation2 + $0x5f0] sm:$0xff]
  %v3798 = vld [vmem:[#allocation2 + $0x5f8] sm:$0xff]
  %v3799 = vld [vmem:[#allocation2 + $0x600] sm:$0xff]
  %v3800 = vld [vmem:[#allocation2 + $0x608] sm:$0xff]
  %v3801 = vld [vmem:[#allocation2 + $0x610] sm:$0xff]
  %v3802 = vld [vmem:[#allocation2 + $0x618] sm:$0xff]
  %v3803 = vld [vmem:[#allocation2 + $0x620] sm:$0xff]
  %v3804 = vld [vmem:[#allocation2 + $0x628] sm:$0xff]
  %v3805 = vld [vmem:[#allocation2 + $0x630] sm:$0xff]
  %v3806 = vld [vmem:[#allocation2 + $0x638] sm:$0xff]
  %v3807 = vld [vmem:[#allocation2 + $0x640] sm:$0xff]
  %v3808 = vld [vmem:[#allocation2 + $0x648] sm:$0xff]
  %v3809 = vld [vmem:[#allocation2 + $0x650] sm:$0xff]
  %v3810 = vld [vmem:[#allocation2 + $0x658] sm:$0xff]
  %v3811 = vld [vmem:[#allocation2 + $0x660] sm:$0xff]
  %v3812 = vld [vmem:[#allocation2 + $0x668] sm:$0xff]
  %v3813 = vld [vmem:[#allocation2 + $0x670] sm:$0xff]
  %v3814 = vld [vmem:[#allocation2 + $0x678] sm:$0xff]
  %3816 = vset.pattern.permute.xlu0 0
  %3817 = vperm.xlu0 %3816, %v2869
  %v3818 = vpop.permute.xlu0 %3817
  %3821 = vset.pattern.permute.xlu0 0
  %3822 = vperm.xlu0 %3821, %v2870
  %v3823 = vpop.permute.xlu0 %3822
  %vm3825 = vcmask 850944
  %v3827 = vsel %vm3825, %v2867, 0
  %v3830 = vsel %vm3825, %v2868, 0
  %3832 = vmatprep.subr.mxu0 %v3608
  %3833 = vmatpush1.msra.mxu0 %v3607
  %3834 = vmatprep.subr.mxu0 %v3624
  %3835 = vmatpush1.msra.mxu0 %v3623
  %3836 = vmatprep.subr.mxu0 %v3640
  %3837 = vmatpush1.msra.mxu0 %v3639
  %3838 = vmatprep.subr.mxu0 %v3656
  %3839 = vmatpush1.msra.mxu0 %v3655
  %3840 = vmatprep.subr.mxu0 %v3672
  %3841 = vmatpush1.msra.mxu0 %v3671
  %3842 = vmatprep.subr.mxu0 %v3688
  %3843 = vmatpush1.msra.mxu0 %v3687
  %3844 = vmatprep.subr.mxu0 %v3704
  %3845 = vmatpush1.msra.mxu0 %v3703
  %3846 = vmatprep.subr.mxu0 %v3720
  %3847 = vmatpush1.msra.mxu0 %v3719
  %3848 = vmatprep.subr.mxu0 %v3736
  %3849 = vmatpush1.msra.mxu0 %v3735
  %3850 = vmatprep.subr.mxu0 %v3752
  %3851 = vmatpush1.msra.mxu0 %v3751
  %3852 = vmatprep.subr.mxu0 %v3768
  %3853 = vmatpush1.msra.mxu0 %v3767
  %3854 = vmatprep.subr.mxu0 %v3784
  %3855 = vmatpush1.msra.mxu0 %v3783
  %3856 = vmatprep.subr.mxu0 %v3800
  %3857 = vmatpush1.msra.mxu0 %v3799
  %3858 = vmatprep.subr.mxu0 0.0
  %3859 = vmatpush1.msra.mxu0 0.0
  %3860 = vmatprep.subr.mxu0 0.0
  %3861 = vmatpush1.msra.mxu0 0.0
  %3862 = vmatprep.subr.mxu0 0.0
  %3863 = vmatpush1.msra.mxu0 0.0
  %3864 = vmatprep.subr.mxu0 0.0
  %3865 = vmatpush1.msra.mxu0 0.0
  %3866 = vmatprep.subr.mxu0 0.0
  %3867 = vmatpush1.msra.mxu0 0.0
  %3868 = vmatprep.subr.mxu0 0.0
  %3869 = vmatpush1.msra.mxu0 0.0
  %3870 = vmatprep.subr.mxu0 0.0
  %3871 = vmatpush1.msra.mxu0 0.0
  %3872 = vmatprep.subr.mxu0 0.0
  %3873 = vmatpush1.msra.mxu0 0.0
  %3874 = vmatprep.subr.mxu0 0.0
  %3875 = vmatpush1.msra.mxu0 0.0
  %3876 = vmatprep.subr.mxu0 0.0
  %3877 = vmatpush1.msra.mxu0 0.0
  %3878 = vmatprep.subr.mxu0 0.0
  %3879 = vmatpush1.msra.mxu0 0.0
  %3880 = vmatprep.subr.mxu0 0.0
  %3881 = vmatpush1.msra.mxu0 0.0
  %3882 = vmatprep.subr.mxu0 0.0
  %3883 = vmatpush1.msra.mxu0 0.0
  %3884 = vmatprep.subr.mxu0 0.0
  %3885 = vmatpush1.msra.mxu0 0.0
  %3886 = vmatprep.subr.mxu0 0.0
  %3887 = vmatpush1.msra.mxu0 0.0
  %3888 = vmatprep.subr.mxu0 0.0
  %3889 = vmatpush1.msra.mxu0 0.0
  %3890 = vmatprep.subr.mxu0 0.0
  %3891 = vmatpush1.msra.mxu0 0.0
  %3892 = vmatprep.subr.mxu0 0.0
  %3893 = vmatpush1.msra.mxu0 0.0
  %3894 = vmatprep.subr.mxu0 0.0
  %3895 = vmatpush1.msra.mxu0 0.0
  %3896 = vmatprep.mubr.f32.mxu0 0.0
  %3897 = vmatmul.mubr.f32.gmra.mrb[0].mxu0 %v3827
  %v3898 = vpop.f32.mrb[0].mxu0
  %v3899 = vadd.f32 %v3818, %v3898
  %v3900 = vpop.f32.mrb[0].mxu0
  %v3901 = vadd.f32 %v3818, %v3900
  %3902 = vmatprep.mubr.f32.mxu0 0.0
  %3903 = vmatmul.mubr.f32.gmra.mrb[0].mxu0 %v3830
  %v3904 = vpop.f32.mrb[0].mxu0
  %v3905 = vadd.f32 %v3823, %v3904
  %v3906 = vpop.f32.mrb[0].mxu0
  %v3907 = vadd.f32 %v3823, %v3906
  %3908 = vdwg.mxu0
  %3909 = vmatprep.subr.mxu0 %v3610
  %3910 = vmatpush1.msra.mxu0 %v3609
  %3911 = vmatprep.subr.mxu0 %v3626
  %3912 = vmatpush1.msra.mxu0 %v3625
  %3913 = vmatprep.subr.mxu0 %v3642
  %3914 = vmatpush1.msra.mxu0 %v3641
  %3915 = vmatprep.subr.mxu0 %v3658
  %3916 = vmatpush1.msra.mxu0 %v3657
  %3917 = vmatprep.subr.mxu0 %v3674
  %3918 = vmatpush1.msra.mxu0 %v3673
  %3919 = vmatprep.subr.mxu0 %v3690
  %3920 = vmatpush1.msra.mxu0 %v3689
  %3921 = vmatprep.subr.mxu0 %v3706
  %3922 = vmatpush1.msra.mxu0 %v3705
  %3923 = vmatprep.subr.mxu0 %v3722
  %3924 = vmatpush1.msra.mxu0 %v3721
  %3925 = vmatprep.subr.mxu0 %v3738
  %3926 = vmatpush1.msra.mxu0 %v3737
  %3927 = vmatprep.subr.mxu0 %v3754
  %3928 = vmatpush1.msra.mxu0 %v3753
  %3929 = vmatprep.subr.mxu0 %v3770
  %3930 = vmatpush1.msra.mxu0 %v3769
  %3931 = vmatprep.subr.mxu0 %v3786
  %3932 = vmatpush1.msra.mxu0 %v3785
  %3933 = vmatprep.subr.mxu0 %v3802
  %3934 = vmatpush1.msra.mxu0 %v3801
  %3935 = vmatprep.subr.mxu0 0.0
  %3936 = vmatpush1.msra.mxu0 0.0
  %3937 = vmatprep.subr.mxu0 0.0
  %3938 = vmatpush1.msra.mxu0 0.0
  %3939 = vmatprep.subr.mxu0 0.0
  %3940 = vmatpush1.msra.mxu0 0.0
  %3941 = vmatprep.subr.mxu0 0.0
  %3942 = vmatpush1.msra.mxu0 0.0
  %3943 = vmatprep.subr.mxu0 0.0
  %3944 = vmatpush1.msra.mxu0 0.0
  %3945 = vmatprep.subr.mxu0 0.0
  %3946 = vmatpush1.msra.mxu0 0.0
  %3947 = vmatprep.subr.mxu0 0.0
  %3948 = vmatpush1.msra.mxu0 0.0
  %3949 = vmatprep.subr.mxu0 0.0
  %3950 = vmatpush1.msra.mxu0 0.0
  %3951 = vmatprep.subr.mxu0 0.0
  %3952 = vmatpush1.msra.mxu0 0.0
  %3953 = vmatprep.subr.mxu0 0.0
  %3954 = vmatpush1.msra.mxu0 0.0
  %3955 = vmatprep.subr.mxu0 0.0
  %3956 = vmatpush1.msra.mxu0 0.0
  %3957 = vmatprep.subr.mxu0 0.0
  %3958 = vmatpush1.msra.mxu0 0.0
  %3959 = vmatprep.subr.mxu0 0.0
  %3960 = vmatpush1.msra.mxu0 0.0
  %3961 = vmatprep.subr.mxu0 0.0
  %3962 = vmatpush1.msra.mxu0 0.0
  %3963 = vmatprep.subr.mxu0 0.0
  %3964 = vmatpush1.msra.mxu0 0.0
  %3965 = vmatprep.subr.mxu0 0.0
  %3966 = vmatpush1.msra.mxu0 0.0
  %3967 = vmatprep.subr.mxu0 0.0
  %3968 = vmatpush1.msra.mxu0 0.0
  %3969 = vmatprep.subr.mxu0 0.0
  %3970 = vmatpush1.msra.mxu0 0.0
  %3971 = vmatprep.subr.mxu0 0.0
  %3972 = vmatpush1.msra.mxu0 0.0
  %3973 = vmatprep.mubr.f32.mxu0 0.0
  %3974 = vmatmul.mubr.f32.gmra.mrb[0].mxu0 %v3827
  %v3975 = vpop.f32.mrb[0].mxu0
  %v3976 = vadd.f32 %v3818, %v3975
  %v3977 = vpop.f32.mrb[0].mxu0
  %v3978 = vadd.f32 %v3818, %v3977
  %3979 = vmatprep.mubr.f32.mxu0 0.0
  %3980 = vmatmul.mubr.f32.gmra.mrb[0].mxu0 %v3830
  %v3981 = vpop.f32.mrb[0].mxu0
  %v3982 = vadd.f32 %v3823, %v3981
  %v3983 = vpop.f32.mrb[0].mxu0
  %v3984 = vadd.f32 %v3823, %v3983
  %3985 = vdwg.mxu0
  %3986 = vmatprep.subr.mxu0 %v3612
  %3987 = vmatpush1.msra.mxu0 %v3611
  %3988 = vmatprep.subr.mxu0 %v3628
  %3989 = vmatpush1.msra.mxu0 %v3627
  %3990 = vmatprep.subr.mxu0 %v3644
  %3991 = vmatpush1.msra.mxu0 %v3643
  %3992 = vmatprep.subr.mxu0 %v3660
  %3993 = vmatpush1.msra.mxu0 %v3659
  %3994 = vmatprep.subr.mxu0 %v3676
  %3995 = vmatpush1.msra.mxu0 %v3675
  %3996 = vmatprep.subr.mxu0 %v3692
  %3997 = vmatpush1.msra.mxu0 %v3691
  %3998 = vmatprep.subr.mxu0 %v3708
  %3999 = vmatpush1.msra.mxu0 %v3707
  %4000 = vmatprep.subr.mxu0 %v3724
  %4001 = vmatpush1.msra.mxu0 %v3723
  %4002 = vmatprep.subr.mxu0 %v3740
  %4003 = vmatpush1.msra.mxu0 %v3739
  %4004 = vmatprep.subr.mxu0 %v3756
  %4005 = vmatpush1.msra.mxu0 %v3755
  %4006 = vmatprep.subr.mxu0 %v3772
  %4007 = vmatpush1.msra.mxu0 %v3771
  %4008 = vmatprep.subr.mxu0 %v3788
  %4009 = vmatpush1.msra.mxu0 %v3787
  %4010 = vmatprep.subr.mxu0 %v3804
  %4011 = vmatpush1.msra.mxu0 %v3803
  %4012 = vmatprep.subr.mxu0 0.0
  %4013 = vmatpush1.msra.mxu0 0.0
  %4014 = vmatprep.subr.mxu0 0.0
  %4015 = vmatpush1.msra.mxu0 0.0
  %4016 = vmatprep.subr.mxu0 0.0
  %4017 = vmatpush1.msra.mxu0 0.0
  %4018 = vmatprep.subr.mxu0 0.0
  %4019 = vmatpush1.msra.mxu0 0.0
  %4020 = vmatprep.subr.mxu0 0.0
  %4021 = vmatpush1.msra.mxu0 0.0
  %4022 = vmatprep.subr.mxu0 0.0
  %4023 = vmatpush1.msra.mxu0 0.0
  %4024 = vmatprep.subr.mxu0 0.0
  %4025 = vmatpush1.msra.mxu0 0.0
  %4026 = vmatprep.subr.mxu0 0.0
  %4027 = vmatpush1.msra.mxu0 0.0
  %4028 = vmatprep.subr.mxu0 0.0
  %4029 = vmatpush1.msra.mxu0 0.0
  %4030 = vmatprep.subr.mxu0 0.0
  %4031 = vmatpush1.msra.mxu0 0.0
  %4032 = vmatprep.subr.mxu0 0.0
  %4033 = vmatpush1.msra.mxu0 0.0
  %4034 = vmatprep.subr.mxu0 0.0
  %4035 = vmatpush1.msra.mxu0 0.0
  %4036 = vmatprep.subr.mxu0 0.0
  %4037 = vmatpush1.msra.mxu0 0.0
  %4038 = vmatprep.subr.mxu0 0.0
  %4039 = vmatpush1.msra.mxu0 0.0
  %4040 = vmatprep.subr.mxu0 0.0
  %4041 = vmatpush1.msra.mxu0 0.0
  %4042 = vmatprep.subr.mxu0 0.0
  %4043 = vmatpush1.msra.mxu0 0.0
  %4044 = vmatprep.subr.mxu0 0.0
  %4045 = vmatpush1.msra.mxu0 0.0
  %4046 = vmatprep.subr.mxu0 0.0
  %4047 = vmatpush1.msra.mxu0 0.0
  %4048 = vmatprep.subr.mxu0 0.0
  %4049 = vmatpush1.msra.mxu0 0.0
  %4050 = vmatprep.mubr.f32.mxu0 0.0
  %4051 = vmatmul.mubr.f32.gmra.mrb[0].mxu0 %v3827
  %v4052 = vpop.f32.mrb[0].mxu0
  %v4053 = vadd.f32 %v3818, %v4052
  %v4054 = vpop.f32.mrb[0].mxu0
  %v4055 = vadd.f32 %v3818, %v4054
  %4056 = vmatprep.mubr.f32.mxu0 0.0
  %4057 = vmatmul.mubr.f32.gmra.mrb[0].mxu0 %v3830
  %v4058 = vpop.f32.mrb[0].mxu0
  %v4059 = vadd.f32 %v3823, %v4058
  %v4060 = vpop.f32.mrb[0].mxu0
  %v4061 = vadd.f32 %v3823, %v4060
  %4062 = vdwg.mxu0
  %4063 = vmatprep.subr.mxu0 %v3614
  %4064 = vmatpush1.msra.mxu0 %v3613
  %4065 = vmatprep.subr.mxu0 %v3630
  %4066 = vmatpush1.msra.mxu0 %v3629
  %4067 = vmatprep.subr.mxu0 %v3646
  %4068 = vmatpush1.msra.mxu0 %v3645
  %4069 = vmatprep.subr.mxu0 %v3662
  %4070 = vmatpush1.msra.mxu0 %v3661
  %4071 = vmatprep.subr.mxu0 %v3678
  %4072 = vmatpush1.msra.mxu0 %v3677
  %4073 = vmatprep.subr.mxu0 %v3694
  %4074 = vmatpush1.msra.mxu0 %v3693
  %4075 = vmatprep.subr.mxu0 %v3710
  %4076 = vmatpush1.msra.mxu0 %v3709
  %4077 = vmatprep.subr.mxu0 %v3726
  %4078 = vmatpush1.msra.mxu0 %v3725
  %4079 = vmatprep.subr.mxu0 %v3742
  %4080 = vmatpush1.msra.mxu0 %v3741
  %4081 = vmatprep.subr.mxu0 %v3758
  %4082 = vmatpush1.msra.mxu0 %v3757
  %4083 = vmatprep.subr.mxu0 %v3774
  %4084 = vmatpush1.msra.mxu0 %v3773
  %4085 = vmatprep.subr.mxu0 %v3790
  %4086 = vmatpush1.msra.mxu0 %v3789
  %4087 = vmatprep.subr.mxu0 %v3806
  %4088 = vmatpush1.msra.mxu0 %v3805
  %4089 = vmatprep.subr.mxu0 0.0
  %4090 = vmatpush1.msra.mxu0 0.0
  %4091 = vmatprep.subr.mxu0 0.0
  %4092 = vmatpush1.msra.mxu0 0.0
  %4093 = vmatprep.subr.mxu0 0.0
  %4094 = vmatpush1.msra.mxu0 0.0
  %4095 = vmatprep.subr.mxu0 0.0
  %4096 = vmatpush1.msra.mxu0 0.0
  %4097 = vmatprep.subr.mxu0 0.0
  %4098 = vmatpush1.msra.mxu0 0.0
  %4099 = vmatprep.subr.mxu0 0.0
  %4100 = vmatpush1.msra.mxu0 0.0
  %4101 = vmatprep.subr.mxu0 0.0
  %4102 = vmatpush1.msra.mxu0 0.0
  %4103 = vmatprep.subr.mxu0 0.0
  %4104 = vmatpush1.msra.mxu0 0.0
  %4105 = vmatprep.subr.mxu0 0.0
  %4106 = vmatpush1.msra.mxu0 0.0
  %4107 = vmatprep.subr.mxu0 0.0
  %4108 = vmatpush1.msra.mxu0 0.0
  %4109 = vmatprep.subr.mxu0 0.0
  %4110 = vmatpush1.msra.mxu0 0.0
  %4111 = vmatprep.subr.mxu0 0.0
  %4112 = vmatpush1.msra.mxu0 0.0
  %4113 = vmatprep.subr.mxu0 0.0
  %4114 = vmatpush1.msra.mxu0 0.0
  %4115 = vmatprep.subr.mxu0 0.0
  %4116 = vmatpush1.msra.mxu0 0.0
  %4117 = vmatprep.subr.mxu0 0.0
  %4118 = vmatpush1.msra.mxu0 0.0
  %4119 = vmatprep.subr.mxu0 0.0
  %4120 = vmatpush1.msra.mxu0 0.0
  %4121 = vmatprep.subr.mxu0 0.0
  %4122 = vmatpush1.msra.mxu0 0.0
  %4123 = vmatprep.subr.mxu0 0.0
  %4124 = vmatpush1.msra.mxu0 0.0
  %4125 = vmatprep.subr.mxu0 0.0
  %4126 = vmatpush1.msra.mxu0 0.0
  %4127 = vmatprep.mubr.f32.mxu0 0.0
  %4128 = vmatmul.mubr.f32.gmra.mrb[0].mxu0 %v3827
  %v4129 = vpop.f32.mrb[0].mxu0
  %v4130 = vadd.f32 %v3818, %v4129
  %v4131 = vpop.f32.mrb[0].mxu0
  %v4132 = vadd.f32 %v3818, %v4131
  %4133 = vmatprep.mubr.f32.mxu0 0.0
  %4134 = vmatmul.mubr.f32.gmra.mrb[0].mxu0 %v3830
  %v4135 = vpop.f32.mrb[0].mxu0
  %v4136 = vadd.f32 %v3823, %v4135
  %v4137 = vpop.f32.mrb[0].mxu0
  %v4138 = vadd.f32 %v3823, %v4137
  %4139 = vdwg.mxu0
  %4140 = vmatprep.subr.mxu0 %v3616
  %4141 = vmatpush1.msra.mxu0 %v3615
  %4142 = vmatprep.subr.mxu0 %v3632
  %4143 = vmatpush1.msra.mxu0 %v3631
  %4144 = vmatprep.subr.mxu0 %v3648
  %4145 = vmatpush1.msra.mxu0 %v3647
  %4146 = vmatprep.subr.mxu0 %v3664
  %4147 = vmatpush1.msra.mxu0 %v3663
  %4148 = vmatprep.subr.mxu0 %v3680
  %4149 = vmatpush1.msra.mxu0 %v3679
  %4150 = vmatprep.subr.mxu0 %v3696
  %4151 = vmatpush1.msra.mxu0 %v3695
  %4152 = vmatprep.subr.mxu0 %v3712
  %4153 = vmatpush1.msra.mxu0 %v3711
  %4154 = vmatprep.subr.mxu0 %v3728
  %4155 = vmatpush1.msra.mxu0 %v3727
  %4156 = vmatprep.subr.mxu0 %v3744
  %4157 = vmatpush1.msra.mxu0 %v3743
  %4158 = vmatprep.subr.mxu0 %v3760
  %4159 = vmatpush1.msra.mxu0 %v3759
  %4160 = vmatprep.subr.mxu0 %v3776
  %4161 = vmatpush1.msra.mxu0 %v3775
  %4162 = vmatprep.subr.mxu0 %v3792
  %4163 = vmatpush1.msra.mxu0 %v3791
  %4164 = vmatprep.subr.mxu0 %v3808
  %4165 = vmatpush1.msra.mxu0 %v3807
  %4166 = vmatprep.subr.mxu0 0.0
  %4167 = vmatpush1.msra.mxu0 0.0
  %4168 = vmatprep.subr.mxu0 0.0
  %4169 = vmatpush1.msra.mxu0 0.0
  %4170 = vmatprep.subr.mxu0 0.0
  %4171 = vmatpush1.msra.mxu0 0.0
  %4172 = vmatprep.subr.mxu0 0.0
  %4173 = vmatpush1.msra.mxu0 0.0
  %4174 = vmatprep.subr.mxu0 0.0
  %4175 = vmatpush1.msra.mxu0 0.0
  %4176 = vmatprep.subr.mxu0 0.0
  %4177 = vmatpush1.msra.mxu0 0.0
  %4178 = vmatprep.subr.mxu0 0.0
  %4179 = vmatpush1.msra.mxu0 0.0
  %4180 = vmatprep.subr.mxu0 0.0
  %4181 = vmatpush1.msra.mxu0 0.0
  %4182 = vmatprep.subr.mxu0 0.0
  %4183 = vmatpush1.msra.mxu0 0.0
  %4184 = vmatprep.subr.mxu0 0.0
  %4185 = vmatpush1.msra.mxu0 0.0
  %4186 = vmatprep.subr.mxu0 0.0
  %4187 = vmatpush1.msra.mxu0 0.0
  %4188 = vmatprep.subr.mxu0 0.0
  %4189 = vmatpush1.msra.mxu0 0.0
  %4190 = vmatprep.subr.mxu0 0.0
  %4191 = vmatpush1.msra.mxu0 0.0
  %4192 = vmatprep.subr.mxu0 0.0
  %4193 = vmatpush1.msra.mxu0 0.0
  %4194 = vmatprep.subr.mxu0 0.0
  %4195 = vmatpush1.msra.mxu0 0.0
  %4196 = vmatprep.subr.mxu0 0.0
  %4197 = vmatpush1.msra.mxu0 0.0
  %4198 = vmatprep.subr.mxu0 0.0
  %4199 = vmatpush1.msra.mxu0 0.0
  %4200 = vmatprep.subr.mxu0 0.0
  %4201 = vmatpush1.msra.mxu0 0.0
  %4202 = vmatprep.subr.mxu0 0.0
  %4203 = vmatpush1.msra.mxu0 0.0
  %4204 = vmatprep.mubr.f32.mxu0 0.0
  %4205 = vmatmul.mubr.f32.gmra.mrb[0].mxu0 %v3827
  %v4206 = vpop.f32.mrb[0].mxu0
  %v4207 = vadd.f32 %v3818, %v4206
  %v4208 = vpop.f32.mrb[0].mxu0
  %v4209 = vadd.f32 %v3818, %v4208
  %4210 = vmatprep.mubr.f32.mxu0 0.0
  %4211 = vmatmul.mubr.f32.gmra.mrb[0].mxu0 %v3830
  %v4212 = vpop.f32.mrb[0].mxu0
  %v4213 = vadd.f32 %v3823, %v4212
  %v4214 = vpop.f32.mrb[0].mxu0
  %v4215 = vadd.f32 %v3823, %v4214
  %4216 = vdwg.mxu0
  %4217 = vmatprep.subr.mxu0 %v3618
  %4218 = vmatpush1.msra.mxu0 %v3617
  %4219 = vmatprep.subr.mxu0 %v3634
  %4220 = vmatpush1.msra.mxu0 %v3633
  %4221 = vmatprep.subr.mxu0 %v3650
  %4222 = vmatpush1.msra.mxu0 %v3649
  %4223 = vmatprep.subr.mxu0 %v3666
  %4224 = vmatpush1.msra.mxu0 %v3665
  %4225 = vmatprep.subr.mxu0 %v3682
  %4226 = vmatpush1.msra.mxu0 %v3681
  %4227 = vmatprep.subr.mxu0 %v3698
  %4228 = vmatpush1.msra.mxu0 %v3697
  %4229 = vmatprep.subr.mxu0 %v3714
  %4230 = vmatpush1.msra.mxu0 %v3713
  %4231 = vmatprep.subr.mxu0 %v3730
  %4232 = vmatpush1.msra.mxu0 %v3729
  %4233 = vmatprep.subr.mxu0 %v3746
  %4234 = vmatpush1.msra.mxu0 %v3745
  %4235 = vmatprep.subr.mxu0 %v3762
  %4236 = vmatpush1.msra.mxu0 %v3761
  %4237 = vmatprep.subr.mxu0 %v3778
  %4238 = vmatpush1.msra.mxu0 %v3777
  %4239 = vmatprep.subr.mxu0 %v3794
  %4240 = vmatpush1.msra.mxu0 %v3793
  %4241 = vmatprep.subr.mxu0 %v3810
  %4242 = vmatpush1.msra.mxu0 %v3809
  %4243 = vmatprep.subr.mxu0 0.0
  %4244 = vmatpush1.msra.mxu0 0.0
  %4245 = vmatprep.subr.mxu0 0.0
  %4246 = vmatpush1.msra.mxu0 0.0
  %4247 = vmatprep.subr.mxu0 0.0
  %4248 = vmatpush1.msra.mxu0 0.0
  %4249 = vmatprep.subr.mxu0 0.0
  %4250 = vmatpush1.msra.mxu0 0.0
  %4251 = vmatprep.subr.mxu0 0.0
  %4252 = vmatpush1.msra.mxu0 0.0
  %4253 = vmatprep.subr.mxu0 0.0
  %4254 = vmatpush1.msra.mxu0 0.0
  %4255 = vmatprep.subr.mxu0 0.0
  %4256 = vmatpush1.msra.mxu0 0.0
  %4257 = vmatprep.subr.mxu0 0.0
  %4258 = vmatpush1.msra.mxu0 0.0
  %4259 = vmatprep.subr.mxu0 0.0
  %4260 = vmatpush1.msra.mxu0 0.0
  %4261 = vmatprep.subr.mxu0 0.0
  %4262 = vmatpush1.msra.mxu0 0.0
  %4263 = vmatprep.subr.mxu0 0.0
  %4264 = vmatpush1.msra.mxu0 0.0
  %4265 = vmatprep.subr.mxu0 0.0
  %4266 = vmatpush1.msra.mxu0 0.0
  %4267 = vmatprep.subr.mxu0 0.0
  %4268 = vmatpush1.msra.mxu0 0.0
  %4269 = vmatprep.subr.mxu0 0.0
  %4270 = vmatpush1.msra.mxu0 0.0
  %4271 = vmatprep.subr.mxu0 0.0
  %4272 = vmatpush1.msra.mxu0 0.0
  %4273 = vmatprep.subr.mxu0 0.0
  %4274 = vmatpush1.msra.mxu0 0.0
  %4275 = vmatprep.subr.mxu0 0.0
  %4276 = vmatpush1.msra.mxu0 0.0
  %4277 = vmatprep.subr.mxu0 0.0
  %4278 = vmatpush1.msra.mxu0 0.0
  %4279 = vmatprep.subr.mxu0 0.0
  %4280 = vmatpush1.msra.mxu0 0.0
  %4281 = vmatprep.mubr.f32.mxu0 0.0
  %4282 = vmatmul.mubr.f32.gmra.mrb[0].mxu0 %v3827
  %v4283 = vpop.f32.mrb[0].mxu0
  %v4284 = vadd.f32 %v3818, %v4283
  %v4285 = vpop.f32.mrb[0].mxu0
  %v4286 = vadd.f32 %v3818, %v4285
  %4287 = vmatprep.mubr.f32.mxu0 0.0
  %4288 = vmatmul.mubr.f32.gmra.mrb[0].mxu0 %v3830
  %v4289 = vpop.f32.mrb[0].mxu0
  %v4290 = vadd.f32 %v3823, %v4289
  %v4291 = vpop.f32.mrb[0].mxu0
  %v4292 = vadd.f32 %v3823, %v4291
  %4293 = vdwg.mxu0
  %4294 = vmatprep.subr.mxu0 %v3620
  %4295 = vmatpush1.msra.mxu0 %v3619
  %4296 = vmatprep.subr.mxu0 %v3636
  %4297 = vmatpush1.msra.mxu0 %v3635
  %4298 = vmatprep.subr.mxu0 %v3652
  %4299 = vmatpush1.msra.mxu0 %v3651
  %4300 = vmatprep.subr.mxu0 %v3668
  %4301 = vmatpush1.msra.mxu0 %v3667
  %4302 = vmatprep.subr.mxu0 %v3684
  %4303 = vmatpush1.msra.mxu0 %v3683
  %4304 = vmatprep.subr.mxu0 %v3700
  %4305 = vmatpush1.msra.mxu0 %v3699
  %4306 = vmatprep.subr.mxu0 %v3716
  %4307 = vmatpush1.msra.mxu0 %v3715
  %4308 = vmatprep.subr.mxu0 %v3732
  %4309 = vmatpush1.msra.mxu0 %v3731
  %4310 = vmatprep.subr.mxu0 %v3748
  %4311 = vmatpush1.msra.mxu0 %v3747
  %4312 = vmatprep.subr.mxu0 %v3764
  %4313 = vmatpush1.msra.mxu0 %v3763
  %4314 = vmatprep.subr.mxu0 %v3780
  %4315 = vmatpush1.msra.mxu0 %v3779
  %4316 = vmatprep.subr.mxu0 %v3796
  %4317 = vmatpush1.msra.mxu0 %v3795
  %4318 = vmatprep.subr.mxu0 %v3812
  %4319 = vmatpush1.msra.mxu0 %v3811
  %4320 = vmatprep.subr.mxu0 0.0
  %4321 = vmatpush1.msra.mxu0 0.0
  %4322 = vmatprep.subr.mxu0 0.0
  %4323 = vmatpush1.msra.mxu0 0.0
  %4324 = vmatprep.subr.mxu0 0.0
  %4325 = vmatpush1.msra.mxu0 0.0
  %4326 = vmatprep.subr.mxu0 0.0
  %4327 = vmatpush1.msra.mxu0 0.0
  %4328 = vmatprep.subr.mxu0 0.0
  %4329 = vmatpush1.msra.mxu0 0.0
  %4330 = vmatprep.subr.mxu0 0.0
  %4331 = vmatpush1.msra.mxu0 0.0
  %4332 = vmatprep.subr.mxu0 0.0
  %4333 = vmatpush1.msra.mxu0 0.0
  %4334 = vmatprep.subr.mxu0 0.0
  %4335 = vmatpush1.msra.mxu0 0.0
  %4336 = vmatprep.subr.mxu0 0.0
  %4337 = vmatpush1.msra.mxu0 0.0
  %4338 = vmatprep.subr.mxu0 0.0
  %4339 = vmatpush1.msra.mxu0 0.0
  %4340 = vmatprep.subr.mxu0 0.0
  %4341 = vmatpush1.msra.mxu0 0.0
  %4342 = vmatprep.subr.mxu0 0.0
  %4343 = vmatpush1.msra.mxu0 0.0
  %4344 = vmatprep.subr.mxu0 0.0
  %4345 = vmatpush1.msra.mxu0 0.0
  %4346 = vmatprep.subr.mxu0 0.0
  %4347 = vmatpush1.msra.mxu0 0.0
  %4348 = vmatprep.subr.mxu0 0.0
  %4349 = vmatpush1.msra.mxu0 0.0
  %4350 = vmatprep.subr.mxu0 0.0
  %4351 = vmatpush1.msra.mxu0 0.0
  %4352 = vmatprep.subr.mxu0 0.0
  %4353 = vmatpush1.msra.mxu0 0.0
  %4354 = vmatprep.subr.mxu0 0.0
  %4355 = vmatpush1.msra.mxu0 0.0
  %4356 = vmatprep.subr.mxu0 0.0
  %4357 = vmatpush1.msra.mxu0 0.0
  %4358 = vmatprep.mubr.f32.mxu0 0.0
  %4359 = vmatmul.mubr.f32.gmra.mrb[0].mxu0 %v3827
  %v4360 = vpop.f32.mrb[0].mxu0
  %v4361 = vadd.f32 %v3818, %v4360
  %v4362 = vpop.f32.mrb[0].mxu0
  %v4363 = vadd.f32 %v3818, %v4362
  %4364 = vmatprep.mubr.f32.mxu0 0.0
  %4365 = vmatmul.mubr.f32.gmra.mrb[0].mxu0 %v3830
  %v4366 = vpop.f32.mrb[0].mxu0
  %v4367 = vadd.f32 %v3823, %v4366
  %v4368 = vpop.f32.mrb[0].mxu0
  %v4369 = vadd.f32 %v3823, %v4368
  %4370 = vdwg.mxu0
  %4371 = vmatprep.subr.mxu0 %v3622
  %4372 = vmatpush1.msra.mxu0 %v3621
  %4373 = vmatprep.subr.mxu0 %v3638
  %4374 = vmatpush1.msra.mxu0 %v3637
  %4375 = vmatprep.subr.mxu0 %v3654
  %4376 = vmatpush1.msra.mxu0 %v3653
  %4377 = vmatprep.subr.mxu0 %v3670
  %4378 = vmatpush1.msra.mxu0 %v3669
  %4379 = vmatprep.subr.mxu0 %v3686
  %4380 = vmatpush1.msra.mxu0 %v3685
  %4381 = vmatprep.subr.mxu0 %v3702
  %4382 = vmatpush1.msra.mxu0 %v3701
  %4383 = vmatprep.subr.mxu0 %v3718
  %4384 = vmatpush1.msra.mxu0 %v3717
  %4385 = vmatprep.subr.mxu0 %v3734
  %4386 = vmatpush1.msra.mxu0 %v3733
  %4387 = vmatprep.subr.mxu0 %v3750
  %4388 = vmatpush1.msra.mxu0 %v3749
  %4389 = vmatprep.subr.mxu0 %v3766
  %4390 = vmatpush1.msra.mxu0 %v3765
  %4391 = vmatprep.subr.mxu0 %v3782
  %4392 = vmatpush1.msra.mxu0 %v3781
  %4393 = vmatprep.subr.mxu0 %v3798
  %4394 = vmatpush1.msra.mxu0 %v3797
  %4395 = vmatprep.subr.mxu0 %v3814
  %4396 = vmatpush1.msra.mxu0 %v3813
  %4397 = vmatprep.subr.mxu0 0.0
  %4398 = vmatpush1.msra.mxu0 0.0
  %4399 = vmatprep.subr.mxu0 0.0
  %4400 = vmatpush1.msra.mxu0 0.0
  %4401 = vmatprep.subr.mxu0 0.0
  %4402 = vmatpush1.msra.mxu0 0.0
  %4403 = vmatprep.subr.mxu0 0.0
  %4404 = vmatpush1.msra.mxu0 0.0
  %4405 = vmatprep.subr.mxu0 0.0
  %4406 = vmatpush1.msra.mxu0 0.0
  %4407 = vmatprep.subr.mxu0 0.0
  %4408 = vmatpush1.msra.mxu0 0.0
  %4409 = vmatprep.subr.mxu0 0.0
  %4410 = vmatpush1.msra.mxu0 0.0
  %4411 = vmatprep.subr.mxu0 0.0
  %4412 = vmatpush1.msra.mxu0 0.0
  %4413 = vmatprep.subr.mxu0 0.0
  %4414 = vmatpush1.msra.mxu0 0.0
  %4415 = vmatprep.subr.mxu0 0.0
  %4416 = vmatpush1.msra.mxu0 0.0
  %4417 = vmatprep.subr.mxu0 0.0
  %4418 = vmatpush1.msra.mxu0 0.0
  %4419 = vmatprep.subr.mxu0 0.0
  %4420 = vmatpush1.msra.mxu0 0.0
  %4421 = vmatprep.subr.mxu0 0.0
  %4422 = vmatpush1.msra.mxu0 0.0
  %4423 = vmatprep.subr.mxu0 0.0
  %4424 = vmatpush1.msra.mxu0 0.0
  %4425 = vmatprep.subr.mxu0 0.0
  %4426 = vmatpush1.msra.mxu0 0.0
  %4427 = vmatprep.subr.mxu0 0.0
  %4428 = vmatpush1.msra.mxu0 0.0
  %4429 = vmatprep.subr.mxu0 0.0
  %4430 = vmatpush1.msra.mxu0 0.0
  %4431 = vmatprep.subr.mxu0 0.0
  %4432 = vmatpush1.msra.mxu0 0.0
  %4433 = vmatprep.subr.mxu0 0.0
  %4434 = vmatpush1.msra.mxu0 0.0
  %4435 = vmatprep.mubr.f32.mxu0 0.0
  %4436 = vmatmul.mubr.f32.gmra.mrb[0].mxu0 %v3827
  %v4437 = vpop.f32.mrb[0].mxu0
  %v4438 = vadd.f32 %v3818, %v4437
  %v4439 = vpop.f32.mrb[0].mxu0
  %v4440 = vadd.f32 %v3818, %v4439
  %4441 = vmatprep.mubr.f32.mxu0 0.0
  %4442 = vmatmul.mubr.f32.gmra.mrb[0].mxu0 %v3830
  %v4443 = vpop.f32.mrb[0].mxu0
  %v4444 = vadd.f32 %v3823, %v4443
  %v4445 = vpop.f32.mrb[0].mxu0
  %v4446 = vadd.f32 %v3823, %v4445
  %4447 = vdwg.mxu0
  %v4448 = vmul.f32 %v3899, %v2774
  %v4449 = vmul.f32 %v3901, %v2778
  %v4450 = vmul.f32 %v3976, %v2782
  %v4451 = vmul.f32 %v3978, %v2786
  %v4452 = vmul.f32 %v4053, %v2790
  %v4453 = vmul.f32 %v4055, %v2794
  %v4454 = vmul.f32 %v4130, %v2798
  %v4455 = vmul.f32 %v4132, %v2802
  %v4456 = vmul.f32 %v4207, %v2806
  %v4457 = vmul.f32 %v4209, %v2810
  %v4458 = vmul.f32 %v4284, %v2814
  %v4459 = vmul.f32 %v4286, %v2818
  %v4460 = vmul.f32 %v4361, %v2822
  %v4461 = vmul.f32 %v4363, %v2826
  %v4462 = vmul.f32 %v4438, %v2830
  %v4463 = vmul.f32 %v4440, %v2834
  %v4464 = vmul.f32 %v3905, %v2774
  %v4465 = vmul.f32 %v3907, %v2778
  %v4466 = vmul.f32 %v3982, %v2782
  %v4467 = vmul.f32 %v3984, %v2786
  %v4468 = vmul.f32 %v4059, %v2790
  %v4469 = vmul.f32 %v4061, %v2794
  %v4470 = vmul.f32 %v4136, %v2798
  %v4471 = vmul.f32 %v4138, %v2802
  %v4472 = vmul.f32 %v4213, %v2806
  %v4473 = vmul.f32 %v4215, %v2810
  %v4474 = vmul.f32 %v4290, %v2814
  %v4475 = vmul.f32 %v4292, %v2818
  %v4476 = vmul.f32 %v4367, %v2822
  %v4477 = vmul.f32 %v4369, %v2826
  %v4478 = vmul.f32 %v4444, %v2830
  %v4479 = vmul.f32 %v4446, %v2834
  %v4480 = vadd.f32 %v4448, %v4449
  %v4481 = vadd.f32 %v4480, %v4450
  %v4482 = vadd.f32 %v4481, %v4451
  %v4483 = vadd.f32 %v4482, %v4452
  %v4484 = vadd.f32 %v4483, %v4453
  %v4485 = vadd.f32 %v4484, %v4454
  %v4486 = vadd.f32 %v4485, %v4455
  %4487 = vadd.xlane.f32.xlu0 %v4486
  %v4488 = vpop.xlane.xlu0 %4487
  %v4489 = vadd.f32 %v4464, %v4465
  %v4490 = vadd.f32 %v4489, %v4466
  %v4491 = vadd.f32 %v4490, %v4467
  %v4492 = vadd.f32 %v4491, %v4468
  %v4493 = vadd.f32 %v4492, %v4469
  %v4494 = vadd.f32 %v4493, %v4470
  %v4495 = vadd.f32 %v4494, %v4471
  %4496 = vadd.xlane.f32.xlu0 %v4495
  %v4497 = vpop.xlane.xlu0 %4496
  %v4498 = vadd.f32 %v4456, %v4457
  %v4499 = vadd.f32 %v4498, %v4458
  %v4500 = vadd.f32 %v4499, %v4459
  %v4501 = vadd.f32 %v4500, %v4460
  %v4502 = vadd.f32 %v4501, %v4461
  %v4503 = vadd.f32 %v4502, %v4462
  %v4504 = vadd.f32 %v4503, %v4463
  %4505 = vadd.xlane.f32.xlu0 %v4504
  %v4506 = vpop.xlane.xlu0 %4505
  %v4507 = vadd.f32 %v4472, %v4473
  %v4508 = vadd.f32 %v4507, %v4474
  %v4509 = vadd.f32 %v4508, %v4475
  %v4510 = vadd.f32 %v4509, %v4476
  %v4511 = vadd.f32 %v4510, %v4477
  %v4512 = vadd.f32 %v4511, %v4478
  %v4513 = vadd.f32 %v4512, %v4479
  %4514 = vadd.xlane.f32.xlu0 %v4513
  %v4515 = vpop.xlane.xlu0 %4514
  %vm4516 = vcmask 7168
  %v4517 = vsel %vm4516, %v4488, %v4506
  %v4518 = vsel %vm4516, %v4497, %v4515
  %v4519 = vld [vmem:[%s6] sm:$0xff]
  %v4520 = vld [vmem:[%s6 + $0x8] sm:$0x3]
  %v4521 = vld [vmem:[%s7] sm:$0xff]
  %v4522 = vld [vmem:[%s7 + $0x8] sm:$0x3]
  %4524 = vset.pattern.permute.xlu0 0
  %4525 = vperm.xlu0 %4524, %v4521
  %v4526 = vpop.permute.xlu0 %4525
  %4529 = vset.pattern.permute.xlu0 0
  %4530 = vperm.xlu0 %4529, %v4522
  %v4531 = vpop.permute.xlu0 %4530
  %vm4533 = vcmask 130048
  %v4535 = vsel %vm4533, %v4519, 0
  %v4538 = vsel %vm4533, %v4520, 0
  %4540 = vmatprep.subr.mxu0 0.0
  %4541 = vmatpush1.msra.mxu0 %v4517
  %4542 = vmatprep.subr.mxu0 0.0
  %4543 = vmatpush1.msra.mxu0 %v4518
  %4544 = vmatprep.subr.mxu0 0.0
  %4545 = vmatpush1.msra.mxu0 0.0
  %4546 = vmatprep.subr.mxu0 0.0
  %4547 = vmatpush1.msra.mxu0 0.0
  %4548 = vmatprep.subr.mxu0 0.0
  %4549 = vmatpush1.msra.mxu0 0.0
  %4550 = vmatprep.subr.mxu0 0.0
  %4551 = vmatpush1.msra.mxu0 0.0
  %4552 = vmatprep.subr.mxu0 0.0
  %4553 = vmatpush1.msra.mxu0 0.0
  %4554 = vmatprep.subr.mxu0 0.0
  %4555 = vmatpush1.msra.mxu0 0.0
  %4556 = vmatprep.subr.mxu0 0.0
  %4557 = vmatpush1.msra.mxu0 0.0
  %4558 = vmatprep.subr.mxu0 0.0
  %4559 = vmatpush1.msra.mxu0 0.0
  %4560 = vmatprep.subr.mxu0 0.0
  %4561 = vmatpush1.msra.mxu0 0.0
  %4562 = vmatprep.subr.mxu0 0.0
  %4563 = vmatpush1.msra.mxu0 0.0
  %4564 = vmatprep.subr.mxu0 0.0
  %4565 = vmatpush1.msra.mxu0 0.0
  %4566 = vmatprep.subr.mxu0 0.0
  %4567 = vmatpush1.msra.mxu0 0.0
  %4568 = vmatprep.subr.mxu0 0.0
  %4569 = vmatpush1.msra.mxu0 0.0
  %4570 = vmatprep.subr.mxu0 0.0
  %4571 = vmatpush1.msra.mxu0 0.0
  %4572 = vmatprep.subr.mxu0 0.0
  %4573 = vmatpush1.msra.mxu0 0.0
  %4574 = vmatprep.subr.mxu0 0.0
  %4575 = vmatpush1.msra.mxu0 0.0
  %4576 = vmatprep.subr.mxu0 0.0
  %4577 = vmatpush1.msra.mxu0 0.0
  %4578 = vmatprep.subr.mxu0 0.0
  %4579 = vmatpush1.msra.mxu0 0.0
  %4580 = vmatprep.subr.mxu0 0.0
  %4581 = vmatpush1.msra.mxu0 0.0
  %4582 = vmatprep.subr.mxu0 0.0
  %4583 = vmatpush1.msra.mxu0 0.0
  %4584 = vmatprep.subr.mxu0 0.0
  %4585 = vmatpush1.msra.mxu0 0.0
  %4586 = vmatprep.subr.mxu0 0.0
  %4587 = vmatpush1.msra.mxu0 0.0
  %4588 = vmatprep.subr.mxu0 0.0
  %4589 = vmatpush1.msra.mxu0 0.0
  %4590 = vmatprep.subr.mxu0 0.0
  %4591 = vmatpush1.msra.mxu0 0.0
  %4592 = vmatprep.subr.mxu0 0.0
  %4593 = vmatpush1.msra.mxu0 0.0
  %4594 = vmatprep.subr.mxu0 0.0
  %4595 = vmatpush1.msra.mxu0 0.0
  %4596 = vmatprep.subr.mxu0 0.0
  %4597 = vmatpush1.msra.mxu0 0.0
  %4598 = vmatprep.subr.mxu0 0.0
  %4599 = vmatpush1.msra.mxu0 0.0
  %4600 = vmatprep.subr.mxu0 0.0
  %4601 = vmatpush1.msra.mxu0 0.0
  %4602 = vmatprep.subr.mxu0 0.0
  %4603 = vmatpush1.msra.mxu0 0.0
  %4604 = vmatprep.mubr.f32.mxu0 0.0
  %4605 = vmatmul.mubr.f32.gmra.mrb[0].mxu0 %v4535
  %v4606 = vpop.f32.mrb[0].mxu0
  %v4607 = vadd.f32 %v4526, %v4606
  %v4608 = vpop.f32.mrb[0].mxu0
  %4609 = vmatprep.mubr.f32.mxu0 0.0
  %4610 = vmatmul.mubr.f32.gmra.mrb[0].mxu0 %v4538
  %v4611 = vpop.f32.mrb[0].mxu0
  %v4612 = vadd.f32 %v4531, %v4611
  %v4613 = vpop.f32.mrb[0].mxu0
  %4614 = vdwg.mxu0
  %vm4615 = vcmask 15360
  %4616 = vst.msk [vmem:[%s8] sm:$0xff] %vm4615, %v4607
  %vm4617 = vcmask 9216
  %4618 = vst.msk [vmem:[%s8 + $0x8] sm:$0x3] %vm4617, %v4612
  // Predicated region
  $region34: #{sphere_gauge_cnn_forward.1} parent=0 // pred_check
    _
  $region35: #{sphere_gauge_cnn_forward.1} parent=0 // pred_check_branch
    %4620 = sbr.rel (0) target = $region37
  $region36: #{sphere_gauge_cnn_forward.1} parent=0 // pred_region
    _
  $region37: #{sphere_gauge_cnn_forward.1} parent=0 // pred_fallthru
    _
  // Predicated region
  $region38: #{sphere_gauge_cnn_forward.1} parent=0 // pred_check
    _
  $region39: #{sphere_gauge_cnn_forward.1} parent=0 // pred_check_branch
    %4622 = sbr.rel (0) target = $region41
  $region40: #{sphere_gauge_cnn_forward.1} parent=0 // pred_region
    _
  $region41: #{sphere_gauge_cnn_forward.1} parent=0 // pred_fallthru
    _

</llo_original>
